<compile_context>
chip_gen: v5e
topology: v5e:2x2
jax: 0.10.0
libtpu: 0.0.40
codegen_flags: <defaults>
</compile_context>

<pallas_src>
import functools

import jax
import jax.numpy as jnp
from jax.experimental import pallas as pl
from jax.experimental.pallas import tpu as pltpu

CORNERS_MAX = 8        # 2**3 for the 3D plane; 2D planes use 4 and are padded


def _round_up(x, m):
    return (x + m - 1) // m * m


# ----------------------------------------------------------------------------
# Kernel 1: fused splat (scatter weighted-average) for ALL planes & levels.
# ----------------------------------------------------------------------------
def _splat_kernel(cseg_ref, flat_ref, w_ref, feat_ref, out_ref, acc_ref, *, chunk):
    """cell tile (axis 0, parallel)  x  point block (axis 1, reduction).

    cseg_ref : (n_tiles,) int32 SMEM   per-cell-tile segment id (index_maps only)
    flat_ref : (NC, TK)  int32         global flat cell index per (corner, point)
    w_ref    : (NC, TK)  bf16          multilinear splat weight per (corner, point)
    feat_ref : (TK, C+1) bf16          point features with trailing ones column
    out_ref  : (TG, C)   bf16          normalised grid values for this cell tile
    acc_ref  : (TG, C+1) f32           accumulator [sum(w*feat) | sum(w)]
    """
    del cseg_ref                                   # consumed by the index_maps
    g = pl.program_id(0)
    k = pl.program_id(1)

    @pl.when(k == 0)
    def _init():
        acc_ref[...] = jnp.zeros_like(acc_ref)

    tg = out_ref.shape[0]
    nc, tk = flat_ref.shape
    row_ids = g * tg + jax.lax.broadcasted_iota(jnp.int32, (tg, chunk), 0)

    # Iterate 128-wide sub-chunks of the (large) point block to amortise
    # grid-step overhead without blowing up vreg pressure.
    for q in range(tk // chunk):
        lo = q * chunk
        fl = flat_ref[:, lo:lo + chunk]                     # (NC, chunk) int32
        wv = w_ref[:, lo:lo + chunk].astype(jnp.float32)    # (NC, chunk) f32
        st = jnp.zeros((tg, chunk), jnp.float32)
        for c in range(nc):                                 # <= 8 corners (segment-local)
            st = st + jnp.where(fl[c:c + 1, :] == row_ids, wv[c:c + 1, :], 0.0)
        acc_ref[...] += jnp.dot(st.astype(jnp.bfloat16),
                                feat_ref[lo:lo + chunk, :],
                                preferred_element_type=jnp.float32)

    @pl.when(k == pl.num_programs(1) - 1)
    def _finalize():                                        # fused normalisation
        c_out = out_ref.shape[1]
        acc = acc_ref[...]
        num = acc[:, :c_out]
        den = acc[:, c_out:c_out + 1]
        out_ref[...] = (num * pl.reciprocal(den + 1e-6, approx=True)
                        ).astype(out_ref.dtype)


def splat_all_grids(cell_seg, flat_t, w_t, feat_ones, *, tg=128, tk=512, chunk=128):
    """One pallas_call producing the stacked (G_pad, C) bf16 grid for all segments."""
    n_seg, nc, n_pad = flat_t.shape
    c1 = feat_ones.shape[1]
    c = c1 - 1
    g_pad = cell_seg.shape[0] * tg
    assert n_pad % tk == 0 and tk % chunk == 0
    g_tiles, k_tiles = g_pad // tg, n_pad // tk

    cost = pl.CostEstimate(
        flops=2 * g_pad * n_pad * c1,
        transcendentals=0,
        bytes_accessed=int(g_tiles * k_tiles * (nc * tk * (4 + 2) + tk * c1 * 2)
                           + g_pad * c * 2),
    )
    kern = functools.partial(_splat_kernel, chunk=chunk)
    return pl.pallas_call(
        kern,
        out_shape=jax.ShapeDtypeStruct((g_pad, c), jnp.bfloat16),
        grid_spec=pltpu.PrefetchScalarGridSpec(
            num_scalar_prefetch=1,
            grid=(g_tiles, k_tiles),
            in_specs=[
                pl.BlockSpec((None, nc, tk), lambda g, k, seg: (seg[g], 0, k)),
                pl.BlockSpec((None, nc, tk), lambda g, k, seg: (seg[g], 0, k)),
                pl.BlockSpec((tk, c1), lambda g, k, seg: (k, 0)),
            ],
            out_specs=pl.BlockSpec((tg, c), lambda g, k, seg: (g, 0)),
            scratch_shapes=[pltpu.VMEM((tg, c1), jnp.float32)],
        ),
        compiler_params=pltpu.CompilerParams(
            dimension_semantics=("parallel", "arbitrary")),
        cost_estimate=cost,
    )(cell_seg, flat_t, w_t, feat_ones)


# ----------------------------------------------------------------------------
# Kernel 2: fused multilinear interpolation for ALL planes & levels.
# ----------------------------------------------------------------------------
def _interp_kernel(gseg_ref, flat_ref, w_ref, grid_ref, out_ref, acc_ref):
    """query tile (axis 0, parallel)  x  grid-cell tile (axis 1, reduction).

    gseg_ref : (g_tiles,) int32 SMEM   per-grid-tile segment id
    flat_ref : (TM, NC)  int32         global flat cell index per (query, corner)
    w_ref    : (TM, NC)  bf16          interpolation weight per (query, corner)
    grid_ref : (TG, C)   bf16          stacked grid tile
    out_ref  : (n_seg, TM, C) f32      per-segment context for this query tile
    acc_ref  : (n_seg, TM, C) f32
    """
    j = pl.program_id(1)

    @pl.when(j == 0)
    def _init():
        acc_ref[...] = jnp.zeros_like(acc_ref)

    tm, nc = flat_ref.shape
    tg = grid_ref.shape[0]
    col_ids = j * tg + jax.lax.broadcasted_iota(jnp.int32, (tm, tg), 1)

    flat = flat_ref[...]
    w = w_ref[...].astype(jnp.float32)
    wt = jnp.zeros((tm, tg), jnp.float32)
    for c in range(nc):                                     # <= 8 corners (segment-local)
        wt = wt + jnp.where(flat[:, c:c + 1] == col_ids, w[:, c:c + 1], 0.0)

    contrib = jnp.dot(wt.astype(jnp.bfloat16), grid_ref[...],
                      preferred_element_type=jnp.float32)
    seg = gseg_ref[j]
    acc_ref[seg] = acc_ref[seg] + contrib                   # dynamic leading-axis index

    @pl.when(j == pl.num_programs(1) - 1)
    def _finalize():
        out_ref[...] = acc_ref[...]


def interp_all_grids(grid_seg, flat_q, w_q, grid_all, *, tm=128, tg=128):
    """One pallas_call producing the (n_seg, M_pad, C) context for all segments."""
    n_seg, m_pad, nc = flat_q.shape
    g_pad, c = grid_all.shape
    assert grid_seg.shape[0] * tg == g_pad and m_pad % tm == 0
    m_tiles, g_tiles = m_pad // tm, g_pad // tg

    cost = pl.CostEstimate(
        flops=2 * m_pad * g_pad * c,
        transcendentals=0,
        bytes_accessed=int(m_tiles * g_tiles * (tm * nc * (4 + 2) + tg * c * 2)
                           + n_seg * m_pad * c * 4),
    )
    return pl.pallas_call(
        _interp_kernel,
        out_shape=jax.ShapeDtypeStruct((n_seg, m_pad, c), jnp.float32),
        grid_spec=pltpu.PrefetchScalarGridSpec(
            num_scalar_prefetch=1,
            grid=(m_tiles, g_tiles),
            in_specs=[
                pl.BlockSpec((None, tm, nc), lambda i, j, seg: (seg[j], i, 0)),
                pl.BlockSpec((None, tm, nc), lambda i, j, seg: (seg[j], i, 0)),
                pl.BlockSpec((tg, c), lambda i, j, seg: (j, 0)),
            ],
            out_specs=pl.BlockSpec((n_seg, tm, c), lambda i, j, seg: (0, i, 0)),
            scratch_shapes=[pltpu.VMEM((n_seg, tm, c), jnp.float32)],
        ),
        compiler_params=pltpu.CompilerParams(
            dimension_semantics=("parallel", "arbitrary")),
        cost_estimate=cost,
    )(grid_seg, flat_q, w_q, grid_all)


# ----------------------------------------------------------------------------
# Plain-JAX glue: per-point multilinear corner indices + weights (O(N * 2^d)).
# ----------------------------------------------------------------------------
def _multilinear_corners(coords_d, r):
    """coords_d (N, d) in [0,1] -> local flat indices (2^d, N) int32, weights (2^d, N) f32."""
    _n, d = coords_d.shape
    scaled = coords_d.astype(jnp.float32) * (r - 1)
    cell = jnp.clip(jnp.floor(scaled), 0, max(r - 2, 0)).astype(jnp.int32)
    frac = scaled - cell.astype(jnp.float32)
    strides = jnp.asarray([r ** (d - 1 - dd) for dd in range(d)], jnp.int32)
    flats, ws = [], []
    for corner in range(2 ** d):
        bits = jnp.asarray([(corner >> dd) & 1 for dd in range(d)], jnp.int32)
        idx = cell + bits[None, :]
        wgt = jnp.prod(jnp.where(bits[None, :] == 1, frac, 1.0 - frac), axis=-1)
        flats.append(jnp.sum(idx * strides[None, :], axis=-1).astype(jnp.int32))
        ws.append(wgt.astype(jnp.float32))
    return jnp.stack(flats, 0), jnp.stack(ws, 0)


# ----------------------------------------------------------------------------
# Spatial_CTX forward pass.
# ----------------------------------------------------------------------------
class SpatialCTX:
    def __init__(self, reso_3D, off_3D, reso_2D, off_2D, *, tile=128, point_block=512):
        assert tile % 128 == 0 and point_block % 128 == 0
        self.reso_3D, self.off_3D = reso_3D, off_3D
        self.reso_2D, self.off_2D = reso_2D, off_2D
        self.tile = tile
        self.point_block = point_block
        # plane layout in the fused grid buffer: [3D | xy | xz | yz]
        self.plane_defs = [
            ((0, 1, 2), reso_3D, off_3D),
            ((0, 1), reso_2D, off_2D),
            ((0, 2), reso_2D, off_2D),
            ((1, 2), reso_2D, off_2D),
        ]
        # one segment per (plane, level); each padded to a multiple of `tile`
        # so a cell tile never straddles two segments.
        self.segments = []            # (dims, reso, padded_start, size)
        self.plane_seg_ids = []
        start = 0
        tile_seg = []
        for dims, reso, off in self.plane_defs:
            d = len(dims)
            ids = []
            for l, r in enumerate(reso):
                size = r ** d
                assert off[l + 1] - off[l] == size, "off must match reso"
                sid = len(self.segments)
                self.segments.append((dims, r, start, size))
                ids.append(sid)
                padded = _round_up(size, tile)
                tile_seg += [sid] * (padded // tile)
                start += padded
            self.plane_seg_ids.append(ids)
        self.total_g_pad = start
        self.n_seg = len(self.segments)
        self.tile_seg = jnp.asarray(tile_seg, jnp.int32)   # per-cell-tile segment id

    def _corner_data(self, xyz):
        """(n_seg, CORNERS_MAX, N) global flat indices (int32, -1 = padding) + weights (f32)."""
        fs, ws = [], []
        for dims, r, start, _size in self.segments:
            f, w = _multilinear_corners(xyz[:, list(dims)], r)
            f = f + start
            pad = CORNERS_MAX - f.shape[0]
            if pad:
                f = jnp.pad(f, ((0, pad), (0, 0)), constant_values=-1)
                w = jnp.pad(w, ((0, pad), (0, 0)))
            fs.append(f)
            ws.append(w)
        return jnp.stack(fs, 0), jnp.stack(ws, 0)

    def __call__(self, xyz_for_creater, xyz_for_interp, feature,
                 determ=False, return_all=False):
        assert xyz_for_creater.shape[0] == feature.shape[0]
        del determ   # matmul-style accumulation is already deterministic on TPU
        n, c = feature.shape
        m = xyz_for_interp.shape[0]
        t = self.tile

        # ---- fused splat: one pallas_call for all planes & levels ----------
        flat_c, w_c = self._corner_data(xyz_for_creater)          # (n_seg, 8, N)
        tk = min(self.point_block, _round_up(max(n, 1), 128))
        n_pad = _round_up(max(n, 1), tk)
        flat_c = jnp.pad(flat_c, ((0, 0), (0, 0), (0, n_pad - n)),
                         constant_values=-1)
        w_c = jnp.pad(w_c, ((0, 0), (0, 0), (0, n_pad - n))).astype(jnp.bfloat16)
        feat_ones = jnp.concatenate(
            [feature.astype(jnp.float32), jnp.ones((n, 1), jnp.float32)], axis=1)
        feat_ones = jnp.pad(feat_ones, ((0, n_pad - n), (0, 0))).astype(jnp.bfloat16)

        grid_all = splat_all_grids(self.tile_seg, flat_c, w_c, feat_ones,
                                   tg=t, tk=tk)                   # (G_pad, C) bf16

        # ---- fused interpolation: one pallas_call, no block-diagonal grid --
        flat_q, w_q = self._corner_data(xyz_for_interp)           # (n_seg, 8, M)
        m_pad = _round_up(max(m, 1), t)
        flat_q = jnp.pad(jnp.transpose(flat_q, (0, 2, 1)),
                         ((0, 0), (0, m_pad - m), (0, 0)), constant_values=-1)
        w_q = jnp.pad(jnp.transpose(w_q, (0, 2, 1)),
                      ((0, 0), (0, m_pad - m), (0, 0))).astype(jnp.bfloat16)

        ctx = interp_all_grids(self.tile_seg, flat_q, w_q, grid_all,
                               tm=t, tg=t)                        # (n_seg, M_pad, C)
        context_info = jnp.transpose(ctx, (1, 0, 2))[:m].reshape(m, self.n_seg * c)

        if return_all:
            def plane_grid(p):
                parts = [grid_all[s:s + sz].astype(jnp.float32)
                         for (_, _, s, sz) in (self.segments[i]
                                               for i in self.plane_seg_ids[p])]
                return jnp.concatenate(parts, axis=0)
            grid_3D, grid_xy, grid_xz, grid_yz = (plane_grid(p) for p in range(4))
            l3 = len(self.reso_3D) * c
            l2 = len(self.reso_2D) * c
            ctx_3D = context_info[:, :l3]
            ctx_xy = context_info[:, l3:l3 + l2]
            ctx_xz = context_info[:, l3 + l2:l3 + 2 * l2]
            ctx_yz = context_info[:, l3 + 2 * l2:]
            return context_info, (xyz_for_creater, xyz_for_interp, feature,
                                  grid_3D, grid_xy, grid_xz, grid_yz,
                                  ctx_3D, ctx_xy, ctx_xz, ctx_yz,
                                  self.reso_3D, self.off_3D)
        return context_info


# ----------------------------------------------------------------------------
# Pure-JAX reference (scatter-add / gather formulation) for a correctness check.
# ----------------------------------------------------------------------------
def reference_forward(model, xyz_c, xyz_i, feature):
    c = feature.shape[1]
    outs = []
    for dims, r, _start, size in model.segments:
        f, w = _multilinear_corners(xyz_c[:, list(dims)], r)
        num = jnp.zeros((size, c), jnp.float32)
        den = jnp.zeros((size, 1), jnp.float32)
        for k in range(f.shape[0]):
            num = num.at[f[k]].add(w[k][:, None] * feature)
            den = den.at[f[k]].add(w[k][:, None])
        grid = num / (den + 1e-6)
        fq, wq = _multilinear_corners(xyz_i[:, list(dims)], r)
        o = jnp.zeros((xyz_i.shape[0], c), jnp.float32)
        for k in range(fq.shape[0]):
            o = o + wq[k][:, None] * grid[fq[k]]
        outs.append(o)
    return jnp.concatenate(outs, axis=-1)


# ----------------------------------------------------------------------------
if __name__ == "__main__":
    key = jax.random.PRNGKey(0)
    k1, k2, k3 = jax.random.split(key, 3)

    N_create, N_interp, C = 64, 48, 8
    reso_3D = [2, 4]
    off_3D = [0, 2 ** 3, 2 ** 3 + 4 ** 3]          # [0, 8, 72]
    reso_2D = [4, 8]
    off_2D = [0, 4 ** 2, 4 ** 2 + 8 ** 2]          # [0, 16, 80]

    xyz_for_creater = jax.random.uniform(k1, (N_create, 3), dtype=jnp.float32)
    xyz_for_interp = jax.random.uniform(k2, (N_interp, 3), dtype=jnp.float32)
    feature = jax.random.normal(k3, (N_create, C), dtype=jnp.float32)

    model = SpatialCTX(reso_3D, off_3D, reso_2D, off_2D)
    fwd = jax.jit(lambda a, b, f: model(a, b, f))

    context_info = fwd(xyz_for_creater, xyz_for_interp, feature)
    jax.block_until_ready(context_info)

    expected_cols = (len(reso_3D) + 3 * len(reso_2D)) * C
    assert context_info.shape == (N_interp, expected_cols), context_info.shape
    assert bool(jnp.all(jnp.isfinite(context_info)))

    ref = reference_forward(model, xyz_for_creater, xyz_for_interp, feature)
    max_err = float(jnp.max(jnp.abs(context_info - ref)))
    assert bool(jnp.allclose(context_info, ref, rtol=5e-2, atol=5e-2)), max_err

    # exercise return_all once (grids + per-plane context splits)
    ctx2, aux = model(xyz_for_creater, xyz_for_interp, feature, return_all=True)
    jax.block_until_ready(ctx2)
    assert aux[3].shape == (off_3D[-1], C)          # grid_3D
    assert aux[4].shape == (off_2D[-1], C)          # grid_xy

    print("KERNEL_OK")
</pallas_src>

<mosaic_0001>
module attributes {stable_mosaic.version = 11 : i64} {
  func.func @_splat_kernel(%arg0: i32, %arg1: i32, %arg2: memref<8xi32, #tpu.memory_space<smem>>, %arg3: memref<1x8x128xi32, #tpu.memory_space<vmem>>, %arg4: memref<1x8x128xbf16, #tpu.memory_space<vmem>>, %arg5: memref<128x9xbf16, #tpu.memory_space<vmem>>, %arg6: memref<128x8xbf16, #tpu.memory_space<vmem>>, %arg7: memref<128x9xf32, #tpu.memory_space<vmem>>) attributes {dimension_semantics = [#tpu.dimension_semantics<parallel>, #tpu.dimension_semantics<arbitrary>], iteration_bounds = array<i64: 8, 1>, scalar_prefetch = 1 : i64, scratch_operands = 1 : i64, tpu.core_type = #tpu.core_type<tc>, window_params = [{transform_indices = @transform_0, window_bounds = array<i64: 1, 8, 128>}, {transform_indices = @transform_1, window_bounds = array<i64: 1, 8, 128>}, {transform_indices = @transform_2, window_bounds = array<i64: 128, 9>}, {transform_indices = @transform_3, window_bounds = array<i64: 128, 8>}]} {
    %c0_i32 = arith.constant 0 : i32
    %0 = arith.cmpi eq, %arg1, %c0_i32 : i32
    %1 = arith.extui %0 : i1 to i32
    %c0_i32_0 = arith.constant 0 : i32
    %2 = arith.cmpi ne, %1, %c0_i32_0 : i32
    scf.if %2 {
      %cst_23 = arith.constant 0.000000e+00 : f32
      %94 = vector.broadcast %cst_23 : f32 to vector<128x9xf32>
      %c0_24 = arith.constant 0 : index
      %c0_25 = arith.constant 0 : index
      %95 = vector.load %arg7[%c0_24, %c0_25] : memref<128x9xf32, #tpu.memory_space<vmem>>, vector<128x9xf32>
      tpu.vector_store %arg7[%c0_24, %c0_25], %94 {strides = array<i32>} : memref<128x9xf32, #tpu.memory_space<vmem>>, vector<128x9xf32>,
    } else {
    }
    %c128_i32 = arith.constant 128 : i32
    %3 = arith.muli %arg0, %c128_i32 : i32
    %4 = tpu.iota {dimensions = array<i32: 0>} : vector<128x128xi32>
    %5 = vector.broadcast %3 : i32 to vector<128x128xi32>
    %6 = arith.addi %5, %4 : vector<128x128xi32>
    %c0 = arith.constant 0 : index
    %c0_1 = arith.constant 0 : index
    %c0_2 = arith.constant 0 : index
    %7 = vector.load %arg3[%c0, %c0_1, %c0_2] : memref<1x8x128xi32, #tpu.memory_space<vmem>>, vector<1x8x128xi32>
    %8 = vector.shape_cast %7 : vector<1x8x128xi32> to vector<8x128xi32>
    %c0_3 = arith.constant 0 : index
    %c0_4 = arith.constant 0 : index
    %c0_5 = arith.constant 0 : index
    %9 = vector.load %arg4[%c0_3, %c0_4, %c0_5] : memref<1x8x128xbf16, #tpu.memory_space<vmem>>, vector<1x8x128xbf16>
    %10 = vector.shape_cast %9 : vector<1x8x128xbf16> to vector<8x128xbf16>
    %11 = arith.extf %10 : vector<8x128xbf16> to vector<8x128xf32>
    %cst = arith.constant 0.000000e+00 : f32
    %12 = vector.broadcast %cst : f32 to vector<128x128xf32>
    %13 = vector.extract_strided_slice %8 {offsets = [0, 0], sizes = [1, 128], strides = [1, 1]} : vector<8x128xi32> to vector<1x128xi32>
    %14 = vector.broadcast %13 : vector<1x128xi32> to vector<128x128xi32>
    %15 = arith.cmpi eq, %14, %6 : vector<128x128xi32>
    %16 = vector.extract_strided_slice %11 {offsets = [0, 0], sizes = [1, 128], strides = [1, 1]} : vector<8x128xf32> to vector<1x128xf32>
    %cst_6 = arith.constant 0.000000e+00 : f32
    %17 = vector.shape_cast %16 : vector<1x128xf32> to vector<1x128xf32>
    %18 = vector.broadcast %17 : vector<1x128xf32> to vector<128x128xf32>
    %19 = vector.broadcast %cst_6 : f32 to vector<128x128xf32>
    %20 = arith.select %15, %18, %19 : vector<128x128xi1>, vector<128x128xf32>
    %21 = arith.addf %12, %20 : vector<128x128xf32>
    %22 = vector.extract_strided_slice %8 {offsets = [1, 0], sizes = [1, 128], strides = [1, 1]} : vector<8x128xi32> to vector<1x128xi32>
    %23 = vector.broadcast %22 : vector<1x128xi32> to vector<128x128xi32>
    %24 = arith.cmpi eq, %23, %6 : vector<128x128xi32>
    %25 = vector.extract_strided_slice %11 {offsets = [1, 0], sizes = [1, 128], strides = [1, 1]} : vector<8x128xf32> to vector<1x128xf32>
    %cst_7 = arith.constant 0.000000e+00 : f32
    %26 = vector.shape_cast %25 : vector<1x128xf32> to vector<1x128xf32>
    %27 = vector.broadcast %26 : vector<1x128xf32> to vector<128x128xf32>
    %28 = vector.broadcast %cst_7 : f32 to vector<128x128xf32>
    %29 = arith.select %24, %27, %28 : vector<128x128xi1>, vector<128x128xf32>
    %30 = arith.addf %21, %29 : vector<128x128xf32>
    %31 = vector.extract_strided_slice %8 {offsets = [2, 0], sizes = [1, 128], strides = [1, 1]} : vector<8x128xi32> to vector<1x128xi32>
    %32 = vector.broadcast %31 : vector<1x128xi32> to vector<128x128xi32>
    %33 = arith.cmpi eq, %32, %6 : vector<128x128xi32>
    %34 = vector.extract_strided_slice %11 {offsets = [2, 0], sizes = [1, 128], strides = [1, 1]} : vector<8x128xf32> to vector<1x128xf32>
    %cst_8 = arith.constant 0.000000e+00 : f32
    %35 = vector.shape_cast %34 : vector<1x128xf32> to vector<1x128xf32>
    %36 = vector.broadcast %35 : vector<1x128xf32> to vector<128x128xf32>
    %37 = vector.broadcast %cst_8 : f32 to vector<128x128xf32>
    %38 = arith.select %33, %36, %37 : vector<128x128xi1>, vector<128x128xf32>
    %39 = arith.addf %30, %38 : vector<128x128xf32>
    %40 = vector.extract_strided_slice %8 {offsets = [3, 0], sizes = [1, 128], strides = [1, 1]} : vector<8x128xi32> to vector<1x128xi32>
    %41 = vector.broadcast %40 : vector<1x128xi32> to vector<128x128xi32>
    %42 = arith.cmpi eq, %41, %6 : vector<128x128xi32>
    %43 = vector.extract_strided_slice %11 {offsets = [3, 0], sizes = [1, 128], strides = [1, 1]} : vector<8x128xf32> to vector<1x128xf32>
    %cst_9 = arith.constant 0.000000e+00 : f32
    %44 = vector.shape_cast %43 : vector<1x128xf32> to vector<1x128xf32>
    %45 = vector.broadcast %44 : vector<1x128xf32> to vector<128x128xf32>
    %46 = vector.broadcast %cst_9 : f32 to vector<128x128xf32>
    %47 = arith.select %42, %45, %46 : vector<128x128xi1>, vector<128x128xf32>
    %48 = arith.addf %39, %47 : vector<128x128xf32>
    %49 = vector.extract_strided_slice %8 {offsets = [4, 0], sizes = [1, 128], strides = [1, 1]} : vector<8x128xi32> to vector<1x128xi32>
    %50 = vector.broadcast %49 : vector<1x128xi32> to vector<128x128xi32>
    %51 = arith.cmpi eq, %50, %6 : vector<128x128xi32>
    %52 = vector.extract_strided_slice %11 {offsets = [4, 0], sizes = [1, 128], strides = [1, 1]} : vector<8x128xf32> to vector<1x128xf32>
    %cst_10 = arith.constant 0.000000e+00 : f32
    %53 = vector.shape_cast %52 : vector<1x128xf32> to vector<1x128xf32>
    %54 = vector.broadcast %53 : vector<1x128xf32> to vector<128x128xf32>
    %55 = vector.broadcast %cst_10 : f32 to vector<128x128xf32>
    %56 = arith.select %51, %54, %55 : vector<128x128xi1>, vector<128x128xf32>
    %57 = arith.addf %48, %56 : vector<128x128xf32>
    %58 = vector.extract_strided_slice %8 {offsets = [5, 0], sizes = [1, 128], strides = [1, 1]} : vector<8x128xi32> to vector<1x128xi32>
    %59 = vector.broadcast %58 : vector<1x128xi32> to vector<128x128xi32>
    %60 = arith.cmpi eq, %59, %6 : vector<128x128xi32>
    %61 = vector.extract_strided_slice %11 {offsets = [5, 0], sizes = [1, 128], strides = [1, 1]} : vector<8x128xf32> to vector<1x128xf32>
    %cst_11 = arith.constant 0.000000e+00 : f32
    %62 = vector.shape_cast %61 : vector<1x128xf32> to vector<1x128xf32>
    %63 = vector.broadcast %62 : vector<1x128xf32> to vector<128x128xf32>
    %64 = vector.broadcast %cst_11 : f32 to vector<128x128xf32>
    %65 = arith.select %60, %63, %64 : vector<128x128xi1>, vector<128x128xf32>
    %66 = arith.addf %57, %65 : vector<128x128xf32>
    %67 = vector.extract_strided_slice %8 {offsets = [6, 0], sizes = [1, 128], strides = [1, 1]} : vector<8x128xi32> to vector<1x128xi32>
    %68 = vector.broadcast %67 : vector<1x128xi32> to vector<128x128xi32>
    %69 = arith.cmpi eq, %68, %6 : vector<128x128xi32>
    %70 = vector.extract_strided_slice %11 {offsets = [6, 0], sizes = [1, 128], strides = [1, 1]} : vector<8x128xf32> to vector<1x128xf32>
    %cst_12 = arith.constant 0.000000e+00 : f32
    %71 = vector.shape_cast %70 : vector<1x128xf32> to vector<1x128xf32>
    %72 = vector.broadcast %71 : vector<1x128xf32> to vector<128x128xf32>
    %73 = vector.broadcast %cst_12 : f32 to vector<128x128xf32>
    %74 = arith.select %69, %72, %73 : vector<128x128xi1>, vector<128x128xf32>
    %75 = arith.addf %66, %74 : vector<128x128xf32>
    %76 = vector.extract_strided_slice %8 {offsets = [7, 0], sizes = [1, 128], strides = [1, 1]} : vector<8x128xi32> to vector<1x128xi32>
    %77 = vector.broadcast %76 : vector<1x128xi32> to vector<128x128xi32>
    %78 = arith.cmpi eq, %77, %6 : vector<128x128xi32>
    %79 = vector.extract_strided_slice %11 {offsets = [7, 0], sizes = [1, 128], strides = [1, 1]} : vector<8x128xf32> to vector<1x128xf32>
    %cst_13 = arith.constant 0.000000e+00 : f32
    %80 = vector.shape_cast %79 : vector<1x128xf32> to vector<1x128xf32>
    %81 = vector.broadcast %80 : vector<1x128xf32> to vector<128x128xf32>
    %82 = vector.broadcast %cst_13 : f32 to vector<128x128xf32>
    %83 = arith.select %78, %81, %82 : vector<128x128xi1>, vector<128x128xf32>
    %84 = arith.addf %75, %83 : vector<128x128xf32>
    %c0_14 = arith.constant 0 : index
    %c0_15 = arith.constant 0 : index
    %85 = vector.load %arg7[%c0_14, %c0_15] : memref<128x9xf32, #tpu.memory_space<vmem>>, vector<128x9xf32>
    %86 = arith.truncf %84 : vector<128x128xf32> to vector<128x128xbf16>
    %c0_16 = arith.constant 0 : index
    %c0_17 = arith.constant 0 : index
    %87 = vector.load %arg5[%c0_16, %c0_17] : memref<128x9xbf16, #tpu.memory_space<vmem>>, vector<128x9xbf16>
    %cst_18 = arith.constant dense<0.000000e+00> : vector<128x9xf32>
    %88 = tpu.matmul %86, %87, %cst_18 {dimension_numbers = #tpu.dot_dimension_numbers<[1], [0], [0], [1], [0, 0, 1, 1], [], []>} : vector<128x128xbf16>, vector<128x9xbf16>, vector<128x9xf32> -> vector<128x9xf32>
    %89 = arith.addf %85, %88 : vector<128x9xf32>
    %c0_19 = arith.constant 0 : index
    %c0_20 = arith.constant 0 : index
    %90 = vector.load %arg7[%c0_19, %c0_20] : memref<128x9xf32, #tpu.memory_space<vmem>>, vector<128x9xf32>
    tpu.vector_store %arg7[%c0_19, %c0_20], %89 {strides = array<i32>} : memref<128x9xf32, #tpu.memory_space<vmem>>, vector<128x9xf32>,
    %c0_i32_21 = arith.constant 0 : i32
    %91 = arith.cmpi eq, %arg1, %c0_i32_21 : i32
    %92 = arith.extui %91 : i1 to i32
    %c0_i32_22 = arith.constant 0 : i32
    %93 = arith.cmpi ne, %92, %c0_i32_22 : i32
    scf.if %93 {
      %c0_23 = arith.constant 0 : index
      %c0_24 = arith.constant 0 : index
      %94 = vector.load %arg7[%c0_23, %c0_24] : memref<128x9xf32, #tpu.memory_space<vmem>>, vector<128x9xf32>
      %95 = vector.extract_strided_slice %94 {offsets = [0, 0], sizes = [128, 8], strides = [1, 1]} : vector<128x9xf32> to vector<128x8xf32>
      %96 = vector.extract_strided_slice %94 {offsets = [0, 8], sizes = [128, 1], strides = [1, 1]} : vector<128x9xf32> to vector<128x1xf32>
      %cst_25 = arith.constant 9.99999997E-7 : f32
      %97 = vector.broadcast %cst_25 : f32 to vector<128x1xf32>
      %98 = arith.addf %96, %97 : vector<128x1xf32>
      %99 = tpu.reciprocal %98 {approx = true} : vector<128x1xf32> -> vector<128x1xf32>
      %100 = vector.broadcast %99 : vector<128x1xf32> to vector<128x8xf32>
      %101 = arith.mulf %95, %100 : vector<128x8xf32>
      %102 = arith.truncf %101 : vector<128x8xf32> to vector<128x8xbf16>
      %c0_26 = arith.constant 0 : index
      %c0_27 = arith.constant 0 : index
      %103 = vector.load %arg6[%c0_26, %c0_27] : memref<128x8xbf16, #tpu.memory_space<vmem>>, vector<128x8xbf16>
      tpu.vector_store %arg6[%c0_26, %c0_27], %102 {strides = array<i32>} : memref<128x8xbf16, #tpu.memory_space<vmem>>, vector<128x8xbf16>,
    } else {
    }
    return
  }
  func.func @transform_0(%arg0: i32, %arg1: i32, %arg2: memref<8xi32, #tpu.memory_space<smem>>) -> (i32, i32, i32) {
    %0 = arith.index_cast %arg0 : i32 to index
    %1 = memref.load %arg2[%0] : memref<8xi32, #tpu.memory_space<smem>>
    %c0_i32 = arith.constant 0 : i32
    %c0_i32_0 = arith.constant 0 : i32
    return %1, %c0_i32, %arg1 : i32, i32, i32
  }
  func.func @transform_1(%arg0: i32, %arg1: i32, %arg2: memref<8xi32, #tpu.memory_space<smem>>) -> (i32, i32, i32) {
    %0 = arith.index_cast %arg0 : i32 to index
    %1 = memref.load %arg2[%0] : memref<8xi32, #tpu.memory_space<smem>>
    %c0_i32 = arith.constant 0 : i32
    %c0_i32_0 = arith.constant 0 : i32
    return %1, %c0_i32, %arg1 : i32, i32, i32
  }
  func.func @transform_2(%arg0: i32, %arg1: i32, %arg2: memref<8xi32, #tpu.memory_space<smem>>) -> (i32, i32) {
    %c0_i32 = arith.constant 0 : i32
    %c0_i32_0 = arith.constant 0 : i32
    return %arg1, %c0_i32 : i32, i32
  }
  func.func @transform_3(%arg0: i32, %arg1: i32, %arg2: memref<8xi32, #tpu.memory_space<smem>>) -> (i32, i32) {
    %c0_i32 = arith.constant 0 : i32
    %c0_i32_0 = arith.constant 0 : i32
    return %arg0, %c0_i32 : i32, i32
  }
}

module attributes {stable_mosaic.version = 11 : i64} {
  func.func @_interp_kernel(%arg0: i32, %arg1: i32, %arg2: memref<8xi32, #tpu.memory_space<smem>>, %arg3: memref<1x128x8xi32, #tpu.memory_space<vmem>>, %arg4: memref<1x128x8xbf16, #tpu.memory_space<vmem>>, %arg5: memref<128x8xbf16, #tpu.memory_space<vmem>>, %arg6: memref<8x128x8xf32, #tpu.memory_space<vmem>>, %arg7: memref<8x128x8xf32, #tpu.memory_space<vmem>>) attributes {dimension_semantics = [#tpu.dimension_semantics<parallel>, #tpu.dimension_semantics<arbitrary>], iteration_bounds = array<i64: 1, 8>, scalar_prefetch = 1 : i64, scratch_operands = 1 : i64, tpu.core_type = #tpu.core_type<tc>, window_params = [{transform_indices = @transform_0, window_bounds = array<i64: 1, 128, 8>}, {transform_indices = @transform_1, window_bounds = array<i64: 1, 128, 8>}, {transform_indices = @transform_2, window_bounds = array<i64: 128, 8>}, {transform_indices = @transform_3, window_bounds = array<i64: 8, 128, 8>}]} {
    %c0_i32 = arith.constant 0 : i32
    %0 = arith.cmpi eq, %arg1, %c0_i32 : i32
    %1 = arith.extui %0 : i1 to i32
    %c0_i32_0 = arith.constant 0 : i32
    %2 = arith.cmpi ne, %1, %c0_i32_0 : i32
    scf.if %2 {
      %cst_22 = arith.constant 0.000000e+00 : f32
      %101 = vector.broadcast %cst_22 : f32 to vector<8x128x8xf32>
      %c0_23 = arith.constant 0 : index
      %c0_24 = arith.constant 0 : index
      %c0_25 = arith.constant 0 : index
      %102 = vector.load %arg7[%c0_23, %c0_24, %c0_25] : memref<8x128x8xf32, #tpu.memory_space<vmem>>, vector<8x128x8xf32>
      tpu.vector_store %arg7[%c0_23, %c0_24, %c0_25], %101 {strides = array<i32>} : memref<8x128x8xf32, #tpu.memory_space<vmem>>, vector<8x128x8xf32>,
    } else {
    }
    %c128_i32 = arith.constant 128 : i32
    %3 = arith.muli %arg1, %c128_i32 : i32
    %4 = tpu.iota {dimensions = array<i32: 1>} : vector<128x128xi32>
    %5 = vector.broadcast %3 : i32 to vector<128x128xi32>
    %6 = arith.addi %5, %4 : vector<128x128xi32>
    %c0 = arith.constant 0 : index
    %c0_1 = arith.constant 0 : index
    %c0_2 = arith.constant 0 : index
    %7 = vector.load %arg3[%c0, %c0_1, %c0_2] : memref<1x128x8xi32, #tpu.memory_space<vmem>>, vector<1x128x8xi32>
    %8 = vector.shape_cast %7 : vector<1x128x8xi32> to vector<128x8xi32>
    %c0_3 = arith.constant 0 : index
    %c0_4 = arith.constant 0 : index
    %c0_5 = arith.constant 0 : index
    %9 = vector.load %arg4[%c0_3, %c0_4, %c0_5] : memref<1x128x8xbf16, #tpu.memory_space<vmem>>, vector<1x128x8xbf16>
    %10 = vector.shape_cast %9 : vector<1x128x8xbf16> to vector<128x8xbf16>
    %11 = arith.extf %10 : vector<128x8xbf16> to vector<128x8xf32>
    %cst = arith.constant 0.000000e+00 : f32
    %12 = vector.broadcast %cst : f32 to vector<128x128xf32>
    %13 = vector.extract_strided_slice %8 {offsets = [0, 0], sizes = [128, 1], strides = [1, 1]} : vector<128x8xi32> to vector<128x1xi32>
    %14 = vector.broadcast %13 : vector<128x1xi32> to vector<128x128xi32>
    %15 = arith.cmpi eq, %14, %6 : vector<128x128xi32>
    %16 = vector.extract_strided_slice %11 {offsets = [0, 0], sizes = [128, 1], strides = [1, 1]} : vector<128x8xf32> to vector<128x1xf32>
    %cst_6 = arith.constant 0.000000e+00 : f32
    %17 = vector.shape_cast %16 : vector<128x1xf32> to vector<128x1xf32>
    %18 = vector.broadcast %17 : vector<128x1xf32> to vector<128x128xf32>
    %19 = vector.broadcast %cst_6 : f32 to vector<128x128xf32>
    %20 = arith.select %15, %18, %19 : vector<128x128xi1>, vector<128x128xf32>
    %21 = arith.addf %12, %20 : vector<128x128xf32>
    %22 = vector.extract_strided_slice %8 {offsets = [0, 1], sizes = [128, 1], strides = [1, 1]} : vector<128x8xi32> to vector<128x1xi32>
    %23 = vector.broadcast %22 : vector<128x1xi32> to vector<128x128xi32>
    %24 = arith.cmpi eq, %23, %6 : vector<128x128xi32>
    %25 = vector.extract_strided_slice %11 {offsets = [0, 1], sizes = [128, 1], strides = [1, 1]} : vector<128x8xf32> to vector<128x1xf32>
    %cst_7 = arith.constant 0.000000e+00 : f32
    %26 = vector.shape_cast %25 : vector<128x1xf32> to vector<128x1xf32>
    %27 = vector.broadcast %26 : vector<128x1xf32> to vector<128x128xf32>
    %28 = vector.broadcast %cst_7 : f32 to vector<128x128xf32>
    %29 = arith.select %24, %27, %28 : vector<128x128xi1>, vector<128x128xf32>
    %30 = arith.addf %21, %29 : vector<128x128xf32>
    %31 = vector.extract_strided_slice %8 {offsets = [0, 2], sizes = [128, 1], strides = [1, 1]} : vector<128x8xi32> to vector<128x1xi32>
    %32 = vector.broadcast %31 : vector<128x1xi32> to vector<128x128xi32>
    %33 = arith.cmpi eq, %32, %6 : vector<128x128xi32>
    %34 = vector.extract_strided_slice %11 {offsets = [0, 2], sizes = [128, 1], strides = [1, 1]} : vector<128x8xf32> to vector<128x1xf32>
    %cst_8 = arith.constant 0.000000e+00 : f32
    %35 = vector.shape_cast %34 : vector<128x1xf32> to vector<128x1xf32>
    %36 = vector.broadcast %35 : vector<128x1xf32> to vector<128x128xf32>
    %37 = vector.broadcast %cst_8 : f32 to vector<128x128xf32>
    %38 = arith.select %33, %36, %37 : vector<128x128xi1>, vector<128x128xf32>
    %39 = arith.addf %30, %38 : vector<128x128xf32>
    %40 = vector.extract_strided_slice %8 {offsets = [0, 3], sizes = [128, 1], strides = [1, 1]} : vector<128x8xi32> to vector<128x1xi32>
    %41 = vector.broadcast %40 : vector<128x1xi32> to vector<128x128xi32>
    %42 = arith.cmpi eq, %41, %6 : vector<128x128xi32>
    %43 = vector.extract_strided_slice %11 {offsets = [0, 3], sizes = [128, 1], strides = [1, 1]} : vector<128x8xf32> to vector<128x1xf32>
    %cst_9 = arith.constant 0.000000e+00 : f32
    %44 = vector.shape_cast %43 : vector<128x1xf32> to vector<128x1xf32>
    %45 = vector.broadcast %44 : vector<128x1xf32> to vector<128x128xf32>
    %46 = vector.broadcast %cst_9 : f32 to vector<128x128xf32>
    %47 = arith.select %42, %45, %46 : vector<128x128xi1>, vector<128x128xf32>
    %48 = arith.addf %39, %47 : vector<128x128xf32>
    %49 = vector.extract_strided_slice %8 {offsets = [0, 4], sizes = [128, 1], strides = [1, 1]} : vector<128x8xi32> to vector<128x1xi32>
    %50 = vector.broadcast %49 : vector<128x1xi32> to vector<128x128xi32>
    %51 = arith.cmpi eq, %50, %6 : vector<128x128xi32>
    %52 = vector.extract_strided_slice %11 {offsets = [0, 4], sizes = [128, 1], strides = [1, 1]} : vector<128x8xf32> to vector<128x1xf32>
    %cst_10 = arith.constant 0.000000e+00 : f32
    %53 = vector.shape_cast %52 : vector<128x1xf32> to vector<128x1xf32>
    %54 = vector.broadcast %53 : vector<128x1xf32> to vector<128x128xf32>
    %55 = vector.broadcast %cst_10 : f32 to vector<128x128xf32>
    %56 = arith.select %51, %54, %55 : vector<128x128xi1>, vector<128x128xf32>
    %57 = arith.addf %48, %56 : vector<128x128xf32>
    %58 = vector.extract_strided_slice %8 {offsets = [0, 5], sizes = [128, 1], strides = [1, 1]} : vector<128x8xi32> to vector<128x1xi32>
    %59 = vector.broadcast %58 : vector<128x1xi32> to vector<128x128xi32>
    %60 = arith.cmpi eq, %59, %6 : vector<128x128xi32>
    %61 = vector.extract_strided_slice %11 {offsets = [0, 5], sizes = [128, 1], strides = [1, 1]} : vector<128x8xf32> to vector<128x1xf32>
    %cst_11 = arith.constant 0.000000e+00 : f32
    %62 = vector.shape_cast %61 : vector<128x1xf32> to vector<128x1xf32>
    %63 = vector.broadcast %62 : vector<128x1xf32> to vector<128x128xf32>
    %64 = vector.broadcast %cst_11 : f32 to vector<128x128xf32>
    %65 = arith.select %60, %63, %64 : vector<128x128xi1>, vector<128x128xf32>
    %66 = arith.addf %57, %65 : vector<128x128xf32>
    %67 = vector.extract_strided_slice %8 {offsets = [0, 6], sizes = [128, 1], strides = [1, 1]} : vector<128x8xi32> to vector<128x1xi32>
    %68 = vector.broadcast %67 : vector<128x1xi32> to vector<128x128xi32>
    %69 = arith.cmpi eq, %68, %6 : vector<128x128xi32>
    %70 = vector.extract_strided_slice %11 {offsets = [0, 6], sizes = [128, 1], strides = [1, 1]} : vector<128x8xf32> to vector<128x1xf32>
    %cst_12 = arith.constant 0.000000e+00 : f32
    %71 = vector.shape_cast %70 : vector<128x1xf32> to vector<128x1xf32>
    %72 = vector.broadcast %71 : vector<128x1xf32> to vector<128x128xf32>
    %73 = vector.broadcast %cst_12 : f32 to vector<128x128xf32>
    %74 = arith.select %69, %72, %73 : vector<128x128xi1>, vector<128x128xf32>
    %75 = arith.addf %66, %74 : vector<128x128xf32>
    %76 = vector.extract_strided_slice %8 {offsets = [0, 7], sizes = [128, 1], strides = [1, 1]} : vector<128x8xi32> to vector<128x1xi32>
    %77 = vector.broadcast %76 : vector<128x1xi32> to vector<128x128xi32>
    %78 = arith.cmpi eq, %77, %6 : vector<128x128xi32>
    %79 = vector.extract_strided_slice %11 {offsets = [0, 7], sizes = [128, 1], strides = [1, 1]} : vector<128x8xf32> to vector<128x1xf32>
    %cst_13 = arith.constant 0.000000e+00 : f32
    %80 = vector.shape_cast %79 : vector<128x1xf32> to vector<128x1xf32>
    %81 = vector.broadcast %80 : vector<128x1xf32> to vector<128x128xf32>
    %82 = vector.broadcast %cst_13 : f32 to vector<128x128xf32>
    %83 = arith.select %78, %81, %82 : vector<128x128xi1>, vector<128x128xf32>
    %84 = arith.addf %75, %83 : vector<128x128xf32>
    %85 = arith.truncf %84 : vector<128x128xf32> to vector<128x128xbf16>
    %c0_14 = arith.constant 0 : index
    %c0_15 = arith.constant 0 : index
    %86 = vector.load %arg5[%c0_14, %c0_15] : memref<128x8xbf16, #tpu.memory_space<vmem>>, vector<128x8xbf16>
    %cst_16 = arith.constant dense<0.000000e+00> : vector<128x8xf32>
    %87 = tpu.matmul %85, %86, %cst_16 {dimension_numbers = #tpu.dot_dimension_numbers<[1], [0], [0], [1], [0, 0, 1, 1], [], []>} : vector<128x128xbf16>, vector<128x8xbf16>, vector<128x8xf32> -> vector<128x8xf32>
    %88 = arith.index_cast %arg1 : i32 to index
    %89 = memref.load %arg2[%88] : memref<8xi32, #tpu.memory_space<smem>>
    %90 = arith.index_cast %89 : i32 to index
    %c0_17 = arith.constant 0 : index
    %c0_18 = arith.constant 0 : index
    %91 = vector.load %arg7[%90, %c0_17, %c0_18] : memref<8x128x8xf32, #tpu.memory_space<vmem>>, vector<1x128x8xf32>
    %92 = vector.shape_cast %91 : vector<1x128x8xf32> to vector<128x8xf32>
    %93 = arith.addf %92, %87 : vector<128x8xf32>
    %94 = arith.index_cast %89 : i32 to index
    %c0_19 = arith.constant 0 : index
    %c0_20 = arith.constant 0 : index
    %95 = vector.load %arg7[%94, %c0_19, %c0_20] : memref<8x128x8xf32, #tpu.memory_space<vmem>>, vector<1x128x8xf32>
    %96 = vector.shape_cast %95 : vector<1x128x8xf32> to vector<128x8xf32>
    %97 = vector.shape_cast %93 : vector<128x8xf32> to vector<1x128x8xf32>
    tpu.vector_store %arg7[%94, %c0_19, %c0_20], %97 {strides = array<i32>} : memref<8x128x8xf32, #tpu.memory_space<vmem>>, vector<1x128x8xf32>,
    %c7_i32 = arith.constant 7 : i32
    %98 = arith.cmpi eq, %arg1, %c7_i32 : i32
    %99 = arith.extui %98 : i1 to i32
    %c0_i32_21 = arith.constant 0 : i32
    %100 = arith.cmpi ne, %99, %c0_i32_21 : i32
    scf.if %100 {
      %c0_22 = arith.constant 0 : index
      %c0_23 = arith.constant 0 : index
      %c0_24 = arith.constant 0 : index
      %101 = vector.load %arg7[%c0_22, %c0_23, %c0_24] : memref<8x128x8xf32, #tpu.memory_space<vmem>>, vector<8x128x8xf32>
      %c0_25 = arith.constant 0 : index
      %c0_26 = arith.constant 0 : index
      %c0_27 = arith.constant 0 : index
      %102 = vector.load %arg6[%c0_25, %c0_26, %c0_27] : memref<8x128x8xf32, #tpu.memory_space<vmem>>, vector<8x128x8xf32>
      tpu.vector_store %arg6[%c0_25, %c0_26, %c0_27], %101 {strides = array<i32>} : memref<8x128x8xf32, #tpu.memory_space<vmem>>, vector<8x128x8xf32>,
    } else {
    }
    return
  }
  func.func @transform_0(%arg0: i32, %arg1: i32, %arg2: memref<8xi32, #tpu.memory_space<smem>>) -> (i32, i32, i32) {
    %0 = arith.index_cast %arg1 : i32 to index
    %1 = memref.load %arg2[%0] : memref<8xi32, #tpu.memory_space<smem>>
    %c0_i32 = arith.constant 0 : i32
    %c0_i32_0 = arith.constant 0 : i32
    return %1, %arg0, %c0_i32 : i32, i32, i32
  }
  func.func @transform_1(%arg0: i32, %arg1: i32, %arg2: memref<8xi32, #tpu.memory_space<smem>>) -> (i32, i32, i32) {
    %0 = arith.index_cast %arg1 : i32 to index
    %1 = memref.load %arg2[%0] : memref<8xi32, #tpu.memory_space<smem>>
    %c0_i32 = arith.constant 0 : i32
    %c0_i32_0 = arith.constant 0 : i32
    return %1, %arg0, %c0_i32 : i32, i32, i32
  }
  func.func @transform_2(%arg0: i32, %arg1: i32, %arg2: memref<8xi32, #tpu.memory_space<smem>>) -> (i32, i32) {
    %c0_i32 = arith.constant 0 : i32
    %c0_i32_0 = arith.constant 0 : i32
    return %arg1, %c0_i32 : i32, i32
  }
  func.func @transform_3(%arg0: i32, %arg1: i32, %arg2: memref<8xi32, #tpu.memory_space<smem>>) -> (i32, i32, i32) {
    %c0_i32 = arith.constant 0 : i32
    %c0_i32_0 = arith.constant 0 : i32
    %c0_i32_1 = arith.constant 0 : i32
    return %c0_i32, %arg0, %c0_i32_0 : i32, i32, i32
  }
}

</mosaic_0001>

<llo_original>
// kernel: _lambda_.2
$region0: #{_lambda_.2}
  #allocation0 [shape = 'u32[]', space=smem, size = 0x4, offset = 0x4, fixed_abs, tag = 'smem constant byte address 0x4 - core index']
  #allocation1 [shape = 'u32[72,128]{1,0:T(1,128)}', space=vmem, size = 0x9000, scoped, tag = 'internal scratch']
  #allocation2 [shape = 'f32[128,9]{1,0:T(8,128)}', space=vmem, size = 0x10000, scoped, tag = 'scratch operand']
  #allocation3 [shape = 's32[1]{0}', space=sflag, size = 0x4, scoped, tag = 'scoped memory for _lambda_.2']
  #allocation4 [shape = 'u8[512]{0}', space=smem, size = 0x200, scoped, tag = 'prefetched SMEM operand 0']
  %s0 = inlined_call_operand.vmem [shape: s32[8], index: 0, kind: input, shape index: {}]
  %s1 = inlined_call_operand.vmem [shape: s32[8,8,128], index: 1, kind: input, shape index: {}]
  %s2 = inlined_call_operand.vmem [shape: bf16[8,8,128], index: 2, kind: input, shape index: {}]
  %s3 = inlined_call_operand.vmem [shape: bf16[128,9], index: 3, kind: input, shape index: {}]
  %s4 = inlined_call_operand.vmem [shape: bf16[1024,8], index: 4, kind: output, shape index: {}]
  %s5 = sld [smem:[#allocation0]]
  $region53: #{_lambda_.2} parent=0
    _
  %s7 = ssub.s32 1, %s5
  %s8 = scalar_select 0, %s7, %s5
  %s10 = sshll.u32 %s0, 4
  %s11 = int_to_ptr.vmem [resolvable:$true] %s10
  %13 = dma.vmem_to_smem %s11, 16, [#allocation4], [#allocation3]
  %15 = dma.done [#allocation3], 16
  %16 = sfence
  loop: start=0, step=1, limit=10
  $region2: #{_lambda_.2} parent=0 // loop_pre_header
    _
  $region3: #{_lambda_.2} parent=0 // loop_header
    %s18 = sphi 0, %s22
    %p19 = scmp.ge.s32.totalorder %s18, 10
    %s25 = sphi 0, %s37
    %s26 = sphi 0, %s33
    %s27 = sphi 0, %s25
    %s28 = sphi 0, %s26
    %s29 = sphi 0, %s27
    %s30 = sphi 0, %s28
    %s44 = sphi 0, %s46
    %s47 = sphi 0, %s44
    %s48 = sphi 0, %s47
    %s64 = sphi 0, %s48
    %s74 = sphi 0, %s76
    %s77 = sphi 0, %s74
    %s78 = sphi 0, %s77
    %s94 = sphi 0, %s78
    %s100 = sphi 0, %s102
    %s103 = sphi 0, %s100
    %s104 = sphi 0, %s103
    %s120 = sphi 0, %s104
    %s126 = sphi 0, %s128
    %s129 = sphi 0, %s126
    %s130 = sphi 0, %s129
    %s146 = sphi 0, %s130
  $region4: #{_lambda_.2} parent=0 // loop_header_branch
    %21 = sbr.rel (%p19) target = $region8
  $region5: #{_lambda_.2} parent=0 // loop_body
    %s23 = ssub.s32 %s18, 1
    %s24 = ssub.s32 %s18, 2
    %s31 = sadd.s32 1, %s26
    %p32 = scmp.ge.s32.totalorder %s31, 1
    %s33 = scalar_select %p32, 0, %s31
    %s34 = sadd.s32 1, %s25
    %s35 = scalar_select %p32, %s34, %s25
    %p36 = scmp.ge.s32.totalorder %s35, 8
    %s37 = scalar_select %p36, 0, %s35
    %s38 = sld [smem:[#allocation4 + %s25]]
    %s39 = sld [smem:[#allocation4 + %s37]]
    %s40 = ssub.s32 %s38, %s39
    %s41 = ssub.s32 %s26, %s33
    %s42 = sor.u32 %s40, %s41
    %p43 = scmp.eq.s32.totalorder %s42, 0
    %s45 = sadd.s32 %s44, 1
    %s46 = scalar_select %p43, %s44, %s45
    %p49 = pneg %p43
    %p50 = scmp.eq.s32.totalorder %s18, 7
    %p51 = por %p49, %p50
    %p52 = scmp.ne.s32.totalorder %s44, %s47
    %p53 = scmp.eq.s32.totalorder %s18, 0
    %p54 = por %p52, %p53
    %p55 = scmp.ne.s32.totalorder %s44, %s47
    %p56 = scmp.eq.s32.totalorder %s23, 7
    %p57 = por %p55, %p56
    %p58 = scmp.ne.s32.totalorder %s47, %s48
    %p59 = scmp.eq.s32.totalorder %s23, 0
    %p60 = por %p58, %p59
    %p61 = scmp.ne.s32.totalorder %s47, %s48
    %p62 = scmp.eq.s32.totalorder %s24, 7
    %p63 = por %p61, %p62
    %p65 = scmp.ne.s32.totalorder %s48, %s64
    %p66 = scmp.eq.s32.totalorder %s24, 0
    %p67 = por %p65, %p66
    %s68 = sld [smem:[#allocation4 + %s25]]
    %s69 = sld [smem:[#allocation4 + %s37]]
    %s70 = ssub.s32 %s68, %s69
    %s71 = ssub.s32 %s26, %s33
    %s72 = sor.u32 %s70, %s71
    %p73 = scmp.eq.s32.totalorder %s72, 0
    %s75 = sadd.s32 %s74, 1
    %s76 = scalar_select %p73, %s74, %s75
    %p79 = pneg %p73
    %p80 = scmp.eq.s32.totalorder %s18, 7
    %p81 = por %p79, %p80
    %p82 = scmp.ne.s32.totalorder %s74, %s77
    %p83 = scmp.eq.s32.totalorder %s18, 0
    %p84 = por %p82, %p83
    %p85 = scmp.ne.s32.totalorder %s74, %s77
    %p86 = scmp.eq.s32.totalorder %s23, 7
    %p87 = por %p85, %p86
    %p88 = scmp.ne.s32.totalorder %s77, %s78
    %p89 = scmp.eq.s32.totalorder %s23, 0
    %p90 = por %p88, %p89
    %p91 = scmp.ne.s32.totalorder %s77, %s78
    %p92 = scmp.eq.s32.totalorder %s24, 7
    %p93 = por %p91, %p92
    %p95 = scmp.ne.s32.totalorder %s78, %s94
    %p96 = scmp.eq.s32.totalorder %s24, 0
    %p97 = por %p95, %p96
    %s98 = ssub.s32 %s26, %s33
    %p99 = scmp.eq.s32.totalorder %s98, 0
    %s101 = sadd.s32 %s100, 1
    %s102 = scalar_select %p99, %s100, %s101
    %p105 = pneg %p99
    %p106 = scmp.eq.s32.totalorder %s18, 7
    %p107 = por %p105, %p106
    %p108 = scmp.ne.s32.totalorder %s100, %s103
    %p109 = scmp.eq.s32.totalorder %s18, 0
    %p110 = por %p108, %p109
    %p111 = scmp.ne.s32.totalorder %s100, %s103
    %p112 = scmp.eq.s32.totalorder %s23, 7
    %p113 = por %p111, %p112
    %p114 = scmp.ne.s32.totalorder %s103, %s104
    %p115 = scmp.eq.s32.totalorder %s23, 0
    %p116 = por %p114, %p115
    %p117 = scmp.ne.s32.totalorder %s103, %s104
    %p118 = scmp.eq.s32.totalorder %s24, 7
    %p119 = por %p117, %p118
    %p121 = scmp.ne.s32.totalorder %s104, %s120
    %p122 = scmp.eq.s32.totalorder %s24, 0
    %p123 = por %p121, %p122
    %s124 = ssub.s32 %s25, %s37
    %p125 = scmp.eq.s32.totalorder %s124, 0
    %s127 = sadd.s32 %s126, 1
    %s128 = scalar_select %p125, %s126, %s127
    %p131 = pneg %p125
    %p132 = scmp.eq.s32.totalorder %s18, 7
    %p133 = por %p131, %p132
    %p134 = scmp.ne.s32.totalorder %s126, %s129
    %p135 = scmp.eq.s32.totalorder %s18, 0
    %p136 = por %p134, %p135
    %p137 = scmp.ne.s32.totalorder %s126, %s129
    %p138 = scmp.eq.s32.totalorder %s23, 7
    %p139 = por %p137, %p138
    %p140 = scmp.ne.s32.totalorder %s129, %s130
    %p141 = scmp.eq.s32.totalorder %s23, 0
    %p142 = por %p140, %p141
    %p143 = scmp.ne.s32.totalorder %s129, %s130
    %p144 = scmp.eq.s32.totalorder %s24, 7
    %p145 = por %p143, %p144
    %p147 = scmp.ne.s32.totalorder %s130, %s146
    %p148 = scmp.eq.s32.totalorder %s24, 0
    %p149 = por %p147, %p148
    %p150 = scmp.le.s32.totalorder 1, %s18
    %p151 = scmp.lt.s32.totalorder %s18, 9
    %p152 = pnand %p150, %p151
    %p153 = pneg %p152
    // Predicated region
    $region9: #{_lambda_.2} parent=5 // pred_check
      _
    $region10: #{_lambda_.2} parent=5 // pred_check_branch
      %155 = sbr.rel (%p152) target = $region12
    $region11: #{_lambda_.2} parent=5 // pred_region
      %s156 = ssub.s32 %s18, 1
      // Predicated region
      $region13: #{_lambda_.2} parent=11 // pred_check
        %p157 = pneg %p116
      $region14: #{_lambda_.2} parent=11 // pred_check_branch
        %159 = sbr.rel (%p157) target = $region16
      $region15: #{_lambda_.2} parent=11 // pred_region
        %s160 = smul.u32 16, %s28
        %p161 = scmp.lt.s32.totalorder %s160, 15
        %s162 = scalar_select %p161, %s160, 15
        %s163 = smul.addr %s162, 4
        %s164 = scalar_lea.vmem %s3, %s163
        %s165 = smul.u32 16, %s28
      $region16: #{_lambda_.2} parent=11 // pred_fallthru
        _
    $region12: #{_lambda_.2} parent=5 // pred_fallthru
      _
    %p166 = scmp.lt.s32.totalorder %s18, 8
    // Predicated region
    $region17: #{_lambda_.2} parent=5 // pred_check
      %p167 = pneg %p166
    $region18: #{_lambda_.2} parent=5 // pred_check_branch
      %169 = sbr.rel (%p167) target = $region20
    $region19: #{_lambda_.2} parent=5 // pred_region
      // Predicated region
      $region21: #{_lambda_.2} parent=19 // pred_check
        %p170 = pneg %p54
      $region22: #{_lambda_.2} parent=19 // pred_check_branch
        %172 = sbr.rel (%p170) target = $region24
      $region23: #{_lambda_.2} parent=19 // pred_region
        %s173 = sld [smem:[#allocation4 + %s25]]
        %p174 = scmp.lt.s32.totalorder %s173, 7
        %s175 = scalar_select %p174, %s173, 7
        %p176 = scmp.lt.s32.totalorder %s26, 0
        %s177 = scalar_select %p176, %s26, 0
        %s178 = sadd.s32 %s177, %s175
        %s179 = smul.addr %s178, 8
        %s180 = scalar_lea.vmem %s1, %s179
        %s181 = sld [smem:[#allocation4 + %s25]]
      $region24: #{_lambda_.2} parent=19 // pred_fallthru
        _
      // Predicated region
      $region25: #{_lambda_.2} parent=19 // pred_check
        %p182 = pneg %p84
      $region26: #{_lambda_.2} parent=19 // pred_check_branch
        %184 = sbr.rel (%p182) target = $region28
      $region27: #{_lambda_.2} parent=19 // pred_region
        %s185 = sld [smem:[#allocation4 + %s25]]
        %p186 = scmp.lt.s32.totalorder %s185, 7
        %s187 = scalar_select %p186, %s185, 7
        %p188 = scmp.lt.s32.totalorder %s26, 0
        %s189 = scalar_select %p188, %s26, 0
        %s190 = sadd.s32 %s189, %s187
        %s191 = smul.addr %s190, 4
        %s192 = scalar_lea.vmem %s2, %s191
        %s193 = sld [smem:[#allocation4 + %s25]]
      $region28: #{_lambda_.2} parent=19 // pred_fallthru
        _
    $region20: #{_lambda_.2} parent=5 // pred_fallthru
      _
    %p194 = scmp.le.s32.totalorder 1, %s18
    %p195 = scmp.lt.s32.totalorder %s18, 9
    %p196 = pnand %p194, %p195
    %p197 = pneg %p196
    // Predicated region
    $region29: #{_lambda_.2} parent=5 // pred_check
      _
    $region30: #{_lambda_.2} parent=5 // pred_check_branch
      %199 = sbr.rel (%p196) target = $region32
    $region31: #{_lambda_.2} parent=5 // pred_region
      %s200 = ssub.s32 %s18, 1
      %s201 = sld [smem:[#allocation4 + %s27]]
      %p202 = scmp.lt.s32.totalorder %s201, 7
      %s203 = scalar_select %p202, %s201, 7
      %p204 = scmp.lt.s32.totalorder %s28, 0
      %s205 = scalar_select %p204, %s28, 0
      %s206 = sadd.s32 %s205, %s203
      %s207 = smul.addr %s206, 8
      %s208 = scalar_lea.vmem %s1, %s207
      %p209 = pneg %p60
      %p210 = pneg %p57
      %s211 = sld [smem:[#allocation4 + %s27]]
      %p212 = scmp.lt.s32.totalorder %s211, 7
      %s213 = scalar_select %p212, %s211, 7
      %p214 = scmp.lt.s32.totalorder %s28, 0
      %s215 = scalar_select %p214, %s28, 0
      %s216 = sadd.s32 %s215, %s213
      %s217 = smul.addr %s216, 4
      %s218 = scalar_lea.vmem %s2, %s217
      %p219 = pneg %p90
      %p220 = pneg %p87
      %s221 = smul.u32 16, %s28
      %p222 = scmp.lt.s32.totalorder %s221, 15
      %s223 = scalar_select %p222, %s221, 15
      %s224 = smul.addr %s223, 4
      %s225 = scalar_lea.vmem %s3, %s224
      %p226 = pneg %p116
      %p227 = pneg %p113
      %p228 = pneg %p142
      %p229 = pneg %p139
      %s230 = smul.u32 16, %s27
      %p231 = scmp.lt.s32.totalorder %s230, 127
      %s232 = scalar_select %p231, %s230, 127
      %s233 = smul.addr %s232, 4
      %s234 = scalar_lea.vmem %s4, %s233
      %s235 = sld [smem:[#allocation4 + %s27]]
      %p236 = scmp.lt.s32.totalorder %s235, 7
      %s237 = scalar_select %p236, %s235, 7
      %p238 = scmp.lt.s32.totalorder %s28, 0
      %s239 = scalar_select %p238, %s28, 0
      %s240 = sadd.s32 %s239, %s237
      %s241 = smul.addr %s240, 8
      %s242 = scalar_lea.vmem %s1, %s241
      %s243 = sld [smem:[#allocation4 + %s27]]
      %s244 = sld [smem:[#allocation4 + %s27]]
      %p245 = scmp.lt.s32.totalorder %s244, 7
      %s246 = scalar_select %p245, %s244, 7
      %p247 = scmp.lt.s32.totalorder %s28, 0
      %s248 = scalar_select %p247, %s28, 0
      %s249 = sadd.s32 %s248, %s246
      %s250 = smul.addr %s249, 4
      %s251 = scalar_lea.vmem %s2, %s250
      %s252 = sld [smem:[#allocation4 + %s27]]
      %s253 = smul.u32 16, %s28
      %p254 = scmp.lt.s32.totalorder %s253, 15
      %s255 = scalar_select %p254, %s253, 15
      %s256 = smul.addr %s255, 4
      %s257 = scalar_lea.vmem %s3, %s256
      %s258 = smul.u32 16, %s28
      %s259 = smul.u32 16, %s27
      %p260 = scmp.lt.s32.totalorder %s259, 127
      %s261 = scalar_select %p260, %s259, 127
      %s262 = smul.addr %s261, 4
      %s263 = scalar_lea.vmem %s4, %s262
      %s264 = smul.u32 16, %s27
      %p265 = scmp.eq.s32.totalorder %s28, 0
      // Predicated region
      $region33: #{_lambda_.2} parent=31 // pred_check
        %p266 = pneg %p265
      $region34: #{_lambda_.2} parent=31 // pred_check_branch
        %268 = sbr.rel (%p266) target = $region36
      $region35: #{_lambda_.2} parent=31 // pred_region
        %vm269 = vcmask 72704
        %270 = vst.msk [vmem:[#allocation2] sm:$0xff] %vm269, 0.0
        %271 = vst.msk [vmem:[#allocation2 + $0x8] sm:$0xff] %vm269, 0.0
        %272 = vst.msk [vmem:[#allocation2 + $0x10] sm:$0xff] %vm269, 0.0
        %273 = vst.msk [vmem:[#allocation2 + $0x18] sm:$0xff] %vm269, 0.0
        %274 = vst.msk [vmem:[#allocation2 + $0x20] sm:$0xff] %vm269, 0.0
        %275 = vst.msk [vmem:[#allocation2 + $0x28] sm:$0xff] %vm269, 0.0
        %276 = vst.msk [vmem:[#allocation2 + $0x30] sm:$0xff] %vm269, 0.0
        %277 = vst.msk [vmem:[#allocation2 + $0x38] sm:$0xff] %vm269, 0.0
        %278 = vst.msk [vmem:[#allocation2 + $0x40] sm:$0xff] %vm269, 0.0
        %279 = vst.msk [vmem:[#allocation2 + $0x48] sm:$0xff] %vm269, 0.0
        %280 = vst.msk [vmem:[#allocation2 + $0x50] sm:$0xff] %vm269, 0.0
        %281 = vst.msk [vmem:[#allocation2 + $0x58] sm:$0xff] %vm269, 0.0
        %282 = vst.msk [vmem:[#allocation2 + $0x60] sm:$0xff] %vm269, 0.0
        %283 = vst.msk [vmem:[#allocation2 + $0x68] sm:$0xff] %vm269, 0.0
        %284 = vst.msk [vmem:[#allocation2 + $0x70] sm:$0xff] %vm269, 0.0
        %285 = vst.msk [vmem:[#allocation2 + $0x78] sm:$0xff] %vm269, 0.0
      $region36: #{_lambda_.2} parent=31 // pred_fallthru
        _
      %s286 = smul.u32 %s27, 128
      %v287 = vlaneseq
      %v288 = vshrl.u32 %v287, 7
      %v289 = vadd.s32 %v288, 8
      %v290 = vadd.s32 %v288, 16
      %v291 = vadd.s32 %v288, 24
      %v292 = vadd.s32 %v288, 32
      %v293 = vadd.s32 %v288, 40
      %v294 = vadd.s32 %v288, 48
      %v295 = vadd.s32 %v288, 56
      %v296 = vadd.s32 %v288, 64
      %v297 = vadd.s32 %v288, 72
      %v298 = vadd.s32 %v288, 80
      %v299 = vadd.s32 %v288, 88
      %v300 = vadd.s32 %v288, 96
      %v301 = vadd.s32 %v288, 104
      %v302 = vadd.s32 %v288, 112
      %v303 = vadd.s32 %v288, 120
      %v304 = vstv %s286
      %v305 = vadd.s32 %v304, %v288
      %v306 = vadd.s32 %v304, %v289
      %v307 = vadd.s32 %v304, %v290
      %v308 = vadd.s32 %v304, %v291
      %v309 = vadd.s32 %v304, %v292
      %v310 = vadd.s32 %v304, %v293
      %v311 = vadd.s32 %v304, %v294
      %v312 = vadd.s32 %v304, %v295
      %v313 = vadd.s32 %v304, %v296
      %v314 = vadd.s32 %v304, %v297
      %v315 = vadd.s32 %v304, %v298
      %v316 = vadd.s32 %v304, %v299
      %v317 = vadd.s32 %v304, %v300
      %v318 = vadd.s32 %v304, %v301
      %v319 = vadd.s32 %v304, %v302
      %v320 = vadd.s32 %v304, %v303
      %v321 = vld [vmem:[%s242] sm:$0xff]
      %v322 = vld [vmem:[%s251] sm:$0xf]
      %v323 = vunpack.c.l.bf16 %v322
      %v324 = vperm.slane %v321, 0
      %vm325 = vcmp.eq.s32.totalorder %v324, %v305
      %vm326 = vcmp.eq.s32.totalorder %v324, %v306
      %vm327 = vcmp.eq.s32.totalorder %v324, %v307
      %vm328 = vcmp.eq.s32.totalorder %v324, %v308
      %vm329 = vcmp.eq.s32.totalorder %v324, %v309
      %vm330 = vcmp.eq.s32.totalorder %v324, %v310
      %vm331 = vcmp.eq.s32.totalorder %v324, %v311
      %vm332 = vcmp.eq.s32.totalorder %v324, %v312
      %vm333 = vcmp.eq.s32.totalorder %v324, %v313
      %vm334 = vcmp.eq.s32.totalorder %v324, %v314
      %vm335 = vcmp.eq.s32.totalorder %v324, %v315
      %vm336 = vcmp.eq.s32.totalorder %v324, %v316
      %vm337 = vcmp.eq.s32.totalorder %v324, %v317
      %vm338 = vcmp.eq.s32.totalorder %v324, %v318
      %vm339 = vcmp.eq.s32.totalorder %v324, %v319
      %vm340 = vcmp.eq.s32.totalorder %v324, %v320
      %v341 = vperm.slane %v323, 0
      %v342 = vsel %vm325, %v341, 0.0
      %v343 = vsel %vm326, %v341, 0.0
      %v344 = vsel %vm327, %v341, 0.0
      %v345 = vsel %vm328, %v341, 0.0
      %v346 = vsel %vm329, %v341, 0.0
      %v347 = vsel %vm330, %v341, 0.0
      %v348 = vsel %vm331, %v341, 0.0
      %v349 = vsel %vm332, %v341, 0.0
      %v350 = vsel %vm333, %v341, 0.0
      %v351 = vsel %vm334, %v341, 0.0
      %v352 = vsel %vm335, %v341, 0.0
      %v353 = vsel %vm336, %v341, 0.0
      %v354 = vsel %vm337, %v341, 0.0
      %v355 = vsel %vm338, %v341, 0.0
      %v356 = vsel %vm339, %v341, 0.0
      %v357 = vsel %vm340, %v341, 0.0
      %v358 = vadd.f32 %v342, 0.0
      %v359 = vadd.f32 %v343, 0.0
      %v360 = vadd.f32 %v344, 0.0
      %v361 = vadd.f32 %v345, 0.0
      %v362 = vadd.f32 %v346, 0.0
      %v363 = vadd.f32 %v347, 0.0
      %v364 = vadd.f32 %v348, 0.0
      %v365 = vadd.f32 %v349, 0.0
      %v366 = vadd.f32 %v350, 0.0
      %v367 = vadd.f32 %v351, 0.0
      %v368 = vadd.f32 %v352, 0.0
      %v369 = vadd.f32 %v353, 0.0
      %v370 = vadd.f32 %v354, 0.0
      %v371 = vadd.f32 %v355, 0.0
      %v372 = vadd.f32 %v356, 0.0
      %v373 = vadd.f32 %v357, 0.0
      %v374 = vperm.slane %v321, 1
      %vm375 = vcmp.eq.s32.totalorder %v374, %v305
      %vm376 = vcmp.eq.s32.totalorder %v374, %v306
      %vm377 = vcmp.eq.s32.totalorder %v374, %v307
      %vm378 = vcmp.eq.s32.totalorder %v374, %v308
      %vm379 = vcmp.eq.s32.totalorder %v374, %v309
      %vm380 = vcmp.eq.s32.totalorder %v374, %v310
      %vm381 = vcmp.eq.s32.totalorder %v374, %v311
      %vm382 = vcmp.eq.s32.totalorder %v374, %v312
      %vm383 = vcmp.eq.s32.totalorder %v374, %v313
      %vm384 = vcmp.eq.s32.totalorder %v374, %v314
      %vm385 = vcmp.eq.s32.totalorder %v374, %v315
      %vm386 = vcmp.eq.s32.totalorder %v374, %v316
      %vm387 = vcmp.eq.s32.totalorder %v374, %v317
      %vm388 = vcmp.eq.s32.totalorder %v374, %v318
      %vm389 = vcmp.eq.s32.totalorder %v374, %v319
      %vm390 = vcmp.eq.s32.totalorder %v374, %v320
      %v391 = vperm.slane %v323, 1
      %v392 = vsel %vm375, %v391, 0.0
      %v393 = vsel %vm376, %v391, 0.0
      %v394 = vsel %vm377, %v391, 0.0
      %v395 = vsel %vm378, %v391, 0.0
      %v396 = vsel %vm379, %v391, 0.0
      %v397 = vsel %vm380, %v391, 0.0
      %v398 = vsel %vm381, %v391, 0.0
      %v399 = vsel %vm382, %v391, 0.0
      %v400 = vsel %vm383, %v391, 0.0
      %v401 = vsel %vm384, %v391, 0.0
      %v402 = vsel %vm385, %v391, 0.0
      %v403 = vsel %vm386, %v391, 0.0
      %v404 = vsel %vm387, %v391, 0.0
      %v405 = vsel %vm388, %v391, 0.0
      %v406 = vsel %vm389, %v391, 0.0
      %v407 = vsel %vm390, %v391, 0.0
      %v408 = vadd.f32 %v358, %v392
      %v409 = vadd.f32 %v359, %v393
      %v410 = vadd.f32 %v360, %v394
      %v411 = vadd.f32 %v361, %v395
      %v412 = vadd.f32 %v362, %v396
      %v413 = vadd.f32 %v363, %v397
      %v414 = vadd.f32 %v364, %v398
      %v415 = vadd.f32 %v365, %v399
      %v416 = vadd.f32 %v366, %v400
      %v417 = vadd.f32 %v367, %v401
      %v418 = vadd.f32 %v368, %v402
      %v419 = vadd.f32 %v369, %v403
      %v420 = vadd.f32 %v370, %v404
      %v421 = vadd.f32 %v371, %v405
      %v422 = vadd.f32 %v372, %v406
      %v423 = vadd.f32 %v373, %v407
      %v424 = vperm.slane %v321, 2
      %vm425 = vcmp.eq.s32.totalorder %v424, %v305
      %vm426 = vcmp.eq.s32.totalorder %v424, %v306
      %vm427 = vcmp.eq.s32.totalorder %v424, %v307
      %vm428 = vcmp.eq.s32.totalorder %v424, %v308
      %vm429 = vcmp.eq.s32.totalorder %v424, %v309
      %vm430 = vcmp.eq.s32.totalorder %v424, %v310
      %vm431 = vcmp.eq.s32.totalorder %v424, %v311
      %vm432 = vcmp.eq.s32.totalorder %v424, %v312
      %vm433 = vcmp.eq.s32.totalorder %v424, %v313
      %vm434 = vcmp.eq.s32.totalorder %v424, %v314
      %vm435 = vcmp.eq.s32.totalorder %v424, %v315
      %vm436 = vcmp.eq.s32.totalorder %v424, %v316
      %vm437 = vcmp.eq.s32.totalorder %v424, %v317
      %vm438 = vcmp.eq.s32.totalorder %v424, %v318
      %vm439 = vcmp.eq.s32.totalorder %v424, %v319
      %vm440 = vcmp.eq.s32.totalorder %v424, %v320
      %v441 = vperm.slane %v323, 2
      %v442 = vsel %vm425, %v441, 0.0
      %v443 = vsel %vm426, %v441, 0.0
      %v444 = vsel %vm427, %v441, 0.0
      %v445 = vsel %vm428, %v441, 0.0
      %v446 = vsel %vm429, %v441, 0.0
      %v447 = vsel %vm430, %v441, 0.0
      %v448 = vsel %vm431, %v441, 0.0
      %v449 = vsel %vm432, %v441, 0.0
      %v450 = vsel %vm433, %v441, 0.0
      %v451 = vsel %vm434, %v441, 0.0
      %v452 = vsel %vm435, %v441, 0.0
      %v453 = vsel %vm436, %v441, 0.0
      %v454 = vsel %vm437, %v441, 0.0
      %v455 = vsel %vm438, %v441, 0.0
      %v456 = vsel %vm439, %v441, 0.0
      %v457 = vsel %vm440, %v441, 0.0
      %v458 = vadd.f32 %v408, %v442
      %v459 = vadd.f32 %v409, %v443
      %v460 = vadd.f32 %v410, %v444
      %v461 = vadd.f32 %v411, %v445
      %v462 = vadd.f32 %v412, %v446
      %v463 = vadd.f32 %v413, %v447
      %v464 = vadd.f32 %v414, %v448
      %v465 = vadd.f32 %v415, %v449
      %v466 = vadd.f32 %v416, %v450
      %v467 = vadd.f32 %v417, %v451
      %v468 = vadd.f32 %v418, %v452
      %v469 = vadd.f32 %v419, %v453
      %v470 = vadd.f32 %v420, %v454
      %v471 = vadd.f32 %v421, %v455
      %v472 = vadd.f32 %v422, %v456
      %v473 = vadd.f32 %v423, %v457
      %v474 = vperm.slane %v321, 3
      %vm475 = vcmp.eq.s32.totalorder %v474, %v305
      %vm476 = vcmp.eq.s32.totalorder %v474, %v306
      %vm477 = vcmp.eq.s32.totalorder %v474, %v307
      %vm478 = vcmp.eq.s32.totalorder %v474, %v308
      %vm479 = vcmp.eq.s32.totalorder %v474, %v309
      %vm480 = vcmp.eq.s32.totalorder %v474, %v310
      %vm481 = vcmp.eq.s32.totalorder %v474, %v311
      %vm482 = vcmp.eq.s32.totalorder %v474, %v312
      %vm483 = vcmp.eq.s32.totalorder %v474, %v313
      %vm484 = vcmp.eq.s32.totalorder %v474, %v314
      %vm485 = vcmp.eq.s32.totalorder %v474, %v315
      %vm486 = vcmp.eq.s32.totalorder %v474, %v316
      %vm487 = vcmp.eq.s32.totalorder %v474, %v317
      %vm488 = vcmp.eq.s32.totalorder %v474, %v318
      %vm489 = vcmp.eq.s32.totalorder %v474, %v319
      %vm490 = vcmp.eq.s32.totalorder %v474, %v320
      %v491 = vperm.slane %v323, 3
      %v492 = vsel %vm475, %v491, 0.0
      %v493 = vsel %vm476, %v491, 0.0
      %v494 = vsel %vm477, %v491, 0.0
      %v495 = vsel %vm478, %v491, 0.0
      %v496 = vsel %vm479, %v491, 0.0
      %v497 = vsel %vm480, %v491, 0.0
      %v498 = vsel %vm481, %v491, 0.0
      %v499 = vsel %vm482, %v491, 0.0
      %v500 = vsel %vm483, %v491, 0.0
      %v501 = vsel %vm484, %v491, 0.0
      %v502 = vsel %vm485, %v491, 0.0
      %v503 = vsel %vm486, %v491, 0.0
      %v504 = vsel %vm487, %v491, 0.0
      %v505 = vsel %vm488, %v491, 0.0
      %v506 = vsel %vm489, %v491, 0.0
      %v507 = vsel %vm490, %v491, 0.0
      %v508 = vadd.f32 %v458, %v492
      %v509 = vadd.f32 %v459, %v493
      %v510 = vadd.f32 %v460, %v494
      %v511 = vadd.f32 %v461, %v495
      %v512 = vadd.f32 %v462, %v496
      %v513 = vadd.f32 %v463, %v497
      %v514 = vadd.f32 %v464, %v498
      %v515 = vadd.f32 %v465, %v499
      %v516 = vadd.f32 %v466, %v500
      %v517 = vadd.f32 %v467, %v501
      %v518 = vadd.f32 %v468, %v502
      %v519 = vadd.f32 %v469, %v503
      %v520 = vadd.f32 %v470, %v504
      %v521 = vadd.f32 %v471, %v505
      %v522 = vadd.f32 %v472, %v506
      %v523 = vadd.f32 %v473, %v507
      %v524 = vperm.slane %v321, 4
      %vm525 = vcmp.eq.s32.totalorder %v524, %v305
      %vm526 = vcmp.eq.s32.totalorder %v524, %v306
      %vm527 = vcmp.eq.s32.totalorder %v524, %v307
      %vm528 = vcmp.eq.s32.totalorder %v524, %v308
      %vm529 = vcmp.eq.s32.totalorder %v524, %v309
      %vm530 = vcmp.eq.s32.totalorder %v524, %v310
      %vm531 = vcmp.eq.s32.totalorder %v524, %v311
      %vm532 = vcmp.eq.s32.totalorder %v524, %v312
      %vm533 = vcmp.eq.s32.totalorder %v524, %v313
      %vm534 = vcmp.eq.s32.totalorder %v524, %v314
      %vm535 = vcmp.eq.s32.totalorder %v524, %v315
      %vm536 = vcmp.eq.s32.totalorder %v524, %v316
      %vm537 = vcmp.eq.s32.totalorder %v524, %v317
      %vm538 = vcmp.eq.s32.totalorder %v524, %v318
      %vm539 = vcmp.eq.s32.totalorder %v524, %v319
      %vm540 = vcmp.eq.s32.totalorder %v524, %v320
      %v541 = vperm.slane %v323, 4
      %v542 = vsel %vm525, %v541, 0.0
      %v543 = vsel %vm526, %v541, 0.0
      %v544 = vsel %vm527, %v541, 0.0
      %v545 = vsel %vm528, %v541, 0.0
      %v546 = vsel %vm529, %v541, 0.0
      %v547 = vsel %vm530, %v541, 0.0
      %v548 = vsel %vm531, %v541, 0.0
      %v549 = vsel %vm532, %v541, 0.0
      %v550 = vsel %vm533, %v541, 0.0
      %v551 = vsel %vm534, %v541, 0.0
      %v552 = vsel %vm535, %v541, 0.0
      %v553 = vsel %vm536, %v541, 0.0
      %v554 = vsel %vm537, %v541, 0.0
      %v555 = vsel %vm538, %v541, 0.0
      %v556 = vsel %vm539, %v541, 0.0
      %v557 = vsel %vm540, %v541, 0.0
      %v558 = vadd.f32 %v508, %v542
      %v559 = vadd.f32 %v509, %v543
      %v560 = vadd.f32 %v510, %v544
      %v561 = vadd.f32 %v511, %v545
      %v562 = vadd.f32 %v512, %v546
      %v563 = vadd.f32 %v513, %v547
      %v564 = vadd.f32 %v514, %v548
      %v565 = vadd.f32 %v515, %v549
      %v566 = vadd.f32 %v516, %v550
      %v567 = vadd.f32 %v517, %v551
      %v568 = vadd.f32 %v518, %v552
      %v569 = vadd.f32 %v519, %v553
      %v570 = vadd.f32 %v520, %v554
      %v571 = vadd.f32 %v521, %v555
      %v572 = vadd.f32 %v522, %v556
      %v573 = vadd.f32 %v523, %v557
      %v574 = vperm.slane %v321, 5
      %vm575 = vcmp.eq.s32.totalorder %v574, %v305
      %vm576 = vcmp.eq.s32.totalorder %v574, %v306
      %vm577 = vcmp.eq.s32.totalorder %v574, %v307
      %vm578 = vcmp.eq.s32.totalorder %v574, %v308
      %vm579 = vcmp.eq.s32.totalorder %v574, %v309
      %vm580 = vcmp.eq.s32.totalorder %v574, %v310
      %vm581 = vcmp.eq.s32.totalorder %v574, %v311
      %vm582 = vcmp.eq.s32.totalorder %v574, %v312
      %vm583 = vcmp.eq.s32.totalorder %v574, %v313
      %vm584 = vcmp.eq.s32.totalorder %v574, %v314
      %vm585 = vcmp.eq.s32.totalorder %v574, %v315
      %vm586 = vcmp.eq.s32.totalorder %v574, %v316
      %vm587 = vcmp.eq.s32.totalorder %v574, %v317
      %vm588 = vcmp.eq.s32.totalorder %v574, %v318
      %vm589 = vcmp.eq.s32.totalorder %v574, %v319
      %vm590 = vcmp.eq.s32.totalorder %v574, %v320
      %v591 = vperm.slane %v323, 5
      %v592 = vsel %vm575, %v591, 0.0
      %v593 = vsel %vm576, %v591, 0.0
      %v594 = vsel %vm577, %v591, 0.0
      %v595 = vsel %vm578, %v591, 0.0
      %v596 = vsel %vm579, %v591, 0.0
      %v597 = vsel %vm580, %v591, 0.0
      %v598 = vsel %vm581, %v591, 0.0
      %v599 = vsel %vm582, %v591, 0.0
      %v600 = vsel %vm583, %v591, 0.0
      %v601 = vsel %vm584, %v591, 0.0
      %v602 = vsel %vm585, %v591, 0.0
      %v603 = vsel %vm586, %v591, 0.0
      %v604 = vsel %vm587, %v591, 0.0
      %v605 = vsel %vm588, %v591, 0.0
      %v606 = vsel %vm589, %v591, 0.0
      %v607 = vsel %vm590, %v591, 0.0
      %v608 = vadd.f32 %v558, %v592
      %v609 = vadd.f32 %v559, %v593
      %v610 = vadd.f32 %v560, %v594
      %v611 = vadd.f32 %v561, %v595
      %v612 = vadd.f32 %v562, %v596
      %v613 = vadd.f32 %v563, %v597
      %v614 = vadd.f32 %v564, %v598
      %v615 = vadd.f32 %v565, %v599
      %v616 = vadd.f32 %v566, %v600
      %v617 = vadd.f32 %v567, %v601
      %v618 = vadd.f32 %v568, %v602
      %v619 = vadd.f32 %v569, %v603
      %v620 = vadd.f32 %v570, %v604
      %v621 = vadd.f32 %v571, %v605
      %v622 = vadd.f32 %v572, %v606
      %v623 = vadd.f32 %v573, %v607
      %v624 = vperm.slane %v321, 6
      %vm625 = vcmp.eq.s32.totalorder %v624, %v305
      %vm626 = vcmp.eq.s32.totalorder %v624, %v306
      %vm627 = vcmp.eq.s32.totalorder %v624, %v307
      %vm628 = vcmp.eq.s32.totalorder %v624, %v308
      %vm629 = vcmp.eq.s32.totalorder %v624, %v309
      %vm630 = vcmp.eq.s32.totalorder %v624, %v310
      %vm631 = vcmp.eq.s32.totalorder %v624, %v311
      %vm632 = vcmp.eq.s32.totalorder %v624, %v312
      %vm633 = vcmp.eq.s32.totalorder %v624, %v313
      %vm634 = vcmp.eq.s32.totalorder %v624, %v314
      %vm635 = vcmp.eq.s32.totalorder %v624, %v315
      %vm636 = vcmp.eq.s32.totalorder %v624, %v316
      %vm637 = vcmp.eq.s32.totalorder %v624, %v317
      %vm638 = vcmp.eq.s32.totalorder %v624, %v318
      %vm639 = vcmp.eq.s32.totalorder %v624, %v319
      %vm640 = vcmp.eq.s32.totalorder %v624, %v320
      %v641 = vperm.slane %v323, 6
      %v642 = vsel %vm625, %v641, 0.0
      %v643 = vsel %vm626, %v641, 0.0
      %v644 = vsel %vm627, %v641, 0.0
      %v645 = vsel %vm628, %v641, 0.0
      %v646 = vsel %vm629, %v641, 0.0
      %v647 = vsel %vm630, %v641, 0.0
      %v648 = vsel %vm631, %v641, 0.0
      %v649 = vsel %vm632, %v641, 0.0
      %v650 = vsel %vm633, %v641, 0.0
      %v651 = vsel %vm634, %v641, 0.0
      %v652 = vsel %vm635, %v641, 0.0
      %v653 = vsel %vm636, %v641, 0.0
      %v654 = vsel %vm637, %v641, 0.0
      %v655 = vsel %vm638, %v641, 0.0
      %v656 = vsel %vm639, %v641, 0.0
      %v657 = vsel %vm640, %v641, 0.0
      %v658 = vadd.f32 %v608, %v642
      %v659 = vadd.f32 %v609, %v643
      %v660 = vadd.f32 %v610, %v644
      %v661 = vadd.f32 %v611, %v645
      %v662 = vadd.f32 %v612, %v646
      %v663 = vadd.f32 %v613, %v647
      %v664 = vadd.f32 %v614, %v648
      %v665 = vadd.f32 %v615, %v649
      %v666 = vadd.f32 %v616, %v650
      %v667 = vadd.f32 %v617, %v651
      %v668 = vadd.f32 %v618, %v652
      %v669 = vadd.f32 %v619, %v653
      %v670 = vadd.f32 %v620, %v654
      %v671 = vadd.f32 %v621, %v655
      %v672 = vadd.f32 %v622, %v656
      %v673 = vadd.f32 %v623, %v657
      %v674 = vperm.slane %v321, 7
      %vm675 = vcmp.eq.s32.totalorder %v674, %v305
      %vm676 = vcmp.eq.s32.totalorder %v674, %v306
      %vm677 = vcmp.eq.s32.totalorder %v674, %v307
      %vm678 = vcmp.eq.s32.totalorder %v674, %v308
      %vm679 = vcmp.eq.s32.totalorder %v674, %v309
      %vm680 = vcmp.eq.s32.totalorder %v674, %v310
      %vm681 = vcmp.eq.s32.totalorder %v674, %v311
      %vm682 = vcmp.eq.s32.totalorder %v674, %v312
      %vm683 = vcmp.eq.s32.totalorder %v674, %v313
      %vm684 = vcmp.eq.s32.totalorder %v674, %v314
      %vm685 = vcmp.eq.s32.totalorder %v674, %v315
      %vm686 = vcmp.eq.s32.totalorder %v674, %v316
      %vm687 = vcmp.eq.s32.totalorder %v674, %v317
      %vm688 = vcmp.eq.s32.totalorder %v674, %v318
      %vm689 = vcmp.eq.s32.totalorder %v674, %v319
      %vm690 = vcmp.eq.s32.totalorder %v674, %v320
      %v691 = vperm.slane %v323, 7
      %v692 = vsel %vm675, %v691, 0.0
      %v693 = vsel %vm676, %v691, 0.0
      %v694 = vsel %vm677, %v691, 0.0
      %v695 = vsel %vm678, %v691, 0.0
      %v696 = vsel %vm679, %v691, 0.0
      %v697 = vsel %vm680, %v691, 0.0
      %v698 = vsel %vm681, %v691, 0.0
      %v699 = vsel %vm682, %v691, 0.0
      %v700 = vsel %vm683, %v691, 0.0
      %v701 = vsel %vm684, %v691, 0.0
      %v702 = vsel %vm685, %v691, 0.0
      %v703 = vsel %vm686, %v691, 0.0
      %v704 = vsel %vm687, %v691, 0.0
      %v705 = vsel %vm688, %v691, 0.0
      %v706 = vsel %vm689, %v691, 0.0
      %v707 = vsel %vm690, %v691, 0.0
      %v708 = vadd.f32 %v658, %v692
      %v709 = vadd.f32 %v659, %v693
      %v710 = vadd.f32 %v660, %v694
      %v711 = vadd.f32 %v661, %v695
      %v712 = vadd.f32 %v662, %v696
      %v713 = vadd.f32 %v663, %v697
      %v714 = vadd.f32 %v664, %v698
      %v715 = vadd.f32 %v665, %v699
      %v716 = vadd.f32 %v666, %v700
      %v717 = vadd.f32 %v667, %v701
      %v718 = vadd.f32 %v668, %v702
      %v719 = vadd.f32 %v669, %v703
      %v720 = vadd.f32 %v670, %v704
      %v721 = vadd.f32 %v671, %v705
      %v722 = vadd.f32 %v672, %v706
      %v723 = vadd.f32 %v673, %v707
      %v724 = vld [vmem:[#allocation2] sm:$0xff]
      %v725 = vld [vmem:[#allocation2 + $0x8] sm:$0xff]
      %v726 = vld [vmem:[#allocation2 + $0x10] sm:$0xff]
      %v727 = vld [vmem:[#allocation2 + $0x18] sm:$0xff]
      %v728 = vld [vmem:[#allocation2 + $0x20] sm:$0xff]
      %v729 = vld [vmem:[#allocation2 + $0x28] sm:$0xff]
      %v730 = vld [vmem:[#allocation2 + $0x30] sm:$0xff]
      %v731 = vld [vmem:[#allocation2 + $0x38] sm:$0xff]
      %v732 = vld [vmem:[#allocation2 + $0x40] sm:$0xff]
      %v733 = vld [vmem:[#allocation2 + $0x48] sm:$0xff]
      %v734 = vld [vmem:[#allocation2 + $0x50] sm:$0xff]
      %v735 = vld [vmem:[#allocation2 + $0x58] sm:$0xff]
      %v736 = vld [vmem:[#allocation2 + $0x60] sm:$0xff]
      %v737 = vld [vmem:[#allocation2 + $0x68] sm:$0xff]
      %v738 = vld [vmem:[#allocation2 + $0x70] sm:$0xff]
      %v739 = vld [vmem:[#allocation2 + $0x78] sm:$0xff]
      %v740 = vpack.c.bf16 %v709, %v708
      %v741 = vpack.c.bf16 %v711, %v710
      %v742 = vpack.c.bf16 %v713, %v712
      %v743 = vpack.c.bf16 %v715, %v714
      %v744 = vpack.c.bf16 %v717, %v716
      %v745 = vpack.c.bf16 %v719, %v718
      %v746 = vpack.c.bf16 %v721, %v720
      %v747 = vpack.c.bf16 %v723, %v722
      %v748 = vld [vmem:[%s257] sm:$0xf]
      %v749 = vld [vmem:[%s257 + $0x4] sm:$0xf]
      %v750 = vld [vmem:[%s257 + $0x8] sm:$0xf]
      %v751 = vld [vmem:[%s257 + $0xc] sm:$0xf]
      %v752 = vld [vmem:[%s257 + $0x10] sm:$0xf]
      %v753 = vld [vmem:[%s257 + $0x14] sm:$0xf]
      %v754 = vld [vmem:[%s257 + $0x18] sm:$0xf]
      %v755 = vld [vmem:[%s257 + $0x1c] sm:$0xf]
      %v756 = vld [vmem:[%s257 + $0x20] sm:$0xf]
      %v757 = vld [vmem:[%s257 + $0x24] sm:$0xf]
      %v758 = vld [vmem:[%s257 + $0x28] sm:$0xf]
      %v759 = vld [vmem:[%s257 + $0x2c] sm:$0xf]
      %v760 = vld [vmem:[%s257 + $0x30] sm:$0xf]
      %v761 = vld [vmem:[%s257 + $0x34] sm:$0xf]
      %v762 = vld [vmem:[%s257 + $0x38] sm:$0xf]
      %v763 = vld [vmem:[%s257 + $0x3c] sm:$0xf]
      %v780 = vunpack.c.l.b16 %v748
      %v781 = vunpack.c.l.b16 %v749
      %v782 = vunpack.c.l.b16 %v750
      %v783 = vunpack.c.l.b16 %v751
      %v784 = vunpack.c.l.b16 %v752
      %v785 = vunpack.c.l.b16 %v753
      %v786 = vunpack.c.l.b16 %v754
      %v787 = vunpack.c.l.b16 %v755
      %v788 = vunpack.c.l.b16 %v756
      %v789 = vunpack.c.l.b16 %v757
      %v790 = vunpack.c.l.b16 %v758
      %v791 = vunpack.c.l.b16 %v759
      %v792 = vunpack.c.l.b16 %v760
      %v793 = vunpack.c.l.b16 %v761
      %v794 = vunpack.c.l.b16 %v762
      %v795 = vunpack.c.l.b16 %v763
      %v796 = vpack.c.b16 %v781, %v780
      %v797 = vpack.c.b16 %v783, %v782
      %v798 = vpack.c.b16 %v785, %v784
      %v799 = vpack.c.b16 %v787, %v786
      %v800 = vpack.c.b16 %v789, %v788
      %v801 = vpack.c.b16 %v791, %v790
      %v802 = vpack.c.b16 %v793, %v792
      %v803 = vpack.c.b16 %v795, %v794
      %812 = vmatpush.bf16.msra.mxu0 %v803
      %813 = vmatpush.bf16.msra.mxu0 %v802
      %814 = vmatpush.bf16.msra.mxu0 %v801
      %815 = vmatpush.bf16.msra.mxu0 %v800
      %816 = vmatpush.bf16.msra.mxu0 %v799
      %817 = vmatpush.bf16.msra.mxu0 %v798
      %818 = vmatpush.bf16.msra.mxu0 %v797
      %819 = vmatpush.bf16.msra.mxu0 %v796
      %820 = vmatmul.bf16.gmra.mxu0 %v740
      %v821 = vpop.f32.mrf.mxu0
      %v822 = vadd.f32 0.0, %v821
      %v823 = vpop.f32.mrf.mxu0
      %v824 = vadd.f32 0.0, %v823
      %825 = vmatmul.bf16.gmra.mxu0 %v741
      %v826 = vpop.f32.mrf.mxu0
      %v827 = vadd.f32 0.0, %v826
      %v828 = vpop.f32.mrf.mxu0
      %v829 = vadd.f32 0.0, %v828
      %830 = vmatmul.bf16.gmra.mxu0 %v742
      %v831 = vpop.f32.mrf.mxu0
      %v832 = vadd.f32 0.0, %v831
      %v833 = vpop.f32.mrf.mxu0
      %v834 = vadd.f32 0.0, %v833
      %835 = vmatmul.bf16.gmra.mxu0 %v743
      %v836 = vpop.f32.mrf.mxu0
      %v837 = vadd.f32 0.0, %v836
      %v838 = vpop.f32.mrf.mxu0
      %v839 = vadd.f32 0.0, %v838
      %840 = vmatmul.bf16.gmra.mxu0 %v744
      %v841 = vpop.f32.mrf.mxu0
      %v842 = vadd.f32 0.0, %v841
      %v843 = vpop.f32.mrf.mxu0
      %v844 = vadd.f32 0.0, %v843
      %845 = vmatmul.bf16.gmra.mxu0 %v745
      %v846 = vpop.f32.mrf.mxu0
      %v847 = vadd.f32 0.0, %v846
      %v848 = vpop.f32.mrf.mxu0
      %v849 = vadd.f32 0.0, %v848
      %850 = vmatmul.bf16.gmra.mxu0 %v746
      %v851 = vpop.f32.mrf.mxu0
      %v852 = vadd.f32 0.0, %v851
      %v853 = vpop.f32.mrf.mxu0
      %v854 = vadd.f32 0.0, %v853
      %855 = vmatmul.bf16.gmra.mxu0 %v747
      %v856 = vpop.f32.mrf.mxu0
      %v857 = vadd.f32 0.0, %v856
      %v858 = vpop.f32.mrf.mxu0
      %v859 = vadd.f32 0.0, %v858
      %860 = vdwg.mxu0
      %v861 = vadd.f32 %v724, %v822
      %v862 = vadd.f32 %v725, %v824
      %v863 = vadd.f32 %v726, %v827
      %v864 = vadd.f32 %v727, %v829
      %v865 = vadd.f32 %v728, %v832
      %v866 = vadd.f32 %v729, %v834
      %v867 = vadd.f32 %v730, %v837
      %v868 = vadd.f32 %v731, %v839
      %v869 = vadd.f32 %v732, %v842
      %v870 = vadd.f32 %v733, %v844
      %v871 = vadd.f32 %v734, %v847
      %v872 = vadd.f32 %v735, %v849
      %v873 = vadd.f32 %v736, %v852
      %v874 = vadd.f32 %v737, %v854
      %v875 = vadd.f32 %v738, %v857
      %v876 = vadd.f32 %v739, %v859
      %vm877 = vcmask 72704
      %878 = vst.msk [vmem:[#allocation2] sm:$0xff] %vm877, %v861
      %879 = vst.msk [vmem:[#allocation2 + $0x8] sm:$0xff] %vm877, %v862
      %880 = vst.msk [vmem:[#allocation2 + $0x10] sm:$0xff] %vm877, %v863
      %881 = vst.msk [vmem:[#allocation2 + $0x18] sm:$0xff] %vm877, %v864
      %882 = vst.msk [vmem:[#allocation2 + $0x20] sm:$0xff] %vm877, %v865
      %883 = vst.msk [vmem:[#allocation2 + $0x28] sm:$0xff] %vm877, %v866
      %884 = vst.msk [vmem:[#allocation2 + $0x30] sm:$0xff] %vm877, %v867
      %885 = vst.msk [vmem:[#allocation2 + $0x38] sm:$0xff] %vm877, %v868
      %886 = vst.msk [vmem:[#allocation2 + $0x40] sm:$0xff] %vm877, %v869
      %887 = vst.msk [vmem:[#allocation2 + $0x48] sm:$0xff] %vm877, %v870
      %888 = vst.msk [vmem:[#allocation2 + $0x50] sm:$0xff] %vm877, %v871
      %889 = vst.msk [vmem:[#allocation2 + $0x58] sm:$0xff] %vm877, %v872
      %890 = vst.msk [vmem:[#allocation2 + $0x60] sm:$0xff] %vm877, %v873
      %891 = vst.msk [vmem:[#allocation2 + $0x68] sm:$0xff] %vm877, %v874
      %892 = vst.msk [vmem:[#allocation2 + $0x70] sm:$0xff] %vm877, %v875
      %893 = vst.msk [vmem:[#allocation2 + $0x78] sm:$0xff] %vm877, %v876
      // Predicated region
      $region37: #{_lambda_.2} parent=31 // pred_check
        %p894 = pneg %p265
      $region38: #{_lambda_.2} parent=31 // pred_check_branch
        %896 = sbr.rel (%p894) target = $region40
      $region39: #{_lambda_.2} parent=31 // pred_region
        %v897 = vld [vmem:[#allocation2] sm:$0xff]
        %v898 = vld [vmem:[#allocation2 + $0x8] sm:$0xff]
        %v899 = vld [vmem:[#allocation2 + $0x10] sm:$0xff]
        %v900 = vld [vmem:[#allocation2 + $0x18] sm:$0xff]
        %v901 = vld [vmem:[#allocation2 + $0x20] sm:$0xff]
        %v902 = vld [vmem:[#allocation2 + $0x28] sm:$0xff]
        %v903 = vld [vmem:[#allocation2 + $0x30] sm:$0xff]
        %v904 = vld [vmem:[#allocation2 + $0x38] sm:$0xff]
        %v905 = vld [vmem:[#allocation2 + $0x40] sm:$0xff]
        %v906 = vld [vmem:[#allocation2 + $0x48] sm:$0xff]
        %v907 = vld [vmem:[#allocation2 + $0x50] sm:$0xff]
        %v908 = vld [vmem:[#allocation2 + $0x58] sm:$0xff]
        %v909 = vld [vmem:[#allocation2 + $0x60] sm:$0xff]
        %v910 = vld [vmem:[#allocation2 + $0x68] sm:$0xff]
        %v911 = vld [vmem:[#allocation2 + $0x70] sm:$0xff]
        %v912 = vld [vmem:[#allocation2 + $0x78] sm:$0xff]
        %v913 = vadd.f32 %v897, 1e-06
        %v914 = vadd.f32 %v898, 1e-06
        %v915 = vadd.f32 %v899, 1e-06
        %v916 = vadd.f32 %v900, 1e-06
        %v917 = vadd.f32 %v901, 1e-06
        %v918 = vadd.f32 %v902, 1e-06
        %v919 = vadd.f32 %v903, 1e-06
        %v920 = vadd.f32 %v904, 1e-06
        %v921 = vadd.f32 %v905, 1e-06
        %v922 = vadd.f32 %v906, 1e-06
        %v923 = vadd.f32 %v907, 1e-06
        %v924 = vadd.f32 %v908, 1e-06
        %v925 = vadd.f32 %v909, 1e-06
        %v926 = vadd.f32 %v910, 1e-06
        %v927 = vadd.f32 %v911, 1e-06
        %v928 = vadd.f32 %v912, 1e-06
        %v929 = vrcp.pop %v913
        %v930 = vrcp.pop %v914
        %v931 = vrcp.pop %v915
        %v932 = vrcp.pop %v916
        %v933 = vrcp.pop %v917
        %v934 = vrcp.pop %v918
        %v935 = vrcp.pop %v919
        %v936 = vrcp.pop %v920
        %v937 = vrcp.pop %v921
        %v938 = vrcp.pop %v922
        %v939 = vrcp.pop %v923
        %v940 = vrcp.pop %v924
        %v941 = vrcp.pop %v925
        %v942 = vrcp.pop %v926
        %v943 = vrcp.pop %v927
        %v944 = vrcp.pop %v928
        %946 = vset.pattern.permute.xlu0 8
        %947 = vperm.xlu0 %946, %v929
        %v948 = vpop.permute.xlu0 %947
        %951 = vset.pattern.permute.xlu0 8
        %952 = vperm.xlu0 %951, %v930
        %v953 = vpop.permute.xlu0 %952
        %956 = vset.pattern.permute.xlu0 8
        %957 = vperm.xlu0 %956, %v931
        %v958 = vpop.permute.xlu0 %957
        %961 = vset.pattern.permute.xlu0 8
        %962 = vperm.xlu0 %961, %v932
        %v963 = vpop.permute.xlu0 %962
        %966 = vset.pattern.permute.xlu0 8
        %967 = vperm.xlu0 %966, %v933
        %v968 = vpop.permute.xlu0 %967
        %971 = vset.pattern.permute.xlu0 8
        %972 = vperm.xlu0 %971, %v934
        %v973 = vpop.permute.xlu0 %972
        %976 = vset.pattern.permute.xlu0 8
        %977 = vperm.xlu0 %976, %v935
        %v978 = vpop.permute.xlu0 %977
        %981 = vset.pattern.permute.xlu0 8
        %982 = vperm.xlu0 %981, %v936
        %v983 = vpop.permute.xlu0 %982
        %986 = vset.pattern.permute.xlu0 8
        %987 = vperm.xlu0 %986, %v937
        %v988 = vpop.permute.xlu0 %987
        %991 = vset.pattern.permute.xlu0 8
        %992 = vperm.xlu0 %991, %v938
        %v993 = vpop.permute.xlu0 %992
        %996 = vset.pattern.permute.xlu0 8
        %997 = vperm.xlu0 %996, %v939
        %v998 = vpop.permute.xlu0 %997
        %1001 = vset.pattern.permute.xlu0 8
        %1002 = vperm.xlu0 %1001, %v940
        %v1003 = vpop.permute.xlu0 %1002
        %1006 = vset.pattern.permute.xlu0 8
        %1007 = vperm.xlu0 %1006, %v941
        %v1008 = vpop.permute.xlu0 %1007
        %1011 = vset.pattern.permute.xlu0 8
        %1012 = vperm.xlu0 %1011, %v942
        %v1013 = vpop.permute.xlu0 %1012
        %1016 = vset.pattern.permute.xlu0 8
        %1017 = vperm.xlu0 %1016, %v943
        %v1018 = vpop.permute.xlu0 %1017
        %1021 = vset.pattern.permute.xlu0 8
        %1022 = vperm.xlu0 %1021, %v944
        %v1023 = vpop.permute.xlu0 %1022
        %v1025 = vmul.f32 %v897, %v948
        %v1026 = vmul.f32 %v898, %v953
        %v1027 = vmul.f32 %v899, %v958
        %v1028 = vmul.f32 %v900, %v963
        %v1029 = vmul.f32 %v901, %v968
        %v1030 = vmul.f32 %v902, %v973
        %v1031 = vmul.f32 %v903, %v978
        %v1032 = vmul.f32 %v904, %v983
        %v1033 = vmul.f32 %v905, %v988
        %v1034 = vmul.f32 %v906, %v993
        %v1035 = vmul.f32 %v907, %v998
        %v1036 = vmul.f32 %v908, %v1003
        %v1037 = vmul.f32 %v909, %v1008
        %v1038 = vmul.f32 %v910, %v1013
        %v1039 = vmul.f32 %v911, %v1018
        %v1040 = vmul.f32 %v912, %v1023
        %v1041 = vpack.c.bf16 %v1025, %v1025
        %v1042 = vpack.c.bf16 %v1026, %v1026
        %v1043 = vpack.c.bf16 %v1027, %v1027
        %v1044 = vpack.c.bf16 %v1028, %v1028
        %v1045 = vpack.c.bf16 %v1029, %v1029
        %v1046 = vpack.c.bf16 %v1030, %v1030
        %v1047 = vpack.c.bf16 %v1031, %v1031
        %v1048 = vpack.c.bf16 %v1032, %v1032
        %v1049 = vpack.c.bf16 %v1033, %v1033
        %v1050 = vpack.c.bf16 %v1034, %v1034
        %v1051 = vpack.c.bf16 %v1035, %v1035
        %v1052 = vpack.c.bf16 %v1036, %v1036
        %v1053 = vpack.c.bf16 %v1037, %v1037
        %v1054 = vpack.c.bf16 %v1038, %v1038
        %v1055 = vpack.c.bf16 %v1039, %v1039
        %v1056 = vpack.c.bf16 %v1040, %v1040
        %vm1057 = vcmask 60416
        %1058 = vst.msk [vmem:[%s263] sm:$0xf] %vm1057, %v1041
        %1059 = vst.msk [vmem:[%s263 + $0x4] sm:$0xf] %vm1057, %v1042
        %1060 = vst.msk [vmem:[%s263 + $0x8] sm:$0xf] %vm1057, %v1043
        %1061 = vst.msk [vmem:[%s263 + $0xc] sm:$0xf] %vm1057, %v1044
        %1062 = vst.msk [vmem:[%s263 + $0x10] sm:$0xf] %vm1057, %v1045
        %1063 = vst.msk [vmem:[%s263 + $0x14] sm:$0xf] %vm1057, %v1046
        %1064 = vst.msk [vmem:[%s263 + $0x18] sm:$0xf] %vm1057, %v1047
        %1065 = vst.msk [vmem:[%s263 + $0x1c] sm:$0xf] %vm1057, %v1048
        %1066 = vst.msk [vmem:[%s263 + $0x20] sm:$0xf] %vm1057, %v1049
        %1067 = vst.msk [vmem:[%s263 + $0x24] sm:$0xf] %vm1057, %v1050
        %1068 = vst.msk [vmem:[%s263 + $0x28] sm:$0xf] %vm1057, %v1051
        %1069 = vst.msk [vmem:[%s263 + $0x2c] sm:$0xf] %vm1057, %v1052
        %1070 = vst.msk [vmem:[%s263 + $0x30] sm:$0xf] %vm1057, %v1053
        %1071 = vst.msk [vmem:[%s263 + $0x34] sm:$0xf] %vm1057, %v1054
        %1072 = vst.msk [vmem:[%s263 + $0x38] sm:$0xf] %vm1057, %v1055
        %1073 = vst.msk [vmem:[%s263 + $0x3c] sm:$0xf] %vm1057, %v1056
      $region40: #{_lambda_.2} parent=31 // pred_fallthru
        _
      %s1074 = smul.u32 16, %s27
      %p1075 = scmp.lt.s32.totalorder %s1074, 127
      %s1076 = scalar_select %p1075, %s1074, 127
      %s1077 = smul.addr %s1076, 4
      %s1078 = scalar_lea.vmem %s4, %s1077
      // Predicated region
      $region41: #{_lambda_.2} parent=31 // pred_check
        %p1079 = pneg %p139
      $region42: #{_lambda_.2} parent=31 // pred_check_branch
        %1081 = sbr.rel (%p1079) target = $region44
      $region43: #{_lambda_.2} parent=31 // pred_region
        %s1082 = smul.u32 16, %s27
      $region44: #{_lambda_.2} parent=31 // pred_fallthru
        _
    $region32: #{_lambda_.2} parent=5 // pred_fallthru
      _
    %p1083 = scmp.le.s32.totalorder 2, %s18
    // Predicated region
    $region45: #{_lambda_.2} parent=5 // pred_check
      %p1084 = pneg %p1083
    $region46: #{_lambda_.2} parent=5 // pred_check_branch
      %1086 = sbr.rel (%p1084) target = $region48
    $region47: #{_lambda_.2} parent=5 // pred_region
      %s1087 = ssub.s32 %s18, 2
      // Predicated region
      $region49: #{_lambda_.2} parent=47 // pred_check
        %p1088 = pneg %p145
      $region50: #{_lambda_.2} parent=47 // pred_check_branch
        %1090 = sbr.rel (%p1088) target = $region52
      $region51: #{_lambda_.2} parent=47 // pred_region
        %s1091 = smul.u32 16, %s29
        %p1092 = scmp.lt.s32.totalorder %s1091, 127
        %s1093 = scalar_select %p1092, %s1091, 127
        %s1094 = smul.addr %s1093, 4
        %s1095 = scalar_lea.vmem %s4, %s1094
      $region52: #{_lambda_.2} parent=47 // pred_fallthru
        _
    $region48: #{_lambda_.2} parent=5 // pred_fallthru
      _
  $region6: #{_lambda_.2} parent=0 // loop_footer
    %s22 = sadd.s32 1, %s18
  $region7: #{_lambda_.2} parent=0 // loop_footer_branch
    %17 = sbr.rel target = $region3
  $region8: #{_lambda_.2} parent=0 // loop_exit
    _

// kernel: _lambda_.3
$region0: #{_lambda_.3}
  #allocation0 [shape = 'u32[]', space=smem, size = 0x4, offset = 0x4, fixed_abs, tag = 'smem constant byte address 0x4 - core index']
  #allocation1 [shape = 'u32[72,128]{1,0:T(1,128)}', space=vmem, size = 0x9000, scoped, tag = 'internal scratch']
  #allocation2 [shape = 'f32[8,128,8]{2,1,0:T(8,128)}', space=vmem, size = 0x80000, scoped, tag = 'scratch operand']
  #allocation3 [shape = 's32[1]{0}', space=sflag, size = 0x4, scoped, tag = 'scoped memory for _lambda_.3']
  #allocation4 [shape = 'u8[512]{0}', space=smem, size = 0x200, scoped, tag = 'prefetched SMEM operand 0']
  %s0 = inlined_call_operand.vmem [shape: s32[8], index: 0, kind: input, shape index: {}]
  %s1 = inlined_call_operand.vmem [shape: s32[8,128,8], index: 1, kind: input, shape index: {}]
  %s2 = inlined_call_operand.vmem [shape: bf16[8,128,8], index: 2, kind: input, shape index: {}]
  %s3 = inlined_call_operand.vmem [shape: bf16[1024,8], index: 3, kind: input, shape index: {}]
  %s4 = inlined_call_operand.vmem [shape: f32[8,128,8], index: 4, kind: output, shape index: {}]
  %s5 = sld [smem:[#allocation0]]
  $region53: #{_lambda_.3} parent=0
    _
  %s7 = ssub.s32 1, %s5
  %s8 = scalar_select 0, %s7, %s5
  %s10 = sshll.u32 %s0, 4
  %s11 = int_to_ptr.vmem [resolvable:$true] %s10
  %13 = dma.vmem_to_smem %s11, 16, [#allocation4], [#allocation3]
  %15 = dma.done [#allocation3], 16
  %16 = sfence
  loop: start=0, step=1, limit=10
  $region2: #{_lambda_.3} parent=0 // loop_pre_header
    _
  $region3: #{_lambda_.3} parent=0 // loop_header
    %s18 = sphi 0, %s22
    %p19 = scmp.ge.s32.totalorder %s18, 10
    %s25 = sphi 0, %s37
    %s26 = sphi 0, %s33
    %s27 = sphi 0, %s25
    %s28 = sphi 0, %s26
    %s29 = sphi 0, %s27
    %s30 = sphi 0, %s28
    %s44 = sphi 0, %s46
    %s47 = sphi 0, %s44
    %s48 = sphi 0, %s47
    %s64 = sphi 0, %s48
    %s74 = sphi 0, %s76
    %s77 = sphi 0, %s74
    %s78 = sphi 0, %s77
    %s94 = sphi 0, %s78
    %s100 = sphi 0, %s102
    %s103 = sphi 0, %s100
    %s104 = sphi 0, %s103
    %s120 = sphi 0, %s104
    %s126 = sphi 0, %s128
    %s129 = sphi 0, %s126
    %s130 = sphi 0, %s129
    %s146 = sphi 0, %s130
  $region4: #{_lambda_.3} parent=0 // loop_header_branch
    %21 = sbr.rel (%p19) target = $region8
  $region5: #{_lambda_.3} parent=0 // loop_body
    %s23 = ssub.s32 %s18, 1
    %s24 = ssub.s32 %s18, 2
    %s31 = sadd.s32 1, %s26
    %p32 = scmp.ge.s32.totalorder %s31, 8
    %s33 = scalar_select %p32, 0, %s31
    %s34 = sadd.s32 1, %s25
    %s35 = scalar_select %p32, %s34, %s25
    %p36 = scmp.ge.s32.totalorder %s35, 1
    %s37 = scalar_select %p36, 0, %s35
    %s38 = sld [smem:[#allocation4 + %s26]]
    %s39 = sld [smem:[#allocation4 + %s33]]
    %s40 = ssub.s32 %s38, %s39
    %s41 = ssub.s32 %s25, %s37
    %s42 = sor.u32 %s40, %s41
    %p43 = scmp.eq.s32.totalorder %s42, 0
    %s45 = sadd.s32 %s44, 1
    %s46 = scalar_select %p43, %s44, %s45
    %p49 = pneg %p43
    %p50 = scmp.eq.s32.totalorder %s18, 7
    %p51 = por %p49, %p50
    %p52 = scmp.ne.s32.totalorder %s44, %s47
    %p53 = scmp.eq.s32.totalorder %s18, 0
    %p54 = por %p52, %p53
    %p55 = scmp.ne.s32.totalorder %s44, %s47
    %p56 = scmp.eq.s32.totalorder %s23, 7
    %p57 = por %p55, %p56
    %p58 = scmp.ne.s32.totalorder %s47, %s48
    %p59 = scmp.eq.s32.totalorder %s23, 0
    %p60 = por %p58, %p59
    %p61 = scmp.ne.s32.totalorder %s47, %s48
    %p62 = scmp.eq.s32.totalorder %s24, 7
    %p63 = por %p61, %p62
    %p65 = scmp.ne.s32.totalorder %s48, %s64
    %p66 = scmp.eq.s32.totalorder %s24, 0
    %p67 = por %p65, %p66
    %s68 = sld [smem:[#allocation4 + %s26]]
    %s69 = sld [smem:[#allocation4 + %s33]]
    %s70 = ssub.s32 %s68, %s69
    %s71 = ssub.s32 %s25, %s37
    %s72 = sor.u32 %s70, %s71
    %p73 = scmp.eq.s32.totalorder %s72, 0
    %s75 = sadd.s32 %s74, 1
    %s76 = scalar_select %p73, %s74, %s75
    %p79 = pneg %p73
    %p80 = scmp.eq.s32.totalorder %s18, 7
    %p81 = por %p79, %p80
    %p82 = scmp.ne.s32.totalorder %s74, %s77
    %p83 = scmp.eq.s32.totalorder %s18, 0
    %p84 = por %p82, %p83
    %p85 = scmp.ne.s32.totalorder %s74, %s77
    %p86 = scmp.eq.s32.totalorder %s23, 7
    %p87 = por %p85, %p86
    %p88 = scmp.ne.s32.totalorder %s77, %s78
    %p89 = scmp.eq.s32.totalorder %s23, 0
    %p90 = por %p88, %p89
    %p91 = scmp.ne.s32.totalorder %s77, %s78
    %p92 = scmp.eq.s32.totalorder %s24, 7
    %p93 = por %p91, %p92
    %p95 = scmp.ne.s32.totalorder %s78, %s94
    %p96 = scmp.eq.s32.totalorder %s24, 0
    %p97 = por %p95, %p96
    %s98 = ssub.s32 %s26, %s33
    %p99 = scmp.eq.s32.totalorder %s98, 0
    %s101 = sadd.s32 %s100, 1
    %s102 = scalar_select %p99, %s100, %s101
    %p105 = pneg %p99
    %p106 = scmp.eq.s32.totalorder %s18, 7
    %p107 = por %p105, %p106
    %p108 = scmp.ne.s32.totalorder %s100, %s103
    %p109 = scmp.eq.s32.totalorder %s18, 0
    %p110 = por %p108, %p109
    %p111 = scmp.ne.s32.totalorder %s100, %s103
    %p112 = scmp.eq.s32.totalorder %s23, 7
    %p113 = por %p111, %p112
    %p114 = scmp.ne.s32.totalorder %s103, %s104
    %p115 = scmp.eq.s32.totalorder %s23, 0
    %p116 = por %p114, %p115
    %p117 = scmp.ne.s32.totalorder %s103, %s104
    %p118 = scmp.eq.s32.totalorder %s24, 7
    %p119 = por %p117, %p118
    %p121 = scmp.ne.s32.totalorder %s104, %s120
    %p122 = scmp.eq.s32.totalorder %s24, 0
    %p123 = por %p121, %p122
    %s124 = ssub.s32 %s25, %s37
    %p125 = scmp.eq.s32.totalorder %s124, 0
    %s127 = sadd.s32 %s126, 1
    %s128 = scalar_select %p125, %s126, %s127
    %p131 = pneg %p125
    %p132 = scmp.eq.s32.totalorder %s18, 7
    %p133 = por %p131, %p132
    %p134 = scmp.ne.s32.totalorder %s126, %s129
    %p135 = scmp.eq.s32.totalorder %s18, 0
    %p136 = por %p134, %p135
    %p137 = scmp.ne.s32.totalorder %s126, %s129
    %p138 = scmp.eq.s32.totalorder %s23, 7
    %p139 = por %p137, %p138
    %p140 = scmp.ne.s32.totalorder %s129, %s130
    %p141 = scmp.eq.s32.totalorder %s23, 0
    %p142 = por %p140, %p141
    %p143 = scmp.ne.s32.totalorder %s129, %s130
    %p144 = scmp.eq.s32.totalorder %s24, 7
    %p145 = por %p143, %p144
    %p147 = scmp.ne.s32.totalorder %s130, %s146
    %p148 = scmp.eq.s32.totalorder %s24, 0
    %p149 = por %p147, %p148
    %p150 = scmp.le.s32.totalorder 1, %s18
    %p151 = scmp.lt.s32.totalorder %s18, 9
    %p152 = pnand %p150, %p151
    %p153 = pneg %p152
    // Predicated region
    $region9: #{_lambda_.3} parent=5 // pred_check
      _
    $region10: #{_lambda_.3} parent=5 // pred_check_branch
      %155 = sbr.rel (%p152) target = $region12
    $region11: #{_lambda_.3} parent=5 // pred_region
      %s156 = ssub.s32 %s18, 1
    $region12: #{_lambda_.3} parent=5 // pred_fallthru
      _
    %p157 = scmp.lt.s32.totalorder %s18, 8
    // Predicated region
    $region13: #{_lambda_.3} parent=5 // pred_check
      %p158 = pneg %p157
    $region14: #{_lambda_.3} parent=5 // pred_check_branch
      %160 = sbr.rel (%p158) target = $region16
    $region15: #{_lambda_.3} parent=5 // pred_region
      // Predicated region
      $region17: #{_lambda_.3} parent=15 // pred_check
        %p161 = pneg %p54
      $region18: #{_lambda_.3} parent=15 // pred_check_branch
        %163 = sbr.rel (%p161) target = $region20
      $region19: #{_lambda_.3} parent=15 // pred_region
        %s164 = sld [smem:[#allocation4 + %s26]]
        %s165 = smul.u32 16, %s25
        %p166 = scmp.lt.s32.totalorder %s164, 7
        %s167 = scalar_select %p166, %s164, 7
        %p168 = scmp.lt.s32.totalorder %s165, 15
        %s169 = scalar_select %p168, %s165, 15
        %s170 = smul.addr %s167, 16
        %s171 = sadd.s32 %s169, %s170
        %s172 = smul.addr %s171, 8
        %s173 = scalar_lea.vmem %s1, %s172
        %s174 = sld [smem:[#allocation4 + %s26]]
        %s175 = smul.u32 16, %s25
      $region20: #{_lambda_.3} parent=15 // pred_fallthru
        _
      // Predicated region
      $region21: #{_lambda_.3} parent=15 // pred_check
        %p176 = pneg %p84
      $region22: #{_lambda_.3} parent=15 // pred_check_branch
        %178 = sbr.rel (%p176) target = $region24
      $region23: #{_lambda_.3} parent=15 // pred_region
        %s179 = sld [smem:[#allocation4 + %s26]]
        %s180 = smul.u32 16, %s25
        %p181 = scmp.lt.s32.totalorder %s179, 7
        %s182 = scalar_select %p181, %s179, 7
        %p183 = scmp.lt.s32.totalorder %s180, 15
        %s184 = scalar_select %p183, %s180, 15
        %s185 = smul.addr %s182, 16
        %s186 = sadd.s32 %s184, %s185
        %s187 = smul.addr %s186, 4
        %s188 = scalar_lea.vmem %s2, %s187
        %s189 = sld [smem:[#allocation4 + %s26]]
        %s190 = smul.u32 16, %s25
      $region24: #{_lambda_.3} parent=15 // pred_fallthru
        _
      // Predicated region
      $region25: #{_lambda_.3} parent=15 // pred_check
        %p191 = pneg %p110
      $region26: #{_lambda_.3} parent=15 // pred_check_branch
        %193 = sbr.rel (%p191) target = $region28
      $region27: #{_lambda_.3} parent=15 // pred_region
        %s194 = smul.u32 16, %s26
        %p195 = scmp.lt.s32.totalorder %s194, 127
        %s196 = scalar_select %p195, %s194, 127
        %s197 = smul.addr %s196, 4
        %s198 = scalar_lea.vmem %s3, %s197
        %s199 = smul.u32 16, %s26
      $region28: #{_lambda_.3} parent=15 // pred_fallthru
        _
    $region16: #{_lambda_.3} parent=5 // pred_fallthru
      _
    %p200 = scmp.le.s32.totalorder 1, %s18
    %p201 = scmp.lt.s32.totalorder %s18, 9
    %p202 = pnand %p200, %p201
    %p203 = pneg %p202
    // Predicated region
    $region29: #{_lambda_.3} parent=5 // pred_check
      _
    $region30: #{_lambda_.3} parent=5 // pred_check_branch
      %205 = sbr.rel (%p202) target = $region32
    $region31: #{_lambda_.3} parent=5 // pred_region
      %s206 = ssub.s32 %s18, 1
      %s207 = sld [smem:[#allocation4 + %s28]]
      %s208 = smul.u32 16, %s27
      %p209 = scmp.lt.s32.totalorder %s207, 7
      %s210 = scalar_select %p209, %s207, 7
      %p211 = scmp.lt.s32.totalorder %s208, 15
      %s212 = scalar_select %p211, %s208, 15
      %s213 = smul.addr %s210, 16
      %s214 = sadd.s32 %s212, %s213
      %s215 = smul.addr %s214, 8
      %s216 = scalar_lea.vmem %s1, %s215
      %p217 = pneg %p60
      %p218 = pneg %p57
      %s219 = sld [smem:[#allocation4 + %s28]]
      %s220 = smul.u32 16, %s27
      %p221 = scmp.lt.s32.totalorder %s219, 7
      %s222 = scalar_select %p221, %s219, 7
      %p223 = scmp.lt.s32.totalorder %s220, 15
      %s224 = scalar_select %p223, %s220, 15
      %s225 = smul.addr %s222, 16
      %s226 = sadd.s32 %s224, %s225
      %s227 = smul.addr %s226, 4
      %s228 = scalar_lea.vmem %s2, %s227
      %p229 = pneg %p90
      %p230 = pneg %p87
      %s231 = smul.u32 16, %s28
      %p232 = scmp.lt.s32.totalorder %s231, 127
      %s233 = scalar_select %p232, %s231, 127
      %s234 = smul.addr %s233, 4
      %s235 = scalar_lea.vmem %s3, %s234
      %p236 = pneg %p116
      %p237 = pneg %p113
      %p238 = pneg %p142
      %p239 = pneg %p139
      %s240 = smul.u32 16, %s27
      %p241 = scmp.lt.s32.totalorder %s240, 15
      %s242 = scalar_select %p241, %s240, 15
      %s243 = smul.addr %s242, 8
      %s244 = scalar_lea.vmem %s4, %s243
      %s245 = sld [smem:[#allocation4 + %s28]]
      %s246 = smul.u32 16, %s27
      %p247 = scmp.lt.s32.totalorder %s245, 7
      %s248 = scalar_select %p247, %s245, 7
      %p249 = scmp.lt.s32.totalorder %s246, 15
      %s250 = scalar_select %p249, %s246, 15
      %s251 = smul.addr %s248, 16
      %s252 = sadd.s32 %s250, %s251
      %s253 = smul.addr %s252, 8
      %s254 = scalar_lea.vmem %s1, %s253
      %s255 = sld [smem:[#allocation4 + %s28]]
      %s256 = smul.u32 16, %s27
      %s257 = sld [smem:[#allocation4 + %s28]]
      %s258 = smul.u32 16, %s27
      %p259 = scmp.lt.s32.totalorder %s257, 7
      %s260 = scalar_select %p259, %s257, 7
      %p261 = scmp.lt.s32.totalorder %s258, 15
      %s262 = scalar_select %p261, %s258, 15
      %s263 = smul.addr %s260, 16
      %s264 = sadd.s32 %s262, %s263
      %s265 = smul.addr %s264, 4
      %s266 = scalar_lea.vmem %s2, %s265
      %s267 = sld [smem:[#allocation4 + %s28]]
      %s268 = smul.u32 16, %s27
      %s269 = smul.u32 16, %s28
      %p270 = scmp.lt.s32.totalorder %s269, 127
      %s271 = scalar_select %p270, %s269, 127
      %s272 = smul.addr %s271, 4
      %s273 = scalar_lea.vmem %s3, %s272
      %s274 = smul.u32 16, %s28
      %s275 = smul.u32 16, %s27
      %p276 = scmp.lt.s32.totalorder %s275, 15
      %s277 = scalar_select %p276, %s275, 15
      %s278 = smul.addr %s277, 8
      %s279 = scalar_lea.vmem %s4, %s278
      %s280 = smul.u32 16, %s27
      %p281 = scmp.eq.s32.totalorder %s28, 0
      // Predicated region
      $region33: #{_lambda_.3} parent=31 // pred_check
        %p282 = pneg %p281
      $region34: #{_lambda_.3} parent=31 // pred_check_branch
        %284 = sbr.rel (%p282) target = $region36
      $region35: #{_lambda_.3} parent=31 // pred_region
        %vm285 = vcmask 64512
        %286 = vst.msk [vmem:[#allocation2] sm:$0xff] %vm285, 0.0
        %287 = vst.msk [vmem:[#allocation2 + $0x8] sm:$0xff] %vm285, 0.0
        %288 = vst.msk [vmem:[#allocation2 + $0x10] sm:$0xff] %vm285, 0.0
        %289 = vst.msk [vmem:[#allocation2 + $0x18] sm:$0xff] %vm285, 0.0
        %290 = vst.msk [vmem:[#allocation2 + $0x20] sm:$0xff] %vm285, 0.0
        %291 = vst.msk [vmem:[#allocation2 + $0x28] sm:$0xff] %vm285, 0.0
        %292 = vst.msk [vmem:[#allocation2 + $0x30] sm:$0xff] %vm285, 0.0
        %293 = vst.msk [vmem:[#allocation2 + $0x38] sm:$0xff] %vm285, 0.0
        %294 = vst.msk [vmem:[#allocation2 + $0x40] sm:$0xff] %vm285, 0.0
        %295 = vst.msk [vmem:[#allocation2 + $0x48] sm:$0xff] %vm285, 0.0
        %296 = vst.msk [vmem:[#allocation2 + $0x50] sm:$0xff] %vm285, 0.0
        %297 = vst.msk [vmem:[#allocation2 + $0x58] sm:$0xff] %vm285, 0.0
        %298 = vst.msk [vmem:[#allocation2 + $0x60] sm:$0xff] %vm285, 0.0
        %299 = vst.msk [vmem:[#allocation2 + $0x68] sm:$0xff] %vm285, 0.0
        %300 = vst.msk [vmem:[#allocation2 + $0x70] sm:$0xff] %vm285, 0.0
        %301 = vst.msk [vmem:[#allocation2 + $0x78] sm:$0xff] %vm285, 0.0
        %302 = vst.msk [vmem:[#allocation2 + $0x80] sm:$0xff] %vm285, 0.0
        %303 = vst.msk [vmem:[#allocation2 + $0x88] sm:$0xff] %vm285, 0.0
        %304 = vst.msk [vmem:[#allocation2 + $0x90] sm:$0xff] %vm285, 0.0
        %305 = vst.msk [vmem:[#allocation2 + $0x98] sm:$0xff] %vm285, 0.0
        %306 = vst.msk [vmem:[#allocation2 + $0xa0] sm:$0xff] %vm285, 0.0
        %307 = vst.msk [vmem:[#allocation2 + $0xa8] sm:$0xff] %vm285, 0.0
        %308 = vst.msk [vmem:[#allocation2 + $0xb0] sm:$0xff] %vm285, 0.0
        %309 = vst.msk [vmem:[#allocation2 + $0xb8] sm:$0xff] %vm285, 0.0
        %310 = vst.msk [vmem:[#allocation2 + $0xc0] sm:$0xff] %vm285, 0.0
        %311 = vst.msk [vmem:[#allocation2 + $0xc8] sm:$0xff] %vm285, 0.0
        %312 = vst.msk [vmem:[#allocation2 + $0xd0] sm:$0xff] %vm285, 0.0
        %313 = vst.msk [vmem:[#allocation2 + $0xd8] sm:$0xff] %vm285, 0.0
        %314 = vst.msk [vmem:[#allocation2 + $0xe0] sm:$0xff] %vm285, 0.0
        %315 = vst.msk [vmem:[#allocation2 + $0xe8] sm:$0xff] %vm285, 0.0
        %316 = vst.msk [vmem:[#allocation2 + $0xf0] sm:$0xff] %vm285, 0.0
        %317 = vst.msk [vmem:[#allocation2 + $0xf8] sm:$0xff] %vm285, 0.0
        %318 = vst.msk [vmem:[#allocation2 + $0x100] sm:$0xff] %vm285, 0.0
        %319 = vst.msk [vmem:[#allocation2 + $0x108] sm:$0xff] %vm285, 0.0
        %320 = vst.msk [vmem:[#allocation2 + $0x110] sm:$0xff] %vm285, 0.0
        %321 = vst.msk [vmem:[#allocation2 + $0x118] sm:$0xff] %vm285, 0.0
        %322 = vst.msk [vmem:[#allocation2 + $0x120] sm:$0xff] %vm285, 0.0
        %323 = vst.msk [vmem:[#allocation2 + $0x128] sm:$0xff] %vm285, 0.0
        %324 = vst.msk [vmem:[#allocation2 + $0x130] sm:$0xff] %vm285, 0.0
        %325 = vst.msk [vmem:[#allocation2 + $0x138] sm:$0xff] %vm285, 0.0
        %326 = vst.msk [vmem:[#allocation2 + $0x140] sm:$0xff] %vm285, 0.0
        %327 = vst.msk [vmem:[#allocation2 + $0x148] sm:$0xff] %vm285, 0.0
        %328 = vst.msk [vmem:[#allocation2 + $0x150] sm:$0xff] %vm285, 0.0
        %329 = vst.msk [vmem:[#allocation2 + $0x158] sm:$0xff] %vm285, 0.0
        %330 = vst.msk [vmem:[#allocation2 + $0x160] sm:$0xff] %vm285, 0.0
        %331 = vst.msk [vmem:[#allocation2 + $0x168] sm:$0xff] %vm285, 0.0
        %332 = vst.msk [vmem:[#allocation2 + $0x170] sm:$0xff] %vm285, 0.0
        %333 = vst.msk [vmem:[#allocation2 + $0x178] sm:$0xff] %vm285, 0.0
        %334 = vst.msk [vmem:[#allocation2 + $0x180] sm:$0xff] %vm285, 0.0
        %335 = vst.msk [vmem:[#allocation2 + $0x188] sm:$0xff] %vm285, 0.0
        %336 = vst.msk [vmem:[#allocation2 + $0x190] sm:$0xff] %vm285, 0.0
        %337 = vst.msk [vmem:[#allocation2 + $0x198] sm:$0xff] %vm285, 0.0
        %338 = vst.msk [vmem:[#allocation2 + $0x1a0] sm:$0xff] %vm285, 0.0
        %339 = vst.msk [vmem:[#allocation2 + $0x1a8] sm:$0xff] %vm285, 0.0
        %340 = vst.msk [vmem:[#allocation2 + $0x1b0] sm:$0xff] %vm285, 0.0
        %341 = vst.msk [vmem:[#allocation2 + $0x1b8] sm:$0xff] %vm285, 0.0
        %342 = vst.msk [vmem:[#allocation2 + $0x1c0] sm:$0xff] %vm285, 0.0
        %343 = vst.msk [vmem:[#allocation2 + $0x1c8] sm:$0xff] %vm285, 0.0
        %344 = vst.msk [vmem:[#allocation2 + $0x1d0] sm:$0xff] %vm285, 0.0
        %345 = vst.msk [vmem:[#allocation2 + $0x1d8] sm:$0xff] %vm285, 0.0
        %346 = vst.msk [vmem:[#allocation2 + $0x1e0] sm:$0xff] %vm285, 0.0
        %347 = vst.msk [vmem:[#allocation2 + $0x1e8] sm:$0xff] %vm285, 0.0
        %348 = vst.msk [vmem:[#allocation2 + $0x1f0] sm:$0xff] %vm285, 0.0
        %349 = vst.msk [vmem:[#allocation2 + $0x1f8] sm:$0xff] %vm285, 0.0
        %350 = vst.msk [vmem:[#allocation2 + $0x200] sm:$0xff] %vm285, 0.0
        %351 = vst.msk [vmem:[#allocation2 + $0x208] sm:$0xff] %vm285, 0.0
        %352 = vst.msk [vmem:[#allocation2 + $0x210] sm:$0xff] %vm285, 0.0
        %353 = vst.msk [vmem:[#allocation2 + $0x218] sm:$0xff] %vm285, 0.0
        %354 = vst.msk [vmem:[#allocation2 + $0x220] sm:$0xff] %vm285, 0.0
        %355 = vst.msk [vmem:[#allocation2 + $0x228] sm:$0xff] %vm285, 0.0
        %356 = vst.msk [vmem:[#allocation2 + $0x230] sm:$0xff] %vm285, 0.0
        %357 = vst.msk [vmem:[#allocation2 + $0x238] sm:$0xff] %vm285, 0.0
        %358 = vst.msk [vmem:[#allocation2 + $0x240] sm:$0xff] %vm285, 0.0
        %359 = vst.msk [vmem:[#allocation2 + $0x248] sm:$0xff] %vm285, 0.0
        %360 = vst.msk [vmem:[#allocation2 + $0x250] sm:$0xff] %vm285, 0.0
        %361 = vst.msk [vmem:[#allocation2 + $0x258] sm:$0xff] %vm285, 0.0
        %362 = vst.msk [vmem:[#allocation2 + $0x260] sm:$0xff] %vm285, 0.0
        %363 = vst.msk [vmem:[#allocation2 + $0x268] sm:$0xff] %vm285, 0.0
        %364 = vst.msk [vmem:[#allocation2 + $0x270] sm:$0xff] %vm285, 0.0
        %365 = vst.msk [vmem:[#allocation2 + $0x278] sm:$0xff] %vm285, 0.0
        %366 = vst.msk [vmem:[#allocation2 + $0x280] sm:$0xff] %vm285, 0.0
        %367 = vst.msk [vmem:[#allocation2 + $0x288] sm:$0xff] %vm285, 0.0
        %368 = vst.msk [vmem:[#allocation2 + $0x290] sm:$0xff] %vm285, 0.0
        %369 = vst.msk [vmem:[#allocation2 + $0x298] sm:$0xff] %vm285, 0.0
        %370 = vst.msk [vmem:[#allocation2 + $0x2a0] sm:$0xff] %vm285, 0.0
        %371 = vst.msk [vmem:[#allocation2 + $0x2a8] sm:$0xff] %vm285, 0.0
        %372 = vst.msk [vmem:[#allocation2 + $0x2b0] sm:$0xff] %vm285, 0.0
        %373 = vst.msk [vmem:[#allocation2 + $0x2b8] sm:$0xff] %vm285, 0.0
        %374 = vst.msk [vmem:[#allocation2 + $0x2c0] sm:$0xff] %vm285, 0.0
        %375 = vst.msk [vmem:[#allocation2 + $0x2c8] sm:$0xff] %vm285, 0.0
        %376 = vst.msk [vmem:[#allocation2 + $0x2d0] sm:$0xff] %vm285, 0.0
        %377 = vst.msk [vmem:[#allocation2 + $0x2d8] sm:$0xff] %vm285, 0.0
        %378 = vst.msk [vmem:[#allocation2 + $0x2e0] sm:$0xff] %vm285, 0.0
        %379 = vst.msk [vmem:[#allocation2 + $0x2e8] sm:$0xff] %vm285, 0.0
        %380 = vst.msk [vmem:[#allocation2 + $0x2f0] sm:$0xff] %vm285, 0.0
        %381 = vst.msk [vmem:[#allocation2 + $0x2f8] sm:$0xff] %vm285, 0.0
        %382 = vst.msk [vmem:[#allocation2 + $0x300] sm:$0xff] %vm285, 0.0
        %383 = vst.msk [vmem:[#allocation2 + $0x308] sm:$0xff] %vm285, 0.0
        %384 = vst.msk [vmem:[#allocation2 + $0x310] sm:$0xff] %vm285, 0.0
        %385 = vst.msk [vmem:[#allocation2 + $0x318] sm:$0xff] %vm285, 0.0
        %386 = vst.msk [vmem:[#allocation2 + $0x320] sm:$0xff] %vm285, 0.0
        %387 = vst.msk [vmem:[#allocation2 + $0x328] sm:$0xff] %vm285, 0.0
        %388 = vst.msk [vmem:[#allocation2 + $0x330] sm:$0xff] %vm285, 0.0
        %389 = vst.msk [vmem:[#allocation2 + $0x338] sm:$0xff] %vm285, 0.0
        %390 = vst.msk [vmem:[#allocation2 + $0x340] sm:$0xff] %vm285, 0.0
        %391 = vst.msk [vmem:[#allocation2 + $0x348] sm:$0xff] %vm285, 0.0
        %392 = vst.msk [vmem:[#allocation2 + $0x350] sm:$0xff] %vm285, 0.0
        %393 = vst.msk [vmem:[#allocation2 + $0x358] sm:$0xff] %vm285, 0.0
        %394 = vst.msk [vmem:[#allocation2 + $0x360] sm:$0xff] %vm285, 0.0
        %395 = vst.msk [vmem:[#allocation2 + $0x368] sm:$0xff] %vm285, 0.0
        %396 = vst.msk [vmem:[#allocation2 + $0x370] sm:$0xff] %vm285, 0.0
        %397 = vst.msk [vmem:[#allocation2 + $0x378] sm:$0xff] %vm285, 0.0
        %398 = vst.msk [vmem:[#allocation2 + $0x380] sm:$0xff] %vm285, 0.0
        %399 = vst.msk [vmem:[#allocation2 + $0x388] sm:$0xff] %vm285, 0.0
        %400 = vst.msk [vmem:[#allocation2 + $0x390] sm:$0xff] %vm285, 0.0
        %401 = vst.msk [vmem:[#allocation2 + $0x398] sm:$0xff] %vm285, 0.0
        %402 = vst.msk [vmem:[#allocation2 + $0x3a0] sm:$0xff] %vm285, 0.0
        %403 = vst.msk [vmem:[#allocation2 + $0x3a8] sm:$0xff] %vm285, 0.0
        %404 = vst.msk [vmem:[#allocation2 + $0x3b0] sm:$0xff] %vm285, 0.0
        %405 = vst.msk [vmem:[#allocation2 + $0x3b8] sm:$0xff] %vm285, 0.0
        %406 = vst.msk [vmem:[#allocation2 + $0x3c0] sm:$0xff] %vm285, 0.0
        %407 = vst.msk [vmem:[#allocation2 + $0x3c8] sm:$0xff] %vm285, 0.0
        %408 = vst.msk [vmem:[#allocation2 + $0x3d0] sm:$0xff] %vm285, 0.0
        %409 = vst.msk [vmem:[#allocation2 + $0x3d8] sm:$0xff] %vm285, 0.0
        %410 = vst.msk [vmem:[#allocation2 + $0x3e0] sm:$0xff] %vm285, 0.0
        %411 = vst.msk [vmem:[#allocation2 + $0x3e8] sm:$0xff] %vm285, 0.0
        %412 = vst.msk [vmem:[#allocation2 + $0x3f0] sm:$0xff] %vm285, 0.0
        %413 = vst.msk [vmem:[#allocation2 + $0x3f8] sm:$0xff] %vm285, 0.0
      $region36: #{_lambda_.3} parent=31 // pred_fallthru
        _
      %s414 = smul.u32 %s28, 128
      %v415 = vlaneseq
      %v416 = vand.u32 %v415, 127
      %v417 = vstv %s414
      %v418 = vadd.s32 %v417, %v416
      %v419 = vld [vmem:[%s254] sm:$0xff]
      %v420 = vld [vmem:[%s254 + $0x8] sm:$0xff]
      %v421 = vld [vmem:[%s254 + $0x10] sm:$0xff]
      %v422 = vld [vmem:[%s254 + $0x18] sm:$0xff]
      %v423 = vld [vmem:[%s254 + $0x20] sm:$0xff]
      %v424 = vld [vmem:[%s254 + $0x28] sm:$0xff]
      %v425 = vld [vmem:[%s254 + $0x30] sm:$0xff]
      %v426 = vld [vmem:[%s254 + $0x38] sm:$0xff]
      %v427 = vld [vmem:[%s254 + $0x40] sm:$0xff]
      %v428 = vld [vmem:[%s254 + $0x48] sm:$0xff]
      %v429 = vld [vmem:[%s254 + $0x50] sm:$0xff]
      %v430 = vld [vmem:[%s254 + $0x58] sm:$0xff]
      %v431 = vld [vmem:[%s254 + $0x60] sm:$0xff]
      %v432 = vld [vmem:[%s254 + $0x68] sm:$0xff]
      %v433 = vld [vmem:[%s254 + $0x70] sm:$0xff]
      %v434 = vld [vmem:[%s254 + $0x78] sm:$0xff]
      %v435 = vld [vmem:[%s266] sm:$0xf]
      %v436 = vld [vmem:[%s266 + $0x4] sm:$0xf]
      %v437 = vld [vmem:[%s266 + $0x8] sm:$0xf]
      %v438 = vld [vmem:[%s266 + $0xc] sm:$0xf]
      %v439 = vld [vmem:[%s266 + $0x10] sm:$0xf]
      %v440 = vld [vmem:[%s266 + $0x14] sm:$0xf]
      %v441 = vld [vmem:[%s266 + $0x18] sm:$0xf]
      %v442 = vld [vmem:[%s266 + $0x1c] sm:$0xf]
      %v443 = vld [vmem:[%s266 + $0x20] sm:$0xf]
      %v444 = vld [vmem:[%s266 + $0x24] sm:$0xf]
      %v445 = vld [vmem:[%s266 + $0x28] sm:$0xf]
      %v446 = vld [vmem:[%s266 + $0x2c] sm:$0xf]
      %v447 = vld [vmem:[%s266 + $0x30] sm:$0xf]
      %v448 = vld [vmem:[%s266 + $0x34] sm:$0xf]
      %v449 = vld [vmem:[%s266 + $0x38] sm:$0xf]
      %v450 = vld [vmem:[%s266 + $0x3c] sm:$0xf]
      %v451 = vunpack.c.l.bf16 %v435
      %v452 = vunpack.c.l.bf16 %v436
      %v453 = vunpack.c.l.bf16 %v437
      %v454 = vunpack.c.l.bf16 %v438
      %v455 = vunpack.c.l.bf16 %v439
      %v456 = vunpack.c.l.bf16 %v440
      %v457 = vunpack.c.l.bf16 %v441
      %v458 = vunpack.c.l.bf16 %v442
      %v459 = vunpack.c.l.bf16 %v443
      %v460 = vunpack.c.l.bf16 %v444
      %v461 = vunpack.c.l.bf16 %v445
      %v462 = vunpack.c.l.bf16 %v446
      %v463 = vunpack.c.l.bf16 %v447
      %v464 = vunpack.c.l.bf16 %v448
      %v465 = vunpack.c.l.bf16 %v449
      %v466 = vunpack.c.l.bf16 %v450
      %467 = vset.pattern.permute.xlu0 0
      %468 = vperm.xlu0 %467, %v419
      %v469 = vpop.permute.xlu0 %468
      %470 = vset.pattern.permute.xlu0 0
      %471 = vperm.xlu0 %470, %v420
      %v472 = vpop.permute.xlu0 %471
      %473 = vset.pattern.permute.xlu0 0
      %474 = vperm.xlu0 %473, %v421
      %v475 = vpop.permute.xlu0 %474
      %476 = vset.pattern.permute.xlu0 0
      %477 = vperm.xlu0 %476, %v422
      %v478 = vpop.permute.xlu0 %477
      %479 = vset.pattern.permute.xlu0 0
      %480 = vperm.xlu0 %479, %v423
      %v481 = vpop.permute.xlu0 %480
      %482 = vset.pattern.permute.xlu0 0
      %483 = vperm.xlu0 %482, %v424
      %v484 = vpop.permute.xlu0 %483
      %485 = vset.pattern.permute.xlu0 0
      %486 = vperm.xlu0 %485, %v425
      %v487 = vpop.permute.xlu0 %486
      %488 = vset.pattern.permute.xlu0 0
      %489 = vperm.xlu0 %488, %v426
      %v490 = vpop.permute.xlu0 %489
      %491 = vset.pattern.permute.xlu0 0
      %492 = vperm.xlu0 %491, %v427
      %v493 = vpop.permute.xlu0 %492
      %494 = vset.pattern.permute.xlu0 0
      %495 = vperm.xlu0 %494, %v428
      %v496 = vpop.permute.xlu0 %495
      %497 = vset.pattern.permute.xlu0 0
      %498 = vperm.xlu0 %497, %v429
      %v499 = vpop.permute.xlu0 %498
      %500 = vset.pattern.permute.xlu0 0
      %501 = vperm.xlu0 %500, %v430
      %v502 = vpop.permute.xlu0 %501
      %503 = vset.pattern.permute.xlu0 0
      %504 = vperm.xlu0 %503, %v431
      %v505 = vpop.permute.xlu0 %504
      %506 = vset.pattern.permute.xlu0 0
      %507 = vperm.xlu0 %506, %v432
      %v508 = vpop.permute.xlu0 %507
      %509 = vset.pattern.permute.xlu0 0
      %510 = vperm.xlu0 %509, %v433
      %v511 = vpop.permute.xlu0 %510
      %512 = vset.pattern.permute.xlu0 0
      %513 = vperm.xlu0 %512, %v434
      %v514 = vpop.permute.xlu0 %513
      %vm515 = vcmp.eq.s32.totalorder %v469, %v418
      %vm516 = vcmp.eq.s32.totalorder %v472, %v418
      %vm517 = vcmp.eq.s32.totalorder %v475, %v418
      %vm518 = vcmp.eq.s32.totalorder %v478, %v418
      %vm519 = vcmp.eq.s32.totalorder %v481, %v418
      %vm520 = vcmp.eq.s32.totalorder %v484, %v418
      %vm521 = vcmp.eq.s32.totalorder %v487, %v418
      %vm522 = vcmp.eq.s32.totalorder %v490, %v418
      %vm523 = vcmp.eq.s32.totalorder %v493, %v418
      %vm524 = vcmp.eq.s32.totalorder %v496, %v418
      %vm525 = vcmp.eq.s32.totalorder %v499, %v418
      %vm526 = vcmp.eq.s32.totalorder %v502, %v418
      %vm527 = vcmp.eq.s32.totalorder %v505, %v418
      %vm528 = vcmp.eq.s32.totalorder %v508, %v418
      %vm529 = vcmp.eq.s32.totalorder %v511, %v418
      %vm530 = vcmp.eq.s32.totalorder %v514, %v418
      %532 = vset.pattern.permute.xlu0 0
      %533 = vperm.xlu0 %532, %v451
      %v534 = vpop.permute.xlu0 %533
      %537 = vset.pattern.permute.xlu0 0
      %538 = vperm.xlu0 %537, %v452
      %v539 = vpop.permute.xlu0 %538
      %542 = vset.pattern.permute.xlu0 0
      %543 = vperm.xlu0 %542, %v453
      %v544 = vpop.permute.xlu0 %543
      %547 = vset.pattern.permute.xlu0 0
      %548 = vperm.xlu0 %547, %v454
      %v549 = vpop.permute.xlu0 %548
      %552 = vset.pattern.permute.xlu0 0
      %553 = vperm.xlu0 %552, %v455
      %v554 = vpop.permute.xlu0 %553
      %557 = vset.pattern.permute.xlu0 0
      %558 = vperm.xlu0 %557, %v456
      %v559 = vpop.permute.xlu0 %558
      %562 = vset.pattern.permute.xlu0 0
      %563 = vperm.xlu0 %562, %v457
      %v564 = vpop.permute.xlu0 %563
      %567 = vset.pattern.permute.xlu0 0
      %568 = vperm.xlu0 %567, %v458
      %v569 = vpop.permute.xlu0 %568
      %572 = vset.pattern.permute.xlu0 0
      %573 = vperm.xlu0 %572, %v459
      %v574 = vpop.permute.xlu0 %573
      %577 = vset.pattern.permute.xlu0 0
      %578 = vperm.xlu0 %577, %v460
      %v579 = vpop.permute.xlu0 %578
      %582 = vset.pattern.permute.xlu0 0
      %583 = vperm.xlu0 %582, %v461
      %v584 = vpop.permute.xlu0 %583
      %587 = vset.pattern.permute.xlu0 0
      %588 = vperm.xlu0 %587, %v462
      %v589 = vpop.permute.xlu0 %588
      %592 = vset.pattern.permute.xlu0 0
      %593 = vperm.xlu0 %592, %v463
      %v594 = vpop.permute.xlu0 %593
      %597 = vset.pattern.permute.xlu0 0
      %598 = vperm.xlu0 %597, %v464
      %v599 = vpop.permute.xlu0 %598
      %602 = vset.pattern.permute.xlu0 0
      %603 = vperm.xlu0 %602, %v465
      %v604 = vpop.permute.xlu0 %603
      %607 = vset.pattern.permute.xlu0 0
      %608 = vperm.xlu0 %607, %v466
      %v609 = vpop.permute.xlu0 %608
      %v611 = vsel %vm515, %v534, 0.0
      %v612 = vsel %vm516, %v539, 0.0
      %v613 = vsel %vm517, %v544, 0.0
      %v614 = vsel %vm518, %v549, 0.0
      %v615 = vsel %vm519, %v554, 0.0
      %v616 = vsel %vm520, %v559, 0.0
      %v617 = vsel %vm521, %v564, 0.0
      %v618 = vsel %vm522, %v569, 0.0
      %v619 = vsel %vm523, %v574, 0.0
      %v620 = vsel %vm524, %v579, 0.0
      %v621 = vsel %vm525, %v584, 0.0
      %v622 = vsel %vm526, %v589, 0.0
      %v623 = vsel %vm527, %v594, 0.0
      %v624 = vsel %vm528, %v599, 0.0
      %v625 = vsel %vm529, %v604, 0.0
      %v626 = vsel %vm530, %v609, 0.0
      %v627 = vadd.f32 %v611, 0.0
      %v628 = vadd.f32 %v612, 0.0
      %v629 = vadd.f32 %v613, 0.0
      %v630 = vadd.f32 %v614, 0.0
      %v631 = vadd.f32 %v615, 0.0
      %v632 = vadd.f32 %v616, 0.0
      %v633 = vadd.f32 %v617, 0.0
      %v634 = vadd.f32 %v618, 0.0
      %v635 = vadd.f32 %v619, 0.0
      %v636 = vadd.f32 %v620, 0.0
      %v637 = vadd.f32 %v621, 0.0
      %v638 = vadd.f32 %v622, 0.0
      %v639 = vadd.f32 %v623, 0.0
      %v640 = vadd.f32 %v624, 0.0
      %v641 = vadd.f32 %v625, 0.0
      %v642 = vadd.f32 %v626, 0.0
      %643 = vset.pattern.permute.xlu0 1
      %644 = vperm.xlu0 %643, %v419
      %v645 = vpop.permute.xlu0 %644
      %646 = vset.pattern.permute.xlu0 1
      %647 = vperm.xlu0 %646, %v420
      %v648 = vpop.permute.xlu0 %647
      %649 = vset.pattern.permute.xlu0 1
      %650 = vperm.xlu0 %649, %v421
      %v651 = vpop.permute.xlu0 %650
      %652 = vset.pattern.permute.xlu0 1
      %653 = vperm.xlu0 %652, %v422
      %v654 = vpop.permute.xlu0 %653
      %655 = vset.pattern.permute.xlu0 1
      %656 = vperm.xlu0 %655, %v423
      %v657 = vpop.permute.xlu0 %656
      %658 = vset.pattern.permute.xlu0 1
      %659 = vperm.xlu0 %658, %v424
      %v660 = vpop.permute.xlu0 %659
      %661 = vset.pattern.permute.xlu0 1
      %662 = vperm.xlu0 %661, %v425
      %v663 = vpop.permute.xlu0 %662
      %664 = vset.pattern.permute.xlu0 1
      %665 = vperm.xlu0 %664, %v426
      %v666 = vpop.permute.xlu0 %665
      %667 = vset.pattern.permute.xlu0 1
      %668 = vperm.xlu0 %667, %v427
      %v669 = vpop.permute.xlu0 %668
      %670 = vset.pattern.permute.xlu0 1
      %671 = vperm.xlu0 %670, %v428
      %v672 = vpop.permute.xlu0 %671
      %673 = vset.pattern.permute.xlu0 1
      %674 = vperm.xlu0 %673, %v429
      %v675 = vpop.permute.xlu0 %674
      %676 = vset.pattern.permute.xlu0 1
      %677 = vperm.xlu0 %676, %v430
      %v678 = vpop.permute.xlu0 %677
      %679 = vset.pattern.permute.xlu0 1
      %680 = vperm.xlu0 %679, %v431
      %v681 = vpop.permute.xlu0 %680
      %682 = vset.pattern.permute.xlu0 1
      %683 = vperm.xlu0 %682, %v432
      %v684 = vpop.permute.xlu0 %683
      %685 = vset.pattern.permute.xlu0 1
      %686 = vperm.xlu0 %685, %v433
      %v687 = vpop.permute.xlu0 %686
      %688 = vset.pattern.permute.xlu0 1
      %689 = vperm.xlu0 %688, %v434
      %v690 = vpop.permute.xlu0 %689
      %vm691 = vcmp.eq.s32.totalorder %v645, %v418
      %vm692 = vcmp.eq.s32.totalorder %v648, %v418
      %vm693 = vcmp.eq.s32.totalorder %v651, %v418
      %vm694 = vcmp.eq.s32.totalorder %v654, %v418
      %vm695 = vcmp.eq.s32.totalorder %v657, %v418
      %vm696 = vcmp.eq.s32.totalorder %v660, %v418
      %vm697 = vcmp.eq.s32.totalorder %v663, %v418
      %vm698 = vcmp.eq.s32.totalorder %v666, %v418
      %vm699 = vcmp.eq.s32.totalorder %v669, %v418
      %vm700 = vcmp.eq.s32.totalorder %v672, %v418
      %vm701 = vcmp.eq.s32.totalorder %v675, %v418
      %vm702 = vcmp.eq.s32.totalorder %v678, %v418
      %vm703 = vcmp.eq.s32.totalorder %v681, %v418
      %vm704 = vcmp.eq.s32.totalorder %v684, %v418
      %vm705 = vcmp.eq.s32.totalorder %v687, %v418
      %vm706 = vcmp.eq.s32.totalorder %v690, %v418
      %707 = vset.pattern.permute.xlu0 1
      %708 = vperm.xlu0 %707, %v451
      %v709 = vpop.permute.xlu0 %708
      %711 = vset.pattern.permute.xlu0 1
      %712 = vperm.xlu0 %711, %v452
      %v713 = vpop.permute.xlu0 %712
      %715 = vset.pattern.permute.xlu0 1
      %716 = vperm.xlu0 %715, %v453
      %v717 = vpop.permute.xlu0 %716
      %719 = vset.pattern.permute.xlu0 1
      %720 = vperm.xlu0 %719, %v454
      %v721 = vpop.permute.xlu0 %720
      %723 = vset.pattern.permute.xlu0 1
      %724 = vperm.xlu0 %723, %v455
      %v725 = vpop.permute.xlu0 %724
      %727 = vset.pattern.permute.xlu0 1
      %728 = vperm.xlu0 %727, %v456
      %v729 = vpop.permute.xlu0 %728
      %731 = vset.pattern.permute.xlu0 1
      %732 = vperm.xlu0 %731, %v457
      %v733 = vpop.permute.xlu0 %732
      %735 = vset.pattern.permute.xlu0 1
      %736 = vperm.xlu0 %735, %v458
      %v737 = vpop.permute.xlu0 %736
      %739 = vset.pattern.permute.xlu0 1
      %740 = vperm.xlu0 %739, %v459
      %v741 = vpop.permute.xlu0 %740
      %743 = vset.pattern.permute.xlu0 1
      %744 = vperm.xlu0 %743, %v460
      %v745 = vpop.permute.xlu0 %744
      %747 = vset.pattern.permute.xlu0 1
      %748 = vperm.xlu0 %747, %v461
      %v749 = vpop.permute.xlu0 %748
      %751 = vset.pattern.permute.xlu0 1
      %752 = vperm.xlu0 %751, %v462
      %v753 = vpop.permute.xlu0 %752
      %755 = vset.pattern.permute.xlu0 1
      %756 = vperm.xlu0 %755, %v463
      %v757 = vpop.permute.xlu0 %756
      %759 = vset.pattern.permute.xlu0 1
      %760 = vperm.xlu0 %759, %v464
      %v761 = vpop.permute.xlu0 %760
      %763 = vset.pattern.permute.xlu0 1
      %764 = vperm.xlu0 %763, %v465
      %v765 = vpop.permute.xlu0 %764
      %767 = vset.pattern.permute.xlu0 1
      %768 = vperm.xlu0 %767, %v466
      %v769 = vpop.permute.xlu0 %768
      %v771 = vsel %vm691, %v709, 0.0
      %v772 = vsel %vm692, %v713, 0.0
      %v773 = vsel %vm693, %v717, 0.0
      %v774 = vsel %vm694, %v721, 0.0
      %v775 = vsel %vm695, %v725, 0.0
      %v776 = vsel %vm696, %v729, 0.0
      %v777 = vsel %vm697, %v733, 0.0
      %v778 = vsel %vm698, %v737, 0.0
      %v779 = vsel %vm699, %v741, 0.0
      %v780 = vsel %vm700, %v745, 0.0
      %v781 = vsel %vm701, %v749, 0.0
      %v782 = vsel %vm702, %v753, 0.0
      %v783 = vsel %vm703, %v757, 0.0
      %v784 = vsel %vm704, %v761, 0.0
      %v785 = vsel %vm705, %v765, 0.0
      %v786 = vsel %vm706, %v769, 0.0
      %v787 = vadd.f32 %v627, %v771
      %v788 = vadd.f32 %v628, %v772
      %v789 = vadd.f32 %v629, %v773
      %v790 = vadd.f32 %v630, %v774
      %v791 = vadd.f32 %v631, %v775
      %v792 = vadd.f32 %v632, %v776
      %v793 = vadd.f32 %v633, %v777
      %v794 = vadd.f32 %v634, %v778
      %v795 = vadd.f32 %v635, %v779
      %v796 = vadd.f32 %v636, %v780
      %v797 = vadd.f32 %v637, %v781
      %v798 = vadd.f32 %v638, %v782
      %v799 = vadd.f32 %v639, %v783
      %v800 = vadd.f32 %v640, %v784
      %v801 = vadd.f32 %v641, %v785
      %v802 = vadd.f32 %v642, %v786
      %803 = vset.pattern.permute.xlu0 2
      %804 = vperm.xlu0 %803, %v419
      %v805 = vpop.permute.xlu0 %804
      %806 = vset.pattern.permute.xlu0 2
      %807 = vperm.xlu0 %806, %v420
      %v808 = vpop.permute.xlu0 %807
      %809 = vset.pattern.permute.xlu0 2
      %810 = vperm.xlu0 %809, %v421
      %v811 = vpop.permute.xlu0 %810
      %812 = vset.pattern.permute.xlu0 2
      %813 = vperm.xlu0 %812, %v422
      %v814 = vpop.permute.xlu0 %813
      %815 = vset.pattern.permute.xlu0 2
      %816 = vperm.xlu0 %815, %v423
      %v817 = vpop.permute.xlu0 %816
      %818 = vset.pattern.permute.xlu0 2
      %819 = vperm.xlu0 %818, %v424
      %v820 = vpop.permute.xlu0 %819
      %821 = vset.pattern.permute.xlu0 2
      %822 = vperm.xlu0 %821, %v425
      %v823 = vpop.permute.xlu0 %822
      %824 = vset.pattern.permute.xlu0 2
      %825 = vperm.xlu0 %824, %v426
      %v826 = vpop.permute.xlu0 %825
      %827 = vset.pattern.permute.xlu0 2
      %828 = vperm.xlu0 %827, %v427
      %v829 = vpop.permute.xlu0 %828
      %830 = vset.pattern.permute.xlu0 2
      %831 = vperm.xlu0 %830, %v428
      %v832 = vpop.permute.xlu0 %831
      %833 = vset.pattern.permute.xlu0 2
      %834 = vperm.xlu0 %833, %v429
      %v835 = vpop.permute.xlu0 %834
      %836 = vset.pattern.permute.xlu0 2
      %837 = vperm.xlu0 %836, %v430
      %v838 = vpop.permute.xlu0 %837
      %839 = vset.pattern.permute.xlu0 2
      %840 = vperm.xlu0 %839, %v431
      %v841 = vpop.permute.xlu0 %840
      %842 = vset.pattern.permute.xlu0 2
      %843 = vperm.xlu0 %842, %v432
      %v844 = vpop.permute.xlu0 %843
      %845 = vset.pattern.permute.xlu0 2
      %846 = vperm.xlu0 %845, %v433
      %v847 = vpop.permute.xlu0 %846
      %848 = vset.pattern.permute.xlu0 2
      %849 = vperm.xlu0 %848, %v434
      %v850 = vpop.permute.xlu0 %849
      %vm851 = vcmp.eq.s32.totalorder %v805, %v418
      %vm852 = vcmp.eq.s32.totalorder %v808, %v418
      %vm853 = vcmp.eq.s32.totalorder %v811, %v418
      %vm854 = vcmp.eq.s32.totalorder %v814, %v418
      %vm855 = vcmp.eq.s32.totalorder %v817, %v418
      %vm856 = vcmp.eq.s32.totalorder %v820, %v418
      %vm857 = vcmp.eq.s32.totalorder %v823, %v418
      %vm858 = vcmp.eq.s32.totalorder %v826, %v418
      %vm859 = vcmp.eq.s32.totalorder %v829, %v418
      %vm860 = vcmp.eq.s32.totalorder %v832, %v418
      %vm861 = vcmp.eq.s32.totalorder %v835, %v418
      %vm862 = vcmp.eq.s32.totalorder %v838, %v418
      %vm863 = vcmp.eq.s32.totalorder %v841, %v418
      %vm864 = vcmp.eq.s32.totalorder %v844, %v418
      %vm865 = vcmp.eq.s32.totalorder %v847, %v418
      %vm866 = vcmp.eq.s32.totalorder %v850, %v418
      %867 = vset.pattern.permute.xlu0 2
      %868 = vperm.xlu0 %867, %v451
      %v869 = vpop.permute.xlu0 %868
      %871 = vset.pattern.permute.xlu0 2
      %872 = vperm.xlu0 %871, %v452
      %v873 = vpop.permute.xlu0 %872
      %875 = vset.pattern.permute.xlu0 2
      %876 = vperm.xlu0 %875, %v453
      %v877 = vpop.permute.xlu0 %876
      %879 = vset.pattern.permute.xlu0 2
      %880 = vperm.xlu0 %879, %v454
      %v881 = vpop.permute.xlu0 %880
      %883 = vset.pattern.permute.xlu0 2
      %884 = vperm.xlu0 %883, %v455
      %v885 = vpop.permute.xlu0 %884
      %887 = vset.pattern.permute.xlu0 2
      %888 = vperm.xlu0 %887, %v456
      %v889 = vpop.permute.xlu0 %888
      %891 = vset.pattern.permute.xlu0 2
      %892 = vperm.xlu0 %891, %v457
      %v893 = vpop.permute.xlu0 %892
      %895 = vset.pattern.permute.xlu0 2
      %896 = vperm.xlu0 %895, %v458
      %v897 = vpop.permute.xlu0 %896
      %899 = vset.pattern.permute.xlu0 2
      %900 = vperm.xlu0 %899, %v459
      %v901 = vpop.permute.xlu0 %900
      %903 = vset.pattern.permute.xlu0 2
      %904 = vperm.xlu0 %903, %v460
      %v905 = vpop.permute.xlu0 %904
      %907 = vset.pattern.permute.xlu0 2
      %908 = vperm.xlu0 %907, %v461
      %v909 = vpop.permute.xlu0 %908
      %911 = vset.pattern.permute.xlu0 2
      %912 = vperm.xlu0 %911, %v462
      %v913 = vpop.permute.xlu0 %912
      %915 = vset.pattern.permute.xlu0 2
      %916 = vperm.xlu0 %915, %v463
      %v917 = vpop.permute.xlu0 %916
      %919 = vset.pattern.permute.xlu0 2
      %920 = vperm.xlu0 %919, %v464
      %v921 = vpop.permute.xlu0 %920
      %923 = vset.pattern.permute.xlu0 2
      %924 = vperm.xlu0 %923, %v465
      %v925 = vpop.permute.xlu0 %924
      %927 = vset.pattern.permute.xlu0 2
      %928 = vperm.xlu0 %927, %v466
      %v929 = vpop.permute.xlu0 %928
      %v931 = vsel %vm851, %v869, 0.0
      %v932 = vsel %vm852, %v873, 0.0
      %v933 = vsel %vm853, %v877, 0.0
      %v934 = vsel %vm854, %v881, 0.0
      %v935 = vsel %vm855, %v885, 0.0
      %v936 = vsel %vm856, %v889, 0.0
      %v937 = vsel %vm857, %v893, 0.0
      %v938 = vsel %vm858, %v897, 0.0
      %v939 = vsel %vm859, %v901, 0.0
      %v940 = vsel %vm860, %v905, 0.0
      %v941 = vsel %vm861, %v909, 0.0
      %v942 = vsel %vm862, %v913, 0.0
      %v943 = vsel %vm863, %v917, 0.0
      %v944 = vsel %vm864, %v921, 0.0
      %v945 = vsel %vm865, %v925, 0.0
      %v946 = vsel %vm866, %v929, 0.0
      %v947 = vadd.f32 %v787, %v931
      %v948 = vadd.f32 %v788, %v932
      %v949 = vadd.f32 %v789, %v933
      %v950 = vadd.f32 %v790, %v934
      %v951 = vadd.f32 %v791, %v935
      %v952 = vadd.f32 %v792, %v936
      %v953 = vadd.f32 %v793, %v937
      %v954 = vadd.f32 %v794, %v938
      %v955 = vadd.f32 %v795, %v939
      %v956 = vadd.f32 %v796, %v940
      %v957 = vadd.f32 %v797, %v941
      %v958 = vadd.f32 %v798, %v942
      %v959 = vadd.f32 %v799, %v943
      %v960 = vadd.f32 %v800, %v944
      %v961 = vadd.f32 %v801, %v945
      %v962 = vadd.f32 %v802, %v946
      %963 = vset.pattern.permute.xlu0 3
      %964 = vperm.xlu0 %963, %v419
      %v965 = vpop.permute.xlu0 %964
      %966 = vset.pattern.permute.xlu0 3
      %967 = vperm.xlu0 %966, %v420
      %v968 = vpop.permute.xlu0 %967
      %969 = vset.pattern.permute.xlu0 3
      %970 = vperm.xlu0 %969, %v421
      %v971 = vpop.permute.xlu0 %970
      %972 = vset.pattern.permute.xlu0 3
      %973 = vperm.xlu0 %972, %v422
      %v974 = vpop.permute.xlu0 %973
      %975 = vset.pattern.permute.xlu0 3
      %976 = vperm.xlu0 %975, %v423
      %v977 = vpop.permute.xlu0 %976
      %978 = vset.pattern.permute.xlu0 3
      %979 = vperm.xlu0 %978, %v424
      %v980 = vpop.permute.xlu0 %979
      %981 = vset.pattern.permute.xlu0 3
      %982 = vperm.xlu0 %981, %v425
      %v983 = vpop.permute.xlu0 %982
      %984 = vset.pattern.permute.xlu0 3
      %985 = vperm.xlu0 %984, %v426
      %v986 = vpop.permute.xlu0 %985
      %987 = vset.pattern.permute.xlu0 3
      %988 = vperm.xlu0 %987, %v427
      %v989 = vpop.permute.xlu0 %988
      %990 = vset.pattern.permute.xlu0 3
      %991 = vperm.xlu0 %990, %v428
      %v992 = vpop.permute.xlu0 %991
      %993 = vset.pattern.permute.xlu0 3
      %994 = vperm.xlu0 %993, %v429
      %v995 = vpop.permute.xlu0 %994
      %996 = vset.pattern.permute.xlu0 3
      %997 = vperm.xlu0 %996, %v430
      %v998 = vpop.permute.xlu0 %997
      %999 = vset.pattern.permute.xlu0 3
      %1000 = vperm.xlu0 %999, %v431
      %v1001 = vpop.permute.xlu0 %1000
      %1002 = vset.pattern.permute.xlu0 3
      %1003 = vperm.xlu0 %1002, %v432
      %v1004 = vpop.permute.xlu0 %1003
      %1005 = vset.pattern.permute.xlu0 3
      %1006 = vperm.xlu0 %1005, %v433
      %v1007 = vpop.permute.xlu0 %1006
      %1008 = vset.pattern.permute.xlu0 3
      %1009 = vperm.xlu0 %1008, %v434
      %v1010 = vpop.permute.xlu0 %1009
      %vm1011 = vcmp.eq.s32.totalorder %v965, %v418
      %vm1012 = vcmp.eq.s32.totalorder %v968, %v418
      %vm1013 = vcmp.eq.s32.totalorder %v971, %v418
      %vm1014 = vcmp.eq.s32.totalorder %v974, %v418
      %vm1015 = vcmp.eq.s32.totalorder %v977, %v418
      %vm1016 = vcmp.eq.s32.totalorder %v980, %v418
      %vm1017 = vcmp.eq.s32.totalorder %v983, %v418
      %vm1018 = vcmp.eq.s32.totalorder %v986, %v418
      %vm1019 = vcmp.eq.s32.totalorder %v989, %v418
      %vm1020 = vcmp.eq.s32.totalorder %v992, %v418
      %vm1021 = vcmp.eq.s32.totalorder %v995, %v418
      %vm1022 = vcmp.eq.s32.totalorder %v998, %v418
      %vm1023 = vcmp.eq.s32.totalorder %v1001, %v418
      %vm1024 = vcmp.eq.s32.totalorder %v1004, %v418
      %vm1025 = vcmp.eq.s32.totalorder %v1007, %v418
      %vm1026 = vcmp.eq.s32.totalorder %v1010, %v418
      %1027 = vset.pattern.permute.xlu0 3
      %1028 = vperm.xlu0 %1027, %v451
      %v1029 = vpop.permute.xlu0 %1028
      %1031 = vset.pattern.permute.xlu0 3
      %1032 = vperm.xlu0 %1031, %v452
      %v1033 = vpop.permute.xlu0 %1032
      %1035 = vset.pattern.permute.xlu0 3
      %1036 = vperm.xlu0 %1035, %v453
      %v1037 = vpop.permute.xlu0 %1036
      %1039 = vset.pattern.permute.xlu0 3
      %1040 = vperm.xlu0 %1039, %v454
      %v1041 = vpop.permute.xlu0 %1040
      %1043 = vset.pattern.permute.xlu0 3
      %1044 = vperm.xlu0 %1043, %v455
      %v1045 = vpop.permute.xlu0 %1044
      %1047 = vset.pattern.permute.xlu0 3
      %1048 = vperm.xlu0 %1047, %v456
      %v1049 = vpop.permute.xlu0 %1048
      %1051 = vset.pattern.permute.xlu0 3
      %1052 = vperm.xlu0 %1051, %v457
      %v1053 = vpop.permute.xlu0 %1052
      %1055 = vset.pattern.permute.xlu0 3
      %1056 = vperm.xlu0 %1055, %v458
      %v1057 = vpop.permute.xlu0 %1056
      %1059 = vset.pattern.permute.xlu0 3
      %1060 = vperm.xlu0 %1059, %v459
      %v1061 = vpop.permute.xlu0 %1060
      %1063 = vset.pattern.permute.xlu0 3
      %1064 = vperm.xlu0 %1063, %v460
      %v1065 = vpop.permute.xlu0 %1064
      %1067 = vset.pattern.permute.xlu0 3
      %1068 = vperm.xlu0 %1067, %v461
      %v1069 = vpop.permute.xlu0 %1068
      %1071 = vset.pattern.permute.xlu0 3
      %1072 = vperm.xlu0 %1071, %v462
      %v1073 = vpop.permute.xlu0 %1072
      %1075 = vset.pattern.permute.xlu0 3
      %1076 = vperm.xlu0 %1075, %v463
      %v1077 = vpop.permute.xlu0 %1076
      %1079 = vset.pattern.permute.xlu0 3
      %1080 = vperm.xlu0 %1079, %v464
      %v1081 = vpop.permute.xlu0 %1080
      %1083 = vset.pattern.permute.xlu0 3
      %1084 = vperm.xlu0 %1083, %v465
      %v1085 = vpop.permute.xlu0 %1084
      %1087 = vset.pattern.permute.xlu0 3
      %1088 = vperm.xlu0 %1087, %v466
      %v1089 = vpop.permute.xlu0 %1088
      %v1091 = vsel %vm1011, %v1029, 0.0
      %v1092 = vsel %vm1012, %v1033, 0.0
      %v1093 = vsel %vm1013, %v1037, 0.0
      %v1094 = vsel %vm1014, %v1041, 0.0
      %v1095 = vsel %vm1015, %v1045, 0.0
      %v1096 = vsel %vm1016, %v1049, 0.0
      %v1097 = vsel %vm1017, %v1053, 0.0
      %v1098 = vsel %vm1018, %v1057, 0.0
      %v1099 = vsel %vm1019, %v1061, 0.0
      %v1100 = vsel %vm1020, %v1065, 0.0
      %v1101 = vsel %vm1021, %v1069, 0.0
      %v1102 = vsel %vm1022, %v1073, 0.0
      %v1103 = vsel %vm1023, %v1077, 0.0
      %v1104 = vsel %vm1024, %v1081, 0.0
      %v1105 = vsel %vm1025, %v1085, 0.0
      %v1106 = vsel %vm1026, %v1089, 0.0
      %v1107 = vadd.f32 %v947, %v1091
      %v1108 = vadd.f32 %v948, %v1092
      %v1109 = vadd.f32 %v949, %v1093
      %v1110 = vadd.f32 %v950, %v1094
      %v1111 = vadd.f32 %v951, %v1095
      %v1112 = vadd.f32 %v952, %v1096
      %v1113 = vadd.f32 %v953, %v1097
      %v1114 = vadd.f32 %v954, %v1098
      %v1115 = vadd.f32 %v955, %v1099
      %v1116 = vadd.f32 %v956, %v1100
      %v1117 = vadd.f32 %v957, %v1101
      %v1118 = vadd.f32 %v958, %v1102
      %v1119 = vadd.f32 %v959, %v1103
      %v1120 = vadd.f32 %v960, %v1104
      %v1121 = vadd.f32 %v961, %v1105
      %v1122 = vadd.f32 %v962, %v1106
      %1123 = vset.pattern.permute.xlu0 4
      %1124 = vperm.xlu0 %1123, %v419
      %v1125 = vpop.permute.xlu0 %1124
      %1126 = vset.pattern.permute.xlu0 4
      %1127 = vperm.xlu0 %1126, %v420
      %v1128 = vpop.permute.xlu0 %1127
      %1129 = vset.pattern.permute.xlu0 4
      %1130 = vperm.xlu0 %1129, %v421
      %v1131 = vpop.permute.xlu0 %1130
      %1132 = vset.pattern.permute.xlu0 4
      %1133 = vperm.xlu0 %1132, %v422
      %v1134 = vpop.permute.xlu0 %1133
      %1135 = vset.pattern.permute.xlu0 4
      %1136 = vperm.xlu0 %1135, %v423
      %v1137 = vpop.permute.xlu0 %1136
      %1138 = vset.pattern.permute.xlu0 4
      %1139 = vperm.xlu0 %1138, %v424
      %v1140 = vpop.permute.xlu0 %1139
      %1141 = vset.pattern.permute.xlu0 4
      %1142 = vperm.xlu0 %1141, %v425
      %v1143 = vpop.permute.xlu0 %1142
      %1144 = vset.pattern.permute.xlu0 4
      %1145 = vperm.xlu0 %1144, %v426
      %v1146 = vpop.permute.xlu0 %1145
      %1147 = vset.pattern.permute.xlu0 4
      %1148 = vperm.xlu0 %1147, %v427
      %v1149 = vpop.permute.xlu0 %1148
      %1150 = vset.pattern.permute.xlu0 4
      %1151 = vperm.xlu0 %1150, %v428
      %v1152 = vpop.permute.xlu0 %1151
      %1153 = vset.pattern.permute.xlu0 4
      %1154 = vperm.xlu0 %1153, %v429
      %v1155 = vpop.permute.xlu0 %1154
      %1156 = vset.pattern.permute.xlu0 4
      %1157 = vperm.xlu0 %1156, %v430
      %v1158 = vpop.permute.xlu0 %1157
      %1159 = vset.pattern.permute.xlu0 4
      %1160 = vperm.xlu0 %1159, %v431
      %v1161 = vpop.permute.xlu0 %1160
      %1162 = vset.pattern.permute.xlu0 4
      %1163 = vperm.xlu0 %1162, %v432
      %v1164 = vpop.permute.xlu0 %1163
      %1165 = vset.pattern.permute.xlu0 4
      %1166 = vperm.xlu0 %1165, %v433
      %v1167 = vpop.permute.xlu0 %1166
      %1168 = vset.pattern.permute.xlu0 4
      %1169 = vperm.xlu0 %1168, %v434
      %v1170 = vpop.permute.xlu0 %1169
      %vm1171 = vcmp.eq.s32.totalorder %v1125, %v418
      %vm1172 = vcmp.eq.s32.totalorder %v1128, %v418
      %vm1173 = vcmp.eq.s32.totalorder %v1131, %v418
      %vm1174 = vcmp.eq.s32.totalorder %v1134, %v418
      %vm1175 = vcmp.eq.s32.totalorder %v1137, %v418
      %vm1176 = vcmp.eq.s32.totalorder %v1140, %v418
      %vm1177 = vcmp.eq.s32.totalorder %v1143, %v418
      %vm1178 = vcmp.eq.s32.totalorder %v1146, %v418
      %vm1179 = vcmp.eq.s32.totalorder %v1149, %v418
      %vm1180 = vcmp.eq.s32.totalorder %v1152, %v418
      %vm1181 = vcmp.eq.s32.totalorder %v1155, %v418
      %vm1182 = vcmp.eq.s32.totalorder %v1158, %v418
      %vm1183 = vcmp.eq.s32.totalorder %v1161, %v418
      %vm1184 = vcmp.eq.s32.totalorder %v1164, %v418
      %vm1185 = vcmp.eq.s32.totalorder %v1167, %v418
      %vm1186 = vcmp.eq.s32.totalorder %v1170, %v418
      %1187 = vset.pattern.permute.xlu0 4
      %1188 = vperm.xlu0 %1187, %v451
      %v1189 = vpop.permute.xlu0 %1188
      %1191 = vset.pattern.permute.xlu0 4
      %1192 = vperm.xlu0 %1191, %v452
      %v1193 = vpop.permute.xlu0 %1192
      %1195 = vset.pattern.permute.xlu0 4
      %1196 = vperm.xlu0 %1195, %v453
      %v1197 = vpop.permute.xlu0 %1196
      %1199 = vset.pattern.permute.xlu0 4
      %1200 = vperm.xlu0 %1199, %v454
      %v1201 = vpop.permute.xlu0 %1200
      %1203 = vset.pattern.permute.xlu0 4
      %1204 = vperm.xlu0 %1203, %v455
      %v1205 = vpop.permute.xlu0 %1204
      %1207 = vset.pattern.permute.xlu0 4
      %1208 = vperm.xlu0 %1207, %v456
      %v1209 = vpop.permute.xlu0 %1208
      %1211 = vset.pattern.permute.xlu0 4
      %1212 = vperm.xlu0 %1211, %v457
      %v1213 = vpop.permute.xlu0 %1212
      %1215 = vset.pattern.permute.xlu0 4
      %1216 = vperm.xlu0 %1215, %v458
      %v1217 = vpop.permute.xlu0 %1216
      %1219 = vset.pattern.permute.xlu0 4
      %1220 = vperm.xlu0 %1219, %v459
      %v1221 = vpop.permute.xlu0 %1220
      %1223 = vset.pattern.permute.xlu0 4
      %1224 = vperm.xlu0 %1223, %v460
      %v1225 = vpop.permute.xlu0 %1224
      %1227 = vset.pattern.permute.xlu0 4
      %1228 = vperm.xlu0 %1227, %v461
      %v1229 = vpop.permute.xlu0 %1228
      %1231 = vset.pattern.permute.xlu0 4
      %1232 = vperm.xlu0 %1231, %v462
      %v1233 = vpop.permute.xlu0 %1232
      %1235 = vset.pattern.permute.xlu0 4
      %1236 = vperm.xlu0 %1235, %v463
      %v1237 = vpop.permute.xlu0 %1236
      %1239 = vset.pattern.permute.xlu0 4
      %1240 = vperm.xlu0 %1239, %v464
      %v1241 = vpop.permute.xlu0 %1240
      %1243 = vset.pattern.permute.xlu0 4
      %1244 = vperm.xlu0 %1243, %v465
      %v1245 = vpop.permute.xlu0 %1244
      %1247 = vset.pattern.permute.xlu0 4
      %1248 = vperm.xlu0 %1247, %v466
      %v1249 = vpop.permute.xlu0 %1248
      %v1251 = vsel %vm1171, %v1189, 0.0
      %v1252 = vsel %vm1172, %v1193, 0.0
      %v1253 = vsel %vm1173, %v1197, 0.0
      %v1254 = vsel %vm1174, %v1201, 0.0
      %v1255 = vsel %vm1175, %v1205, 0.0
      %v1256 = vsel %vm1176, %v1209, 0.0
      %v1257 = vsel %vm1177, %v1213, 0.0
      %v1258 = vsel %vm1178, %v1217, 0.0
      %v1259 = vsel %vm1179, %v1221, 0.0
      %v1260 = vsel %vm1180, %v1225, 0.0
      %v1261 = vsel %vm1181, %v1229, 0.0
      %v1262 = vsel %vm1182, %v1233, 0.0
      %v1263 = vsel %vm1183, %v1237, 0.0
      %v1264 = vsel %vm1184, %v1241, 0.0
      %v1265 = vsel %vm1185, %v1245, 0.0
      %v1266 = vsel %vm1186, %v1249, 0.0
      %v1267 = vadd.f32 %v1107, %v1251
      %v1268 = vadd.f32 %v1108, %v1252
      %v1269 = vadd.f32 %v1109, %v1253
      %v1270 = vadd.f32 %v1110, %v1254
      %v1271 = vadd.f32 %v1111, %v1255
      %v1272 = vadd.f32 %v1112, %v1256
      %v1273 = vadd.f32 %v1113, %v1257
      %v1274 = vadd.f32 %v1114, %v1258
      %v1275 = vadd.f32 %v1115, %v1259
      %v1276 = vadd.f32 %v1116, %v1260
      %v1277 = vadd.f32 %v1117, %v1261
      %v1278 = vadd.f32 %v1118, %v1262
      %v1279 = vadd.f32 %v1119, %v1263
      %v1280 = vadd.f32 %v1120, %v1264
      %v1281 = vadd.f32 %v1121, %v1265
      %v1282 = vadd.f32 %v1122, %v1266
      %1283 = vset.pattern.permute.xlu0 5
      %1284 = vperm.xlu0 %1283, %v419
      %v1285 = vpop.permute.xlu0 %1284
      %1286 = vset.pattern.permute.xlu0 5
      %1287 = vperm.xlu0 %1286, %v420
      %v1288 = vpop.permute.xlu0 %1287
      %1289 = vset.pattern.permute.xlu0 5
      %1290 = vperm.xlu0 %1289, %v421
      %v1291 = vpop.permute.xlu0 %1290
      %1292 = vset.pattern.permute.xlu0 5
      %1293 = vperm.xlu0 %1292, %v422
      %v1294 = vpop.permute.xlu0 %1293
      %1295 = vset.pattern.permute.xlu0 5
      %1296 = vperm.xlu0 %1295, %v423
      %v1297 = vpop.permute.xlu0 %1296
      %1298 = vset.pattern.permute.xlu0 5
      %1299 = vperm.xlu0 %1298, %v424
      %v1300 = vpop.permute.xlu0 %1299
      %1301 = vset.pattern.permute.xlu0 5
      %1302 = vperm.xlu0 %1301, %v425
      %v1303 = vpop.permute.xlu0 %1302
      %1304 = vset.pattern.permute.xlu0 5
      %1305 = vperm.xlu0 %1304, %v426
      %v1306 = vpop.permute.xlu0 %1305
      %1307 = vset.pattern.permute.xlu0 5
      %1308 = vperm.xlu0 %1307, %v427
      %v1309 = vpop.permute.xlu0 %1308
      %1310 = vset.pattern.permute.xlu0 5
      %1311 = vperm.xlu0 %1310, %v428
      %v1312 = vpop.permute.xlu0 %1311
      %1313 = vset.pattern.permute.xlu0 5
      %1314 = vperm.xlu0 %1313, %v429
      %v1315 = vpop.permute.xlu0 %1314
      %1316 = vset.pattern.permute.xlu0 5
      %1317 = vperm.xlu0 %1316, %v430
      %v1318 = vpop.permute.xlu0 %1317
      %1319 = vset.pattern.permute.xlu0 5
      %1320 = vperm.xlu0 %1319, %v431
      %v1321 = vpop.permute.xlu0 %1320
      %1322 = vset.pattern.permute.xlu0 5
      %1323 = vperm.xlu0 %1322, %v432
      %v1324 = vpop.permute.xlu0 %1323
      %1325 = vset.pattern.permute.xlu0 5
      %1326 = vperm.xlu0 %1325, %v433
      %v1327 = vpop.permute.xlu0 %1326
      %1328 = vset.pattern.permute.xlu0 5
      %1329 = vperm.xlu0 %1328, %v434
      %v1330 = vpop.permute.xlu0 %1329
      %vm1331 = vcmp.eq.s32.totalorder %v1285, %v418
      %vm1332 = vcmp.eq.s32.totalorder %v1288, %v418
      %vm1333 = vcmp.eq.s32.totalorder %v1291, %v418
      %vm1334 = vcmp.eq.s32.totalorder %v1294, %v418
      %vm1335 = vcmp.eq.s32.totalorder %v1297, %v418
      %vm1336 = vcmp.eq.s32.totalorder %v1300, %v418
      %vm1337 = vcmp.eq.s32.totalorder %v1303, %v418
      %vm1338 = vcmp.eq.s32.totalorder %v1306, %v418
      %vm1339 = vcmp.eq.s32.totalorder %v1309, %v418
      %vm1340 = vcmp.eq.s32.totalorder %v1312, %v418
      %vm1341 = vcmp.eq.s32.totalorder %v1315, %v418
      %vm1342 = vcmp.eq.s32.totalorder %v1318, %v418
      %vm1343 = vcmp.eq.s32.totalorder %v1321, %v418
      %vm1344 = vcmp.eq.s32.totalorder %v1324, %v418
      %vm1345 = vcmp.eq.s32.totalorder %v1327, %v418
      %vm1346 = vcmp.eq.s32.totalorder %v1330, %v418
      %1347 = vset.pattern.permute.xlu0 5
      %1348 = vperm.xlu0 %1347, %v451
      %v1349 = vpop.permute.xlu0 %1348
      %1351 = vset.pattern.permute.xlu0 5
      %1352 = vperm.xlu0 %1351, %v452
      %v1353 = vpop.permute.xlu0 %1352
      %1355 = vset.pattern.permute.xlu0 5
      %1356 = vperm.xlu0 %1355, %v453
      %v1357 = vpop.permute.xlu0 %1356
      %1359 = vset.pattern.permute.xlu0 5
      %1360 = vperm.xlu0 %1359, %v454
      %v1361 = vpop.permute.xlu0 %1360
      %1363 = vset.pattern.permute.xlu0 5
      %1364 = vperm.xlu0 %1363, %v455
      %v1365 = vpop.permute.xlu0 %1364
      %1367 = vset.pattern.permute.xlu0 5
      %1368 = vperm.xlu0 %1367, %v456
      %v1369 = vpop.permute.xlu0 %1368
      %1371 = vset.pattern.permute.xlu0 5
      %1372 = vperm.xlu0 %1371, %v457
      %v1373 = vpop.permute.xlu0 %1372
      %1375 = vset.pattern.permute.xlu0 5
      %1376 = vperm.xlu0 %1375, %v458
      %v1377 = vpop.permute.xlu0 %1376
      %1379 = vset.pattern.permute.xlu0 5
      %1380 = vperm.xlu0 %1379, %v459
      %v1381 = vpop.permute.xlu0 %1380
      %1383 = vset.pattern.permute.xlu0 5
      %1384 = vperm.xlu0 %1383, %v460
      %v1385 = vpop.permute.xlu0 %1384
      %1387 = vset.pattern.permute.xlu0 5
      %1388 = vperm.xlu0 %1387, %v461
      %v1389 = vpop.permute.xlu0 %1388
      %1391 = vset.pattern.permute.xlu0 5
      %1392 = vperm.xlu0 %1391, %v462
      %v1393 = vpop.permute.xlu0 %1392
      %1395 = vset.pattern.permute.xlu0 5
      %1396 = vperm.xlu0 %1395, %v463
      %v1397 = vpop.permute.xlu0 %1396
      %1399 = vset.pattern.permute.xlu0 5
      %1400 = vperm.xlu0 %1399, %v464
      %v1401 = vpop.permute.xlu0 %1400
      %1403 = vset.pattern.permute.xlu0 5
      %1404 = vperm.xlu0 %1403, %v465
      %v1405 = vpop.permute.xlu0 %1404
      %1407 = vset.pattern.permute.xlu0 5
      %1408 = vperm.xlu0 %1407, %v466
      %v1409 = vpop.permute.xlu0 %1408
      %v1411 = vsel %vm1331, %v1349, 0.0
      %v1412 = vsel %vm1332, %v1353, 0.0
      %v1413 = vsel %vm1333, %v1357, 0.0
      %v1414 = vsel %vm1334, %v1361, 0.0
      %v1415 = vsel %vm1335, %v1365, 0.0
      %v1416 = vsel %vm1336, %v1369, 0.0
      %v1417 = vsel %vm1337, %v1373, 0.0
      %v1418 = vsel %vm1338, %v1377, 0.0
      %v1419 = vsel %vm1339, %v1381, 0.0
      %v1420 = vsel %vm1340, %v1385, 0.0
      %v1421 = vsel %vm1341, %v1389, 0.0
      %v1422 = vsel %vm1342, %v1393, 0.0
      %v1423 = vsel %vm1343, %v1397, 0.0
      %v1424 = vsel %vm1344, %v1401, 0.0
      %v1425 = vsel %vm1345, %v1405, 0.0
      %v1426 = vsel %vm1346, %v1409, 0.0
      %v1427 = vadd.f32 %v1267, %v1411
      %v1428 = vadd.f32 %v1268, %v1412
      %v1429 = vadd.f32 %v1269, %v1413
      %v1430 = vadd.f32 %v1270, %v1414
      %v1431 = vadd.f32 %v1271, %v1415
      %v1432 = vadd.f32 %v1272, %v1416
      %v1433 = vadd.f32 %v1273, %v1417
      %v1434 = vadd.f32 %v1274, %v1418
      %v1435 = vadd.f32 %v1275, %v1419
      %v1436 = vadd.f32 %v1276, %v1420
      %v1437 = vadd.f32 %v1277, %v1421
      %v1438 = vadd.f32 %v1278, %v1422
      %v1439 = vadd.f32 %v1279, %v1423
      %v1440 = vadd.f32 %v1280, %v1424
      %v1441 = vadd.f32 %v1281, %v1425
      %v1442 = vadd.f32 %v1282, %v1426
      %1443 = vset.pattern.permute.xlu0 6
      %1444 = vperm.xlu0 %1443, %v419
      %v1445 = vpop.permute.xlu0 %1444
      %1446 = vset.pattern.permute.xlu0 6
      %1447 = vperm.xlu0 %1446, %v420
      %v1448 = vpop.permute.xlu0 %1447
      %1449 = vset.pattern.permute.xlu0 6
      %1450 = vperm.xlu0 %1449, %v421
      %v1451 = vpop.permute.xlu0 %1450
      %1452 = vset.pattern.permute.xlu0 6
      %1453 = vperm.xlu0 %1452, %v422
      %v1454 = vpop.permute.xlu0 %1453
      %1455 = vset.pattern.permute.xlu0 6
      %1456 = vperm.xlu0 %1455, %v423
      %v1457 = vpop.permute.xlu0 %1456
      %1458 = vset.pattern.permute.xlu0 6
      %1459 = vperm.xlu0 %1458, %v424
      %v1460 = vpop.permute.xlu0 %1459
      %1461 = vset.pattern.permute.xlu0 6
      %1462 = vperm.xlu0 %1461, %v425
      %v1463 = vpop.permute.xlu0 %1462
      %1464 = vset.pattern.permute.xlu0 6
      %1465 = vperm.xlu0 %1464, %v426
      %v1466 = vpop.permute.xlu0 %1465
      %1467 = vset.pattern.permute.xlu0 6
      %1468 = vperm.xlu0 %1467, %v427
      %v1469 = vpop.permute.xlu0 %1468
      %1470 = vset.pattern.permute.xlu0 6
      %1471 = vperm.xlu0 %1470, %v428
      %v1472 = vpop.permute.xlu0 %1471
      %1473 = vset.pattern.permute.xlu0 6
      %1474 = vperm.xlu0 %1473, %v429
      %v1475 = vpop.permute.xlu0 %1474
      %1476 = vset.pattern.permute.xlu0 6
      %1477 = vperm.xlu0 %1476, %v430
      %v1478 = vpop.permute.xlu0 %1477
      %1479 = vset.pattern.permute.xlu0 6
      %1480 = vperm.xlu0 %1479, %v431
      %v1481 = vpop.permute.xlu0 %1480
      %1482 = vset.pattern.permute.xlu0 6
      %1483 = vperm.xlu0 %1482, %v432
      %v1484 = vpop.permute.xlu0 %1483
      %1485 = vset.pattern.permute.xlu0 6
      %1486 = vperm.xlu0 %1485, %v433
      %v1487 = vpop.permute.xlu0 %1486
      %1488 = vset.pattern.permute.xlu0 6
      %1489 = vperm.xlu0 %1488, %v434
      %v1490 = vpop.permute.xlu0 %1489
      %vm1491 = vcmp.eq.s32.totalorder %v1445, %v418
      %vm1492 = vcmp.eq.s32.totalorder %v1448, %v418
      %vm1493 = vcmp.eq.s32.totalorder %v1451, %v418
      %vm1494 = vcmp.eq.s32.totalorder %v1454, %v418
      %vm1495 = vcmp.eq.s32.totalorder %v1457, %v418
      %vm1496 = vcmp.eq.s32.totalorder %v1460, %v418
      %vm1497 = vcmp.eq.s32.totalorder %v1463, %v418
      %vm1498 = vcmp.eq.s32.totalorder %v1466, %v418
      %vm1499 = vcmp.eq.s32.totalorder %v1469, %v418
      %vm1500 = vcmp.eq.s32.totalorder %v1472, %v418
      %vm1501 = vcmp.eq.s32.totalorder %v1475, %v418
      %vm1502 = vcmp.eq.s32.totalorder %v1478, %v418
      %vm1503 = vcmp.eq.s32.totalorder %v1481, %v418
      %vm1504 = vcmp.eq.s32.totalorder %v1484, %v418
      %vm1505 = vcmp.eq.s32.totalorder %v1487, %v418
      %vm1506 = vcmp.eq.s32.totalorder %v1490, %v418
      %1507 = vset.pattern.permute.xlu0 6
      %1508 = vperm.xlu0 %1507, %v451
      %v1509 = vpop.permute.xlu0 %1508
      %1511 = vset.pattern.permute.xlu0 6
      %1512 = vperm.xlu0 %1511, %v452
      %v1513 = vpop.permute.xlu0 %1512
      %1515 = vset.pattern.permute.xlu0 6
      %1516 = vperm.xlu0 %1515, %v453
      %v1517 = vpop.permute.xlu0 %1516
      %1519 = vset.pattern.permute.xlu0 6
      %1520 = vperm.xlu0 %1519, %v454
      %v1521 = vpop.permute.xlu0 %1520
      %1523 = vset.pattern.permute.xlu0 6
      %1524 = vperm.xlu0 %1523, %v455
      %v1525 = vpop.permute.xlu0 %1524
      %1527 = vset.pattern.permute.xlu0 6
      %1528 = vperm.xlu0 %1527, %v456
      %v1529 = vpop.permute.xlu0 %1528
      %1531 = vset.pattern.permute.xlu0 6
      %1532 = vperm.xlu0 %1531, %v457
      %v1533 = vpop.permute.xlu0 %1532
      %1535 = vset.pattern.permute.xlu0 6
      %1536 = vperm.xlu0 %1535, %v458
      %v1537 = vpop.permute.xlu0 %1536
      %1539 = vset.pattern.permute.xlu0 6
      %1540 = vperm.xlu0 %1539, %v459
      %v1541 = vpop.permute.xlu0 %1540
      %1543 = vset.pattern.permute.xlu0 6
      %1544 = vperm.xlu0 %1543, %v460
      %v1545 = vpop.permute.xlu0 %1544
      %1547 = vset.pattern.permute.xlu0 6
      %1548 = vperm.xlu0 %1547, %v461
      %v1549 = vpop.permute.xlu0 %1548
      %1551 = vset.pattern.permute.xlu0 6
      %1552 = vperm.xlu0 %1551, %v462
      %v1553 = vpop.permute.xlu0 %1552
      %1555 = vset.pattern.permute.xlu0 6
      %1556 = vperm.xlu0 %1555, %v463
      %v1557 = vpop.permute.xlu0 %1556
      %1559 = vset.pattern.permute.xlu0 6
      %1560 = vperm.xlu0 %1559, %v464
      %v1561 = vpop.permute.xlu0 %1560
      %1563 = vset.pattern.permute.xlu0 6
      %1564 = vperm.xlu0 %1563, %v465
      %v1565 = vpop.permute.xlu0 %1564
      %1567 = vset.pattern.permute.xlu0 6
      %1568 = vperm.xlu0 %1567, %v466
      %v1569 = vpop.permute.xlu0 %1568
      %v1571 = vsel %vm1491, %v1509, 0.0
      %v1572 = vsel %vm1492, %v1513, 0.0
      %v1573 = vsel %vm1493, %v1517, 0.0
      %v1574 = vsel %vm1494, %v1521, 0.0
      %v1575 = vsel %vm1495, %v1525, 0.0
      %v1576 = vsel %vm1496, %v1529, 0.0
      %v1577 = vsel %vm1497, %v1533, 0.0
      %v1578 = vsel %vm1498, %v1537, 0.0
      %v1579 = vsel %vm1499, %v1541, 0.0
      %v1580 = vsel %vm1500, %v1545, 0.0
      %v1581 = vsel %vm1501, %v1549, 0.0
      %v1582 = vsel %vm1502, %v1553, 0.0
      %v1583 = vsel %vm1503, %v1557, 0.0
      %v1584 = vsel %vm1504, %v1561, 0.0
      %v1585 = vsel %vm1505, %v1565, 0.0
      %v1586 = vsel %vm1506, %v1569, 0.0
      %v1587 = vadd.f32 %v1427, %v1571
      %v1588 = vadd.f32 %v1428, %v1572
      %v1589 = vadd.f32 %v1429, %v1573
      %v1590 = vadd.f32 %v1430, %v1574
      %v1591 = vadd.f32 %v1431, %v1575
      %v1592 = vadd.f32 %v1432, %v1576
      %v1593 = vadd.f32 %v1433, %v1577
      %v1594 = vadd.f32 %v1434, %v1578
      %v1595 = vadd.f32 %v1435, %v1579
      %v1596 = vadd.f32 %v1436, %v1580
      %v1597 = vadd.f32 %v1437, %v1581
      %v1598 = vadd.f32 %v1438, %v1582
      %v1599 = vadd.f32 %v1439, %v1583
      %v1600 = vadd.f32 %v1440, %v1584
      %v1601 = vadd.f32 %v1441, %v1585
      %v1602 = vadd.f32 %v1442, %v1586
      %1603 = vset.pattern.permute.xlu0 7
      %1604 = vperm.xlu0 %1603, %v419
      %v1605 = vpop.permute.xlu0 %1604
      %1606 = vset.pattern.permute.xlu0 7
      %1607 = vperm.xlu0 %1606, %v420
      %v1608 = vpop.permute.xlu0 %1607
      %1609 = vset.pattern.permute.xlu0 7
      %1610 = vperm.xlu0 %1609, %v421
      %v1611 = vpop.permute.xlu0 %1610
      %1612 = vset.pattern.permute.xlu0 7
      %1613 = vperm.xlu0 %1612, %v422
      %v1614 = vpop.permute.xlu0 %1613
      %1615 = vset.pattern.permute.xlu0 7
      %1616 = vperm.xlu0 %1615, %v423
      %v1617 = vpop.permute.xlu0 %1616
      %1618 = vset.pattern.permute.xlu0 7
      %1619 = vperm.xlu0 %1618, %v424
      %v1620 = vpop.permute.xlu0 %1619
      %1621 = vset.pattern.permute.xlu0 7
      %1622 = vperm.xlu0 %1621, %v425
      %v1623 = vpop.permute.xlu0 %1622
      %1624 = vset.pattern.permute.xlu0 7
      %1625 = vperm.xlu0 %1624, %v426
      %v1626 = vpop.permute.xlu0 %1625
      %1627 = vset.pattern.permute.xlu0 7
      %1628 = vperm.xlu0 %1627, %v427
      %v1629 = vpop.permute.xlu0 %1628
      %1630 = vset.pattern.permute.xlu0 7
      %1631 = vperm.xlu0 %1630, %v428
      %v1632 = vpop.permute.xlu0 %1631
      %1633 = vset.pattern.permute.xlu0 7
      %1634 = vperm.xlu0 %1633, %v429
      %v1635 = vpop.permute.xlu0 %1634
      %1636 = vset.pattern.permute.xlu0 7
      %1637 = vperm.xlu0 %1636, %v430
      %v1638 = vpop.permute.xlu0 %1637
      %1639 = vset.pattern.permute.xlu0 7
      %1640 = vperm.xlu0 %1639, %v431
      %v1641 = vpop.permute.xlu0 %1640
      %1642 = vset.pattern.permute.xlu0 7
      %1643 = vperm.xlu0 %1642, %v432
      %v1644 = vpop.permute.xlu0 %1643
      %1645 = vset.pattern.permute.xlu0 7
      %1646 = vperm.xlu0 %1645, %v433
      %v1647 = vpop.permute.xlu0 %1646
      %1648 = vset.pattern.permute.xlu0 7
      %1649 = vperm.xlu0 %1648, %v434
      %v1650 = vpop.permute.xlu0 %1649
      %vm1651 = vcmp.eq.s32.totalorder %v1605, %v418
      %vm1652 = vcmp.eq.s32.totalorder %v1608, %v418
      %vm1653 = vcmp.eq.s32.totalorder %v1611, %v418
      %vm1654 = vcmp.eq.s32.totalorder %v1614, %v418
      %vm1655 = vcmp.eq.s32.totalorder %v1617, %v418
      %vm1656 = vcmp.eq.s32.totalorder %v1620, %v418
      %vm1657 = vcmp.eq.s32.totalorder %v1623, %v418
      %vm1658 = vcmp.eq.s32.totalorder %v1626, %v418
      %vm1659 = vcmp.eq.s32.totalorder %v1629, %v418
      %vm1660 = vcmp.eq.s32.totalorder %v1632, %v418
      %vm1661 = vcmp.eq.s32.totalorder %v1635, %v418
      %vm1662 = vcmp.eq.s32.totalorder %v1638, %v418
      %vm1663 = vcmp.eq.s32.totalorder %v1641, %v418
      %vm1664 = vcmp.eq.s32.totalorder %v1644, %v418
      %vm1665 = vcmp.eq.s32.totalorder %v1647, %v418
      %vm1666 = vcmp.eq.s32.totalorder %v1650, %v418
      %1667 = vset.pattern.permute.xlu0 7
      %1668 = vperm.xlu0 %1667, %v451
      %v1669 = vpop.permute.xlu0 %1668
      %1671 = vset.pattern.permute.xlu0 7
      %1672 = vperm.xlu0 %1671, %v452
      %v1673 = vpop.permute.xlu0 %1672
      %1675 = vset.pattern.permute.xlu0 7
      %1676 = vperm.xlu0 %1675, %v453
      %v1677 = vpop.permute.xlu0 %1676
      %1679 = vset.pattern.permute.xlu0 7
      %1680 = vperm.xlu0 %1679, %v454
      %v1681 = vpop.permute.xlu0 %1680
      %1683 = vset.pattern.permute.xlu0 7
      %1684 = vperm.xlu0 %1683, %v455
      %v1685 = vpop.permute.xlu0 %1684
      %1687 = vset.pattern.permute.xlu0 7
      %1688 = vperm.xlu0 %1687, %v456
      %v1689 = vpop.permute.xlu0 %1688
      %1691 = vset.pattern.permute.xlu0 7
      %1692 = vperm.xlu0 %1691, %v457
      %v1693 = vpop.permute.xlu0 %1692
      %1695 = vset.pattern.permute.xlu0 7
      %1696 = vperm.xlu0 %1695, %v458
      %v1697 = vpop.permute.xlu0 %1696
      %1699 = vset.pattern.permute.xlu0 7
      %1700 = vperm.xlu0 %1699, %v459
      %v1701 = vpop.permute.xlu0 %1700
      %1703 = vset.pattern.permute.xlu0 7
      %1704 = vperm.xlu0 %1703, %v460
      %v1705 = vpop.permute.xlu0 %1704
      %1707 = vset.pattern.permute.xlu0 7
      %1708 = vperm.xlu0 %1707, %v461
      %v1709 = vpop.permute.xlu0 %1708
      %1711 = vset.pattern.permute.xlu0 7
      %1712 = vperm.xlu0 %1711, %v462
      %v1713 = vpop.permute.xlu0 %1712
      %1715 = vset.pattern.permute.xlu0 7
      %1716 = vperm.xlu0 %1715, %v463
      %v1717 = vpop.permute.xlu0 %1716
      %1719 = vset.pattern.permute.xlu0 7
      %1720 = vperm.xlu0 %1719, %v464
      %v1721 = vpop.permute.xlu0 %1720
      %1723 = vset.pattern.permute.xlu0 7
      %1724 = vperm.xlu0 %1723, %v465
      %v1725 = vpop.permute.xlu0 %1724
      %1727 = vset.pattern.permute.xlu0 7
      %1728 = vperm.xlu0 %1727, %v466
      %v1729 = vpop.permute.xlu0 %1728
      %v1731 = vsel %vm1651, %v1669, 0.0
      %v1732 = vsel %vm1652, %v1673, 0.0
      %v1733 = vsel %vm1653, %v1677, 0.0
      %v1734 = vsel %vm1654, %v1681, 0.0
      %v1735 = vsel %vm1655, %v1685, 0.0
      %v1736 = vsel %vm1656, %v1689, 0.0
      %v1737 = vsel %vm1657, %v1693, 0.0
      %v1738 = vsel %vm1658, %v1697, 0.0
      %v1739 = vsel %vm1659, %v1701, 0.0
      %v1740 = vsel %vm1660, %v1705, 0.0
      %v1741 = vsel %vm1661, %v1709, 0.0
      %v1742 = vsel %vm1662, %v1713, 0.0
      %v1743 = vsel %vm1663, %v1717, 0.0
      %v1744 = vsel %vm1664, %v1721, 0.0
      %v1745 = vsel %vm1665, %v1725, 0.0
      %v1746 = vsel %vm1666, %v1729, 0.0
      %v1747 = vadd.f32 %v1587, %v1731
      %v1748 = vadd.f32 %v1588, %v1732
      %v1749 = vadd.f32 %v1589, %v1733
      %v1750 = vadd.f32 %v1590, %v1734
      %v1751 = vadd.f32 %v1591, %v1735
      %v1752 = vadd.f32 %v1592, %v1736
      %v1753 = vadd.f32 %v1593, %v1737
      %v1754 = vadd.f32 %v1594, %v1738
      %v1755 = vadd.f32 %v1595, %v1739
      %v1756 = vadd.f32 %v1596, %v1740
      %v1757 = vadd.f32 %v1597, %v1741
      %v1758 = vadd.f32 %v1598, %v1742
      %v1759 = vadd.f32 %v1599, %v1743
      %v1760 = vadd.f32 %v1600, %v1744
      %v1761 = vadd.f32 %v1601, %v1745
      %v1762 = vadd.f32 %v1602, %v1746
      %v1763 = vpack.c.bf16 %v1748, %v1747
      %v1764 = vpack.c.bf16 %v1750, %v1749
      %v1765 = vpack.c.bf16 %v1752, %v1751
      %v1766 = vpack.c.bf16 %v1754, %v1753
      %v1767 = vpack.c.bf16 %v1756, %v1755
      %v1768 = vpack.c.bf16 %v1758, %v1757
      %v1769 = vpack.c.bf16 %v1760, %v1759
      %v1770 = vpack.c.bf16 %v1762, %v1761
      %v1771 = vld [vmem:[%s273] sm:$0xf]
      %v1772 = vld [vmem:[%s273 + $0x4] sm:$0xf]
      %v1773 = vld [vmem:[%s273 + $0x8] sm:$0xf]
      %v1774 = vld [vmem:[%s273 + $0xc] sm:$0xf]
      %v1775 = vld [vmem:[%s273 + $0x10] sm:$0xf]
      %v1776 = vld [vmem:[%s273 + $0x14] sm:$0xf]
      %v1777 = vld [vmem:[%s273 + $0x18] sm:$0xf]
      %v1778 = vld [vmem:[%s273 + $0x1c] sm:$0xf]
      %v1779 = vld [vmem:[%s273 + $0x20] sm:$0xf]
      %v1780 = vld [vmem:[%s273 + $0x24] sm:$0xf]
      %v1781 = vld [vmem:[%s273 + $0x28] sm:$0xf]
      %v1782 = vld [vmem:[%s273 + $0x2c] sm:$0xf]
      %v1783 = vld [vmem:[%s273 + $0x30] sm:$0xf]
      %v1784 = vld [vmem:[%s273 + $0x34] sm:$0xf]
      %v1785 = vld [vmem:[%s273 + $0x38] sm:$0xf]
      %v1786 = vld [vmem:[%s273 + $0x3c] sm:$0xf]
      %v1803 = vunpack.c.l.b16 %v1771
      %v1804 = vunpack.c.l.b16 %v1772
      %v1805 = vunpack.c.l.b16 %v1773
      %v1806 = vunpack.c.l.b16 %v1774
      %v1807 = vunpack.c.l.b16 %v1775
      %v1808 = vunpack.c.l.b16 %v1776
      %v1809 = vunpack.c.l.b16 %v1777
      %v1810 = vunpack.c.l.b16 %v1778
      %v1811 = vunpack.c.l.b16 %v1779
      %v1812 = vunpack.c.l.b16 %v1780
      %v1813 = vunpack.c.l.b16 %v1781
      %v1814 = vunpack.c.l.b16 %v1782
      %v1815 = vunpack.c.l.b16 %v1783
      %v1816 = vunpack.c.l.b16 %v1784
      %v1817 = vunpack.c.l.b16 %v1785
      %v1818 = vunpack.c.l.b16 %v1786
      %v1819 = vpack.c.b16 %v1804, %v1803
      %v1820 = vpack.c.b16 %v1806, %v1805
      %v1821 = vpack.c.b16 %v1808, %v1807
      %v1822 = vpack.c.b16 %v1810, %v1809
      %v1823 = vpack.c.b16 %v1812, %v1811
      %v1824 = vpack.c.b16 %v1814, %v1813
      %v1825 = vpack.c.b16 %v1816, %v1815
      %v1826 = vpack.c.b16 %v1818, %v1817
      %1835 = vmatpush.bf16.msra.mxu0 %v1826
      %1836 = vmatpush.bf16.msra.mxu0 %v1825
      %1837 = vmatpush.bf16.msra.mxu0 %v1824
      %1838 = vmatpush.bf16.msra.mxu0 %v1823
      %1839 = vmatpush.bf16.msra.mxu0 %v1822
      %1840 = vmatpush.bf16.msra.mxu0 %v1821
      %1841 = vmatpush.bf16.msra.mxu0 %v1820
      %1842 = vmatpush.bf16.msra.mxu0 %v1819
      %1843 = vmatmul.bf16.gmra.mxu0 %v1763
      %v1844 = vpop.f32.mrf.mxu0
      %v1845 = vadd.f32 0.0, %v1844
      %v1846 = vpop.f32.mrf.mxu0
      %v1847 = vadd.f32 0.0, %v1846
      %1848 = vmatmul.bf16.gmra.mxu0 %v1764
      %v1849 = vpop.f32.mrf.mxu0
      %v1850 = vadd.f32 0.0, %v1849
      %v1851 = vpop.f32.mrf.mxu0
      %v1852 = vadd.f32 0.0, %v1851
      %1853 = vmatmul.bf16.gmra.mxu0 %v1765
      %v1854 = vpop.f32.mrf.mxu0
      %v1855 = vadd.f32 0.0, %v1854
      %v1856 = vpop.f32.mrf.mxu0
      %v1857 = vadd.f32 0.0, %v1856
      %1858 = vmatmul.bf16.gmra.mxu0 %v1766
      %v1859 = vpop.f32.mrf.mxu0
      %v1860 = vadd.f32 0.0, %v1859
      %v1861 = vpop.f32.mrf.mxu0
      %v1862 = vadd.f32 0.0, %v1861
      %1863 = vmatmul.bf16.gmra.mxu0 %v1767
      %v1864 = vpop.f32.mrf.mxu0
      %v1865 = vadd.f32 0.0, %v1864
      %v1866 = vpop.f32.mrf.mxu0
      %v1867 = vadd.f32 0.0, %v1866
      %1868 = vmatmul.bf16.gmra.mxu0 %v1768
      %v1869 = vpop.f32.mrf.mxu0
      %v1870 = vadd.f32 0.0, %v1869
      %v1871 = vpop.f32.mrf.mxu0
      %v1872 = vadd.f32 0.0, %v1871
      %1873 = vmatmul.bf16.gmra.mxu0 %v1769
      %v1874 = vpop.f32.mrf.mxu0
      %v1875 = vadd.f32 0.0, %v1874
      %v1876 = vpop.f32.mrf.mxu0
      %v1877 = vadd.f32 0.0, %v1876
      %1878 = vmatmul.bf16.gmra.mxu0 %v1770
      %v1879 = vpop.f32.mrf.mxu0
      %v1880 = vadd.f32 0.0, %v1879
      %v1881 = vpop.f32.mrf.mxu0
      %v1882 = vadd.f32 0.0, %v1881
      %1883 = vdwg.mxu0
      %s1884 = sld [smem:[#allocation4 + %s28]]
      %s1885 = smul.u32 %s1884, 128
      %s1886 = scalar_lea.vmem [#allocation2], %s1885
      %v1887 = vld [vmem:[%s1886] sm:$0xff]
      %v1888 = vld [vmem:[%s1886 + $0x8] sm:$0xff]
      %v1889 = vld [vmem:[%s1886 + $0x10] sm:$0xff]
      %v1890 = vld [vmem:[%s1886 + $0x18] sm:$0xff]
      %v1891 = vld [vmem:[%s1886 + $0x20] sm:$0xff]
      %v1892 = vld [vmem:[%s1886 + $0x28] sm:$0xff]
      %v1893 = vld [vmem:[%s1886 + $0x30] sm:$0xff]
      %v1894 = vld [vmem:[%s1886 + $0x38] sm:$0xff]
      %v1895 = vld [vmem:[%s1886 + $0x40] sm:$0xff]
      %v1896 = vld [vmem:[%s1886 + $0x48] sm:$0xff]
      %v1897 = vld [vmem:[%s1886 + $0x50] sm:$0xff]
      %v1898 = vld [vmem:[%s1886 + $0x58] sm:$0xff]
      %v1899 = vld [vmem:[%s1886 + $0x60] sm:$0xff]
      %v1900 = vld [vmem:[%s1886 + $0x68] sm:$0xff]
      %v1901 = vld [vmem:[%s1886 + $0x70] sm:$0xff]
      %v1902 = vld [vmem:[%s1886 + $0x78] sm:$0xff]
      %v1903 = vadd.f32 %v1887, %v1845
      %v1904 = vadd.f32 %v1888, %v1847
      %v1905 = vadd.f32 %v1889, %v1850
      %v1906 = vadd.f32 %v1890, %v1852
      %v1907 = vadd.f32 %v1891, %v1855
      %v1908 = vadd.f32 %v1892, %v1857
      %v1909 = vadd.f32 %v1893, %v1860
      %v1910 = vadd.f32 %v1894, %v1862
      %v1911 = vadd.f32 %v1895, %v1865
      %v1912 = vadd.f32 %v1896, %v1867
      %v1913 = vadd.f32 %v1897, %v1870
      %v1914 = vadd.f32 %v1898, %v1872
      %v1915 = vadd.f32 %v1899, %v1875
      %v1916 = vadd.f32 %v1900, %v1877
      %v1917 = vadd.f32 %v1901, %v1880
      %v1918 = vadd.f32 %v1902, %v1882
      %vm1919 = vcmask 64512
      %1920 = vst.msk [vmem:[%s1886] sm:$0xff] %vm1919, %v1903
      %1921 = vst.msk [vmem:[%s1886 + $0x8] sm:$0xff] %vm1919, %v1904
      %1922 = vst.msk [vmem:[%s1886 + $0x10] sm:$0xff] %vm1919, %v1905
      %1923 = vst.msk [vmem:[%s1886 + $0x18] sm:$0xff] %vm1919, %v1906
      %1924 = vst.msk [vmem:[%s1886 + $0x20] sm:$0xff] %vm1919, %v1907
      %1925 = vst.msk [vmem:[%s1886 + $0x28] sm:$0xff] %vm1919, %v1908
      %1926 = vst.msk [vmem:[%s1886 + $0x30] sm:$0xff] %vm1919, %v1909
      %1927 = vst.msk [vmem:[%s1886 + $0x38] sm:$0xff] %vm1919, %v1910
      %1928 = vst.msk [vmem:[%s1886 + $0x40] sm:$0xff] %vm1919, %v1911
      %1929 = vst.msk [vmem:[%s1886 + $0x48] sm:$0xff] %vm1919, %v1912
      %1930 = vst.msk [vmem:[%s1886 + $0x50] sm:$0xff] %vm1919, %v1913
      %1931 = vst.msk [vmem:[%s1886 + $0x58] sm:$0xff] %vm1919, %v1914
      %1932 = vst.msk [vmem:[%s1886 + $0x60] sm:$0xff] %vm1919, %v1915
      %1933 = vst.msk [vmem:[%s1886 + $0x68] sm:$0xff] %vm1919, %v1916
      %1934 = vst.msk [vmem:[%s1886 + $0x70] sm:$0xff] %vm1919, %v1917
      %1935 = vst.msk [vmem:[%s1886 + $0x78] sm:$0xff] %vm1919, %v1918
      %p1936 = scmp.eq.s32.totalorder %s28, 7
      // Predicated region
      $region37: #{_lambda_.3} parent=31 // pred_check
        %p1937 = pneg %p1936
      $region38: #{_lambda_.3} parent=31 // pred_check_branch
        %1939 = sbr.rel (%p1937) target = $region40
      $region39: #{_lambda_.3} parent=31 // pred_region
        %v1940 = vld [vmem:[#allocation2] sm:$0xff]
        %v1941 = vld [vmem:[#allocation2 + $0x8] sm:$0xff]
        %v1942 = vld [vmem:[#allocation2 + $0x10] sm:$0xff]
        %v1943 = vld [vmem:[#allocation2 + $0x18] sm:$0xff]
        %v1944 = vld [vmem:[#allocation2 + $0x20] sm:$0xff]
        %v1945 = vld [vmem:[#allocation2 + $0x28] sm:$0xff]
        %v1946 = vld [vmem:[#allocation2 + $0x30] sm:$0xff]
        %v1947 = vld [vmem:[#allocation2 + $0x38] sm:$0xff]
        %v1948 = vld [vmem:[#allocation2 + $0x40] sm:$0xff]
        %v1949 = vld [vmem:[#allocation2 + $0x48] sm:$0xff]
        %v1950 = vld [vmem:[#allocation2 + $0x50] sm:$0xff]
        %v1951 = vld [vmem:[#allocation2 + $0x58] sm:$0xff]
        %v1952 = vld [vmem:[#allocation2 + $0x60] sm:$0xff]
        %v1953 = vld [vmem:[#allocation2 + $0x68] sm:$0xff]
        %v1954 = vld [vmem:[#allocation2 + $0x70] sm:$0xff]
        %v1955 = vld [vmem:[#allocation2 + $0x78] sm:$0xff]
        %v1956 = vld [vmem:[#allocation2 + $0x80] sm:$0xff]
        %v1957 = vld [vmem:[#allocation2 + $0x88] sm:$0xff]
        %v1958 = vld [vmem:[#allocation2 + $0x90] sm:$0xff]
        %v1959 = vld [vmem:[#allocation2 + $0x98] sm:$0xff]
        %v1960 = vld [vmem:[#allocation2 + $0xa0] sm:$0xff]
        %v1961 = vld [vmem:[#allocation2 + $0xa8] sm:$0xff]
        %v1962 = vld [vmem:[#allocation2 + $0xb0] sm:$0xff]
        %v1963 = vld [vmem:[#allocation2 + $0xb8] sm:$0xff]
        %v1964 = vld [vmem:[#allocation2 + $0xc0] sm:$0xff]
        %v1965 = vld [vmem:[#allocation2 + $0xc8] sm:$0xff]
        %v1966 = vld [vmem:[#allocation2 + $0xd0] sm:$0xff]
        %v1967 = vld [vmem:[#allocation2 + $0xd8] sm:$0xff]
        %v1968 = vld [vmem:[#allocation2 + $0xe0] sm:$0xff]
        %v1969 = vld [vmem:[#allocation2 + $0xe8] sm:$0xff]
        %v1970 = vld [vmem:[#allocation2 + $0xf0] sm:$0xff]
        %v1971 = vld [vmem:[#allocation2 + $0xf8] sm:$0xff]
        %v1972 = vld [vmem:[#allocation2 + $0x100] sm:$0xff]
        %v1973 = vld [vmem:[#allocation2 + $0x108] sm:$0xff]
        %v1974 = vld [vmem:[#allocation2 + $0x110] sm:$0xff]
        %v1975 = vld [vmem:[#allocation2 + $0x118] sm:$0xff]
        %v1976 = vld [vmem:[#allocation2 + $0x120] sm:$0xff]
        %v1977 = vld [vmem:[#allocation2 + $0x128] sm:$0xff]
        %v1978 = vld [vmem:[#allocation2 + $0x130] sm:$0xff]
        %v1979 = vld [vmem:[#allocation2 + $0x138] sm:$0xff]
        %v1980 = vld [vmem:[#allocation2 + $0x140] sm:$0xff]
        %v1981 = vld [vmem:[#allocation2 + $0x148] sm:$0xff]
        %v1982 = vld [vmem:[#allocation2 + $0x150] sm:$0xff]
        %v1983 = vld [vmem:[#allocation2 + $0x158] sm:$0xff]
        %v1984 = vld [vmem:[#allocation2 + $0x160] sm:$0xff]
        %v1985 = vld [vmem:[#allocation2 + $0x168] sm:$0xff]
        %v1986 = vld [vmem:[#allocation2 + $0x170] sm:$0xff]
        %v1987 = vld [vmem:[#allocation2 + $0x178] sm:$0xff]
        %v1988 = vld [vmem:[#allocation2 + $0x180] sm:$0xff]
        %v1989 = vld [vmem:[#allocation2 + $0x188] sm:$0xff]
        %v1990 = vld [vmem:[#allocation2 + $0x190] sm:$0xff]
        %v1991 = vld [vmem:[#allocation2 + $0x198] sm:$0xff]
        %v1992 = vld [vmem:[#allocation2 + $0x1a0] sm:$0xff]
        %v1993 = vld [vmem:[#allocation2 + $0x1a8] sm:$0xff]
        %v1994 = vld [vmem:[#allocation2 + $0x1b0] sm:$0xff]
        %v1995 = vld [vmem:[#allocation2 + $0x1b8] sm:$0xff]
        %v1996 = vld [vmem:[#allocation2 + $0x1c0] sm:$0xff]
        %v1997 = vld [vmem:[#allocation2 + $0x1c8] sm:$0xff]
        %v1998 = vld [vmem:[#allocation2 + $0x1d0] sm:$0xff]
        %v1999 = vld [vmem:[#allocation2 + $0x1d8] sm:$0xff]
        %v2000 = vld [vmem:[#allocation2 + $0x1e0] sm:$0xff]
        %v2001 = vld [vmem:[#allocation2 + $0x1e8] sm:$0xff]
        %v2002 = vld [vmem:[#allocation2 + $0x1f0] sm:$0xff]
        %v2003 = vld [vmem:[#allocation2 + $0x1f8] sm:$0xff]
        %v2004 = vld [vmem:[#allocation2 + $0x200] sm:$0xff]
        %v2005 = vld [vmem:[#allocation2 + $0x208] sm:$0xff]
        %v2006 = vld [vmem:[#allocation2 + $0x210] sm:$0xff]
        %v2007 = vld [vmem:[#allocation2 + $0x218] sm:$0xff]
        %v2008 = vld [vmem:[#allocation2 + $0x220] sm:$0xff]
        %v2009 = vld [vmem:[#allocation2 + $0x228] sm:$0xff]
        %v2010 = vld [vmem:[#allocation2 + $0x230] sm:$0xff]
        %v2011 = vld [vmem:[#allocation2 + $0x238] sm:$0xff]
        %v2012 = vld [vmem:[#allocation2 + $0x240] sm:$0xff]
        %v2013 = vld [vmem:[#allocation2 + $0x248] sm:$0xff]
        %v2014 = vld [vmem:[#allocation2 + $0x250] sm:$0xff]
        %v2015 = vld [vmem:[#allocation2 + $0x258] sm:$0xff]
        %v2016 = vld [vmem:[#allocation2 + $0x260] sm:$0xff]
        %v2017 = vld [vmem:[#allocation2 + $0x268] sm:$0xff]
        %v2018 = vld [vmem:[#allocation2 + $0x270] sm:$0xff]
        %v2019 = vld [vmem:[#allocation2 + $0x278] sm:$0xff]
        %v2020 = vld [vmem:[#allocation2 + $0x280] sm:$0xff]
        %v2021 = vld [vmem:[#allocation2 + $0x288] sm:$0xff]
        %v2022 = vld [vmem:[#allocation2 + $0x290] sm:$0xff]
        %v2023 = vld [vmem:[#allocation2 + $0x298] sm:$0xff]
        %v2024 = vld [vmem:[#allocation2 + $0x2a0] sm:$0xff]
        %v2025 = vld [vmem:[#allocation2 + $0x2a8] sm:$0xff]
        %v2026 = vld [vmem:[#allocation2 + $0x2b0] sm:$0xff]
        %v2027 = vld [vmem:[#allocation2 + $0x2b8] sm:$0xff]
        %v2028 = vld [vmem:[#allocation2 + $0x2c0] sm:$0xff]
        %v2029 = vld [vmem:[#allocation2 + $0x2c8] sm:$0xff]
        %v2030 = vld [vmem:[#allocation2 + $0x2d0] sm:$0xff]
        %v2031 = vld [vmem:[#allocation2 + $0x2d8] sm:$0xff]
        %v2032 = vld [vmem:[#allocation2 + $0x2e0] sm:$0xff]
        %v2033 = vld [vmem:[#allocation2 + $0x2e8] sm:$0xff]
        %v2034 = vld [vmem:[#allocation2 + $0x2f0] sm:$0xff]
        %v2035 = vld [vmem:[#allocation2 + $0x2f8] sm:$0xff]
        %v2036 = vld [vmem:[#allocation2 + $0x300] sm:$0xff]
        %v2037 = vld [vmem:[#allocation2 + $0x308] sm:$0xff]
        %v2038 = vld [vmem:[#allocation2 + $0x310] sm:$0xff]
        %v2039 = vld [vmem:[#allocation2 + $0x318] sm:$0xff]
        %v2040 = vld [vmem:[#allocation2 + $0x320] sm:$0xff]
        %v2041 = vld [vmem:[#allocation2 + $0x328] sm:$0xff]
        %v2042 = vld [vmem:[#allocation2 + $0x330] sm:$0xff]
        %v2043 = vld [vmem:[#allocation2 + $0x338] sm:$0xff]
        %v2044 = vld [vmem:[#allocation2 + $0x340] sm:$0xff]
        %v2045 = vld [vmem:[#allocation2 + $0x348] sm:$0xff]
        %v2046 = vld [vmem:[#allocation2 + $0x350] sm:$0xff]
        %v2047 = vld [vmem:[#allocation2 + $0x358] sm:$0xff]
        %v2048 = vld [vmem:[#allocation2 + $0x360] sm:$0xff]
        %v2049 = vld [vmem:[#allocation2 + $0x368] sm:$0xff]
        %v2050 = vld [vmem:[#allocation2 + $0x370] sm:$0xff]
        %v2051 = vld [vmem:[#allocation2 + $0x378] sm:$0xff]
        %v2052 = vld [vmem:[#allocation2 + $0x380] sm:$0xff]
        %v2053 = vld [vmem:[#allocation2 + $0x388] sm:$0xff]
        %v2054 = vld [vmem:[#allocation2 + $0x390] sm:$0xff]
        %v2055 = vld [vmem:[#allocation2 + $0x398] sm:$0xff]
        %v2056 = vld [vmem:[#allocation2 + $0x3a0] sm:$0xff]
        %v2057 = vld [vmem:[#allocation2 + $0x3a8] sm:$0xff]
        %v2058 = vld [vmem:[#allocation2 + $0x3b0] sm:$0xff]
        %v2059 = vld [vmem:[#allocation2 + $0x3b8] sm:$0xff]
        %v2060 = vld [vmem:[#allocation2 + $0x3c0] sm:$0xff]
        %v2061 = vld [vmem:[#allocation2 + $0x3c8] sm:$0xff]
        %v2062 = vld [vmem:[#allocation2 + $0x3d0] sm:$0xff]
        %v2063 = vld [vmem:[#allocation2 + $0x3d8] sm:$0xff]
        %v2064 = vld [vmem:[#allocation2 + $0x3e0] sm:$0xff]
        %v2065 = vld [vmem:[#allocation2 + $0x3e8] sm:$0xff]
        %v2066 = vld [vmem:[#allocation2 + $0x3f0] sm:$0xff]
        %v2067 = vld [vmem:[#allocation2 + $0x3f8] sm:$0xff]
        %2068 = vst.msk [vmem:[%s279] sm:$0xff] %vm1919, %v1940
        %2069 = vst.msk [vmem:[%s279 + $0x8] sm:$0xff] %vm1919, %v1941
        %2070 = vst.msk [vmem:[%s279 + $0x10] sm:$0xff] %vm1919, %v1942
        %2071 = vst.msk [vmem:[%s279 + $0x18] sm:$0xff] %vm1919, %v1943
        %2072 = vst.msk [vmem:[%s279 + $0x20] sm:$0xff] %vm1919, %v1944
        %2073 = vst.msk [vmem:[%s279 + $0x28] sm:$0xff] %vm1919, %v1945
        %2074 = vst.msk [vmem:[%s279 + $0x30] sm:$0xff] %vm1919, %v1946
        %2075 = vst.msk [vmem:[%s279 + $0x38] sm:$0xff] %vm1919, %v1947
        %2076 = vst.msk [vmem:[%s279 + $0x40] sm:$0xff] %vm1919, %v1948
        %2077 = vst.msk [vmem:[%s279 + $0x48] sm:$0xff] %vm1919, %v1949
        %2078 = vst.msk [vmem:[%s279 + $0x50] sm:$0xff] %vm1919, %v1950
        %2079 = vst.msk [vmem:[%s279 + $0x58] sm:$0xff] %vm1919, %v1951
        %2080 = vst.msk [vmem:[%s279 + $0x60] sm:$0xff] %vm1919, %v1952
        %2081 = vst.msk [vmem:[%s279 + $0x68] sm:$0xff] %vm1919, %v1953
        %2082 = vst.msk [vmem:[%s279 + $0x70] sm:$0xff] %vm1919, %v1954
        %2083 = vst.msk [vmem:[%s279 + $0x78] sm:$0xff] %vm1919, %v1955
        %2084 = vst.msk [vmem:[%s279 + $0x80] sm:$0xff] %vm1919, %v1956
        %2085 = vst.msk [vmem:[%s279 + $0x88] sm:$0xff] %vm1919, %v1957
        %2086 = vst.msk [vmem:[%s279 + $0x90] sm:$0xff] %vm1919, %v1958
        %2087 = vst.msk [vmem:[%s279 + $0x98] sm:$0xff] %vm1919, %v1959
        %2088 = vst.msk [vmem:[%s279 + $0xa0] sm:$0xff] %vm1919, %v1960
        %2089 = vst.msk [vmem:[%s279 + $0xa8] sm:$0xff] %vm1919, %v1961
        %2090 = vst.msk [vmem:[%s279 + $0xb0] sm:$0xff] %vm1919, %v1962
        %2091 = vst.msk [vmem:[%s279 + $0xb8] sm:$0xff] %vm1919, %v1963
        %2092 = vst.msk [vmem:[%s279 + $0xc0] sm:$0xff] %vm1919, %v1964
        %2093 = vst.msk [vmem:[%s279 + $0xc8] sm:$0xff] %vm1919, %v1965
        %2094 = vst.msk [vmem:[%s279 + $0xd0] sm:$0xff] %vm1919, %v1966
        %2095 = vst.msk [vmem:[%s279 + $0xd8] sm:$0xff] %vm1919, %v1967
        %2096 = vst.msk [vmem:[%s279 + $0xe0] sm:$0xff] %vm1919, %v1968
        %2097 = vst.msk [vmem:[%s279 + $0xe8] sm:$0xff] %vm1919, %v1969
        %2098 = vst.msk [vmem:[%s279 + $0xf0] sm:$0xff] %vm1919, %v1970
        %2099 = vst.msk [vmem:[%s279 + $0xf8] sm:$0xff] %vm1919, %v1971
        %2100 = vst.msk [vmem:[%s279 + $0x100] sm:$0xff] %vm1919, %v1972
        %2101 = vst.msk [vmem:[%s279 + $0x108] sm:$0xff] %vm1919, %v1973
        %2102 = vst.msk [vmem:[%s279 + $0x110] sm:$0xff] %vm1919, %v1974
        %2103 = vst.msk [vmem:[%s279 + $0x118] sm:$0xff] %vm1919, %v1975
        %2104 = vst.msk [vmem:[%s279 + $0x120] sm:$0xff] %vm1919, %v1976
        %2105 = vst.msk [vmem:[%s279 + $0x128] sm:$0xff] %vm1919, %v1977
        %2106 = vst.msk [vmem:[%s279 + $0x130] sm:$0xff] %vm1919, %v1978
        %2107 = vst.msk [vmem:[%s279 + $0x138] sm:$0xff] %vm1919, %v1979
        %2108 = vst.msk [vmem:[%s279 + $0x140] sm:$0xff] %vm1919, %v1980
        %2109 = vst.msk [vmem:[%s279 + $0x148] sm:$0xff] %vm1919, %v1981
        %2110 = vst.msk [vmem:[%s279 + $0x150] sm:$0xff] %vm1919, %v1982
        %2111 = vst.msk [vmem:[%s279 + $0x158] sm:$0xff] %vm1919, %v1983
        %2112 = vst.msk [vmem:[%s279 + $0x160] sm:$0xff] %vm1919, %v1984
        %2113 = vst.msk [vmem:[%s279 + $0x168] sm:$0xff] %vm1919, %v1985
        %2114 = vst.msk [vmem:[%s279 + $0x170] sm:$0xff] %vm1919, %v1986
        %2115 = vst.msk [vmem:[%s279 + $0x178] sm:$0xff] %vm1919, %v1987
        %2116 = vst.msk [vmem:[%s279 + $0x180] sm:$0xff] %vm1919, %v1988
        %2117 = vst.msk [vmem:[%s279 + $0x188] sm:$0xff] %vm1919, %v1989
        %2118 = vst.msk [vmem:[%s279 + $0x190] sm:$0xff] %vm1919, %v1990
        %2119 = vst.msk [vmem:[%s279 + $0x198] sm:$0xff] %vm1919, %v1991
        %2120 = vst.msk [vmem:[%s279 + $0x1a0] sm:$0xff] %vm1919, %v1992
        %2121 = vst.msk [vmem:[%s279 + $0x1a8] sm:$0xff] %vm1919, %v1993
        %2122 = vst.msk [vmem:[%s279 + $0x1b0] sm:$0xff] %vm1919, %v1994
        %2123 = vst.msk [vmem:[%s279 + $0x1b8] sm:$0xff] %vm1919, %v1995
        %2124 = vst.msk [vmem:[%s279 + $0x1c0] sm:$0xff] %vm1919, %v1996
        %2125 = vst.msk [vmem:[%s279 + $0x1c8] sm:$0xff] %vm1919, %v1997
        %2126 = vst.msk [vmem:[%s279 + $0x1d0] sm:$0xff] %vm1919, %v1998
        %2127 = vst.msk [vmem:[%s279 + $0x1d8] sm:$0xff] %vm1919, %v1999
        %2128 = vst.msk [vmem:[%s279 + $0x1e0] sm:$0xff] %vm1919, %v2000
        %2129 = vst.msk [vmem:[%s279 + $0x1e8] sm:$0xff] %vm1919, %v2001
        %2130 = vst.msk [vmem:[%s279 + $0x1f0] sm:$0xff] %vm1919, %v2002
        %2131 = vst.msk [vmem:[%s279 + $0x1f8] sm:$0xff] %vm1919, %v2003
        %2132 = vst.msk [vmem:[%s279 + $0x200] sm:$0xff] %vm1919, %v2004
        %2133 = vst.msk [vmem:[%s279 + $0x208] sm:$0xff] %vm1919, %v2005
        %2134 = vst.msk [vmem:[%s279 + $0x210] sm:$0xff] %vm1919, %v2006
        %2135 = vst.msk [vmem:[%s279 + $0x218] sm:$0xff] %vm1919, %v2007
        %2136 = vst.msk [vmem:[%s279 + $0x220] sm:$0xff] %vm1919, %v2008
        %2137 = vst.msk [vmem:[%s279 + $0x228] sm:$0xff] %vm1919, %v2009
        %2138 = vst.msk [vmem:[%s279 + $0x230] sm:$0xff] %vm1919, %v2010
        %2139 = vst.msk [vmem:[%s279 + $0x238] sm:$0xff] %vm1919, %v2011
        %2140 = vst.msk [vmem:[%s279 + $0x240] sm:$0xff] %vm1919, %v2012
        %2141 = vst.msk [vmem:[%s279 + $0x248] sm:$0xff] %vm1919, %v2013
        %2142 = vst.msk [vmem:[%s279 + $0x250] sm:$0xff] %vm1919, %v2014
        %2143 = vst.msk [vmem:[%s279 + $0x258] sm:$0xff] %vm1919, %v2015
        %2144 = vst.msk [vmem:[%s279 + $0x260] sm:$0xff] %vm1919, %v2016
        %2145 = vst.msk [vmem:[%s279 + $0x268] sm:$0xff] %vm1919, %v2017
        %2146 = vst.msk [vmem:[%s279 + $0x270] sm:$0xff] %vm1919, %v2018
        %2147 = vst.msk [vmem:[%s279 + $0x278] sm:$0xff] %vm1919, %v2019
        %2148 = vst.msk [vmem:[%s279 + $0x280] sm:$0xff] %vm1919, %v2020
        %2149 = vst.msk [vmem:[%s279 + $0x288] sm:$0xff] %vm1919, %v2021
        %2150 = vst.msk [vmem:[%s279 + $0x290] sm:$0xff] %vm1919, %v2022
        %2151 = vst.msk [vmem:[%s279 + $0x298] sm:$0xff] %vm1919, %v2023
        %2152 = vst.msk [vmem:[%s279 + $0x2a0] sm:$0xff] %vm1919, %v2024
        %2153 = vst.msk [vmem:[%s279 + $0x2a8] sm:$0xff] %vm1919, %v2025
        %2154 = vst.msk [vmem:[%s279 + $0x2b0] sm:$0xff] %vm1919, %v2026
        %2155 = vst.msk [vmem:[%s279 + $0x2b8] sm:$0xff] %vm1919, %v2027
        %2156 = vst.msk [vmem:[%s279 + $0x2c0] sm:$0xff] %vm1919, %v2028
        %2157 = vst.msk [vmem:[%s279 + $0x2c8] sm:$0xff] %vm1919, %v2029
        %2158 = vst.msk [vmem:[%s279 + $0x2d0] sm:$0xff] %vm1919, %v2030
        %2159 = vst.msk [vmem:[%s279 + $0x2d8] sm:$0xff] %vm1919, %v2031
        %2160 = vst.msk [vmem:[%s279 + $0x2e0] sm:$0xff] %vm1919, %v2032
        %2161 = vst.msk [vmem:[%s279 + $0x2e8] sm:$0xff] %vm1919, %v2033
        %2162 = vst.msk [vmem:[%s279 + $0x2f0] sm:$0xff] %vm1919, %v2034
        %2163 = vst.msk [vmem:[%s279 + $0x2f8] sm:$0xff] %vm1919, %v2035
        %2164 = vst.msk [vmem:[%s279 + $0x300] sm:$0xff] %vm1919, %v2036
        %2165 = vst.msk [vmem:[%s279 + $0x308] sm:$0xff] %vm1919, %v2037
        %2166 = vst.msk [vmem:[%s279 + $0x310] sm:$0xff] %vm1919, %v2038
        %2167 = vst.msk [vmem:[%s279 + $0x318] sm:$0xff] %vm1919, %v2039
        %2168 = vst.msk [vmem:[%s279 + $0x320] sm:$0xff] %vm1919, %v2040
        %2169 = vst.msk [vmem:[%s279 + $0x328] sm:$0xff] %vm1919, %v2041
        %2170 = vst.msk [vmem:[%s279 + $0x330] sm:$0xff] %vm1919, %v2042
        %2171 = vst.msk [vmem:[%s279 + $0x338] sm:$0xff] %vm1919, %v2043
        %2172 = vst.msk [vmem:[%s279 + $0x340] sm:$0xff] %vm1919, %v2044
        %2173 = vst.msk [vmem:[%s279 + $0x348] sm:$0xff] %vm1919, %v2045
        %2174 = vst.msk [vmem:[%s279 + $0x350] sm:$0xff] %vm1919, %v2046
        %2175 = vst.msk [vmem:[%s279 + $0x358] sm:$0xff] %vm1919, %v2047
        %2176 = vst.msk [vmem:[%s279 + $0x360] sm:$0xff] %vm1919, %v2048
        %2177 = vst.msk [vmem:[%s279 + $0x368] sm:$0xff] %vm1919, %v2049
        %2178 = vst.msk [vmem:[%s279 + $0x370] sm:$0xff] %vm1919, %v2050
        %2179 = vst.msk [vmem:[%s279 + $0x378] sm:$0xff] %vm1919, %v2051
        %2180 = vst.msk [vmem:[%s279 + $0x380] sm:$0xff] %vm1919, %v2052
        %2181 = vst.msk [vmem:[%s279 + $0x388] sm:$0xff] %vm1919, %v2053
        %2182 = vst.msk [vmem:[%s279 + $0x390] sm:$0xff] %vm1919, %v2054
        %2183 = vst.msk [vmem:[%s279 + $0x398] sm:$0xff] %vm1919, %v2055
        %2184 = vst.msk [vmem:[%s279 + $0x3a0] sm:$0xff] %vm1919, %v2056
        %2185 = vst.msk [vmem:[%s279 + $0x3a8] sm:$0xff] %vm1919, %v2057
        %2186 = vst.msk [vmem:[%s279 + $0x3b0] sm:$0xff] %vm1919, %v2058
        %2187 = vst.msk [vmem:[%s279 + $0x3b8] sm:$0xff] %vm1919, %v2059
        %2188 = vst.msk [vmem:[%s279 + $0x3c0] sm:$0xff] %vm1919, %v2060
        %2189 = vst.msk [vmem:[%s279 + $0x3c8] sm:$0xff] %vm1919, %v2061
        %2190 = vst.msk [vmem:[%s279 + $0x3d0] sm:$0xff] %vm1919, %v2062
        %2191 = vst.msk [vmem:[%s279 + $0x3d8] sm:$0xff] %vm1919, %v2063
        %2192 = vst.msk [vmem:[%s279 + $0x3e0] sm:$0xff] %vm1919, %v2064
        %2193 = vst.msk [vmem:[%s279 + $0x3e8] sm:$0xff] %vm1919, %v2065
        %2194 = vst.msk [vmem:[%s279 + $0x3f0] sm:$0xff] %vm1919, %v2066
        %2195 = vst.msk [vmem:[%s279 + $0x3f8] sm:$0xff] %vm1919, %v2067
      $region40: #{_lambda_.3} parent=31 // pred_fallthru
        _
      %s2196 = smul.u32 16, %s27
      %p2197 = scmp.lt.s32.totalorder %s2196, 15
      %s2198 = scalar_select %p2197, %s2196, 15
      %s2199 = smul.addr %s2198, 8
      %s2200 = scalar_lea.vmem %s4, %s2199
      // Predicated region
      $region41: #{_lambda_.3} parent=31 // pred_check
        %p2201 = pneg %p139
      $region42: #{_lambda_.3} parent=31 // pred_check_branch
        %2203 = sbr.rel (%p2201) target = $region44
      $region43: #{_lambda_.3} parent=31 // pred_region
        %s2204 = smul.u32 16, %s27
      $region44: #{_lambda_.3} parent=31 // pred_fallthru
        _
      // Predicated region
      $region45: #{_lambda_.3} parent=31 // pred_check
        %p2205 = pneg %p139
      $region46: #{_lambda_.3} parent=31 // pred_check_branch
        %2207 = sbr.rel (%p2205) target = $region48
      $region47: #{_lambda_.3} parent=31 // pred_region
        %s2208 = smul.u32 16, %s27
        %p2209 = scmp.lt.s32.totalorder %s2208, 15
        %s2210 = scalar_select %p2209, %s2208, 15
        %s2211 = smul.addr %s2210, 8
        %s2212 = scalar_lea.vmem %s4, %s2211
      $region48: #{_lambda_.3} parent=31 // pred_fallthru
        _
    $region32: #{_lambda_.3} parent=5 // pred_fallthru
      _
    %p2213 = scmp.le.s32.totalorder 2, %s18
    // Predicated region
    $region49: #{_lambda_.3} parent=5 // pred_check
      %p2214 = pneg %p2213
    $region50: #{_lambda_.3} parent=5 // pred_check_branch
      %2216 = sbr.rel (%p2214) target = $region52
    $region51: #{_lambda_.3} parent=5 // pred_region
      %s2217 = ssub.s32 %s18, 2
    $region52: #{_lambda_.3} parent=5 // pred_fallthru
      _
  $region6: #{_lambda_.3} parent=0 // loop_footer
    %s22 = sadd.s32 1, %s18
  $region7: #{_lambda_.3} parent=0 // loop_footer_branch
    %17 = sbr.rel target = $region3
  $region8: #{_lambda_.3} parent=0 // loop_exit
    _

</llo_original>
